<compile_context>
chip_gen: v5e
topology: v5e:2x2
jax: 0.10.0
libtpu: 0.0.40
codegen_flags: <defaults>
</compile_context>

<pallas_src>
import functools

import jax
import jax.numpy as jnp
from jax.experimental import pallas as pl
from jax.experimental.pallas import tpu as pltpu

HEAD_SIZE = 64


def _default_vmem_limit():
    # v7x: 64 MiB physical per TensorCore -> ~48 MiB budget;
    # v5e/v6e: 128 MiB physical -> ~96 MiB budget.  Conservative fallback.
    cap = 64 * 1024 * 1024
    try:
        info = pltpu.get_tpu_info()
        cap = int(getattr(info, "vmem_capacity_bytes", cap))
    except Exception:
        pass
    return max(32 * 1024 * 1024, min(cap * 3 // 4, 110 * 1024 * 1024))


VMEM_LIMIT = _default_vmem_limit()


# ----------------------------------------------------------------------------
# small helpers
# ----------------------------------------------------------------------------
def _round_up(x, m):
    return (x + m - 1) // m * m


def _pad_axis(x, size, axis=0):
    if x.shape[axis] == size:
        return x
    pads = [(0, 0)] * x.ndim
    pads[axis] = (0, size - x.shape[axis])
    return jnp.pad(x, pads)


def _pick_tile(n, t):
    return t if (n > t and n % t == 0) else n


def _cp(*sem):
    return pltpu.CompilerParams(dimension_semantics=sem,
                                vmem_limit_bytes=VMEM_LIMIT)


def _apply_act(y, act):
    # epilogues on the f32 accumulator (v5e has no bf16 VPU/EUP)
    if act == "relu_sq":                       # torch.relu(k) ** 2
        return jnp.square(jnp.maximum(y, 0.0))
    if act == "sigmoid":
        return jax.nn.sigmoid(y)
    if act == "silu":                          # F.silu
        return y * jax.nn.sigmoid(y)
    return y


# ----------------------------------------------------------------------------
# fused token-shift-mix + projection matmul (K-tiled, bf16 MXU, f32 accum)
# ----------------------------------------------------------------------------
def _mix_mm_kernel(*refs, act, nk, with_m):
    if with_m:
        x_ref, xx_ref, maa_ref, m_ref, w_ref, o_ref, acc_ref = refs
    else:
        x_ref, xx_ref, maa_ref, w_ref, o_ref, acc_ref = refs

    @pl.when(pl.program_id(2) == 0)
    def _init():
        acc_ref[...] = jnp.zeros_like(acc_ref)

    mix = maa_ref[...].astype(jnp.float32)
    if with_m:
        mix = mix + m_ref[0].astype(jnp.float32)
    xm = x_ref[...].astype(jnp.float32) + xx_ref[...].astype(jnp.float32) * mix
    acc_ref[...] += jnp.dot(xm.astype(jnp.bfloat16),
                            w_ref[...].astype(jnp.bfloat16),
                            preferred_element_type=jnp.float32)

    @pl.when(pl.program_id(2) == nk - 1)
    def _fin():
        o_ref[...] = _apply_act(acc_ref[...], act).astype(o_ref.dtype)


def mix_matmul(x, xx, maa, w, m=None, m_seg=0, act="none",
               out_dtype=jnp.float32, tm=256, tn=512, tk=1024):
    """act((x + xx*(maa [+ m[m_seg]])) @ w).  x,xx:(M,K); m:(5,M,K); w:(K,N)."""
    M, K = x.shape
    N = w.shape[1]
    tm = min(tm, _round_up(M, 8))
    Mp = _round_up(M, tm)
    tn = _pick_tile(N, tn)
    tk = _pick_tile(K, tk)
    nk = K // tk

    in_specs = [pl.BlockSpec((tm, tk), lambda i, j, k: (i, k)),
                pl.BlockSpec((tm, tk), lambda i, j, k: (i, k)),
                pl.BlockSpec((1, tk), lambda i, j, k: (0, k))]
    args = [_pad_axis(x, Mp), _pad_axis(xx, Mp), maa.reshape(1, K)]
    if m is not None:
        in_specs.append(
            pl.BlockSpec((1, tm, tk), lambda i, j, k, s=m_seg: (s, i, k)))
        args.append(_pad_axis(m, Mp, axis=1))
    in_specs.append(pl.BlockSpec((tk, tn), lambda i, j, k: (k, j)))
    args.append(w)

    out = pl.pallas_call(
        functools.partial(_mix_mm_kernel, act=act, nk=nk, with_m=m is not None),
        out_shape=jax.ShapeDtypeStruct((Mp, N), out_dtype),
        grid=(Mp // tm, N // tn, nk),
        in_specs=in_specs,
        out_specs=pl.BlockSpec((tm, tn), lambda i, j, k: (i, j)),
        scratch_shapes=[pltpu.VMEM((tm, tn), jnp.float32)],
        compiler_params=_cp("parallel", "parallel", "arbitrary"),
    )(*args)
    return out if Mp == M else out[:M]


# ----------------------------------------------------------------------------
# 5-way token-shift LoRA (time_maa): one lane-dense (5, M, C) output
# ----------------------------------------------------------------------------
def _lora_mix_kernel(x_ref, xx_ref, maa_ref, w1_ref, w2_ref, o_ref):
    xm = (x_ref[...].astype(jnp.float32)
          + xx_ref[...].astype(jnp.float32) * maa_ref[...].astype(jnp.float32))
    a = jnp.tanh(jnp.dot(xm.astype(jnp.bfloat16), w1_ref[0].astype(jnp.bfloat16),
                         preferred_element_type=jnp.float32))
    o_ref[0] = jnp.dot(a.astype(jnp.bfloat16), w2_ref[0].astype(jnp.bfloat16),
                       preferred_element_type=jnp.float32).astype(o_ref.dtype)


def lora_mix(x, xx, maa_x, w1, w2, tm=256):
    """x,xx:(M,C); maa_x:(C,); w1:(5,C,D); w2:(5,D,C) -> (5,M,C) bf16."""
    M, C = x.shape
    D = w1.shape[2]
    Co = w2.shape[2]
    tm = min(tm, _round_up(M, 8))
    Mp = _round_up(M, tm)
    out = pl.pallas_call(
        _lora_mix_kernel,
        out_shape=jax.ShapeDtypeStruct((5, Mp, Co), jnp.bfloat16),
        grid=(Mp // tm, 5),
        in_specs=[pl.BlockSpec((tm, C), lambda i, j: (i, 0)),
                  pl.BlockSpec((tm, C), lambda i, j: (i, 0)),
                  pl.BlockSpec((1, C), lambda i, j: (0, 0)),
                  pl.BlockSpec((1, C, D), lambda i, j: (j, 0, 0)),
                  pl.BlockSpec((1, D, Co), lambda i, j: (j, 0, 0))],
        out_specs=pl.BlockSpec((1, tm, Co), lambda i, j: (j, i, 0)),
        compiler_params=_cp("parallel", "arbitrary"),
    )(_pad_axis(x, Mp), _pad_axis(xx, Mp), maa_x.reshape(1, C), w1, w2)
    return out if Mp == M else out[:, :M]


# ----------------------------------------------------------------------------
# decay LoRA: w = time_decay + tanh((x + xx*(maa_w + mw)) @ w1) @ w2
# ----------------------------------------------------------------------------
def _decay_lora_kernel(x_ref, xx_ref, maa_ref, m_ref, w1_ref, w2_ref, b_ref, o_ref):
    xm = (x_ref[...].astype(jnp.float32)
          + xx_ref[...].astype(jnp.float32)
          * (maa_ref[...].astype(jnp.float32) + m_ref[0].astype(jnp.float32)))
    a = jnp.tanh(jnp.dot(xm.astype(jnp.bfloat16), w1_ref[...].astype(jnp.bfloat16),
                         preferred_element_type=jnp.float32))
    ww = jnp.dot(a.astype(jnp.bfloat16), w2_ref[...].astype(jnp.bfloat16),
                 preferred_element_type=jnp.float32)
    o_ref[...] = (ww + b_ref[...].astype(jnp.float32)).astype(o_ref.dtype)


def decay_lora(x, xx, maa_w, m, w1, w2, decay_bias, tm=256):
    M, C = x.shape
    D = w1.shape[1]
    A = w2.shape[1]
    tm = min(tm, _round_up(M, 8))
    Mp = _round_up(M, tm)
    out = pl.pallas_call(
        _decay_lora_kernel,
        out_shape=jax.ShapeDtypeStruct((Mp, A), jnp.bfloat16),
        grid=(Mp // tm,),
        in_specs=[pl.BlockSpec((tm, C), lambda i: (i, 0)),
                  pl.BlockSpec((tm, C), lambda i: (i, 0)),
                  pl.BlockSpec((1, C), lambda i: (0, 0)),
                  pl.BlockSpec((1, tm, C), lambda i: (0, i, 0)),   # mw = segment 0
                  pl.BlockSpec((C, D), lambda i: (0, 0)),
                  pl.BlockSpec((D, A), lambda i: (0, 0)),
                  pl.BlockSpec((1, A), lambda i: (0, 0))],
        out_specs=pl.BlockSpec((tm, A), lambda i: (i, 0)),
        compiler_params=_cp("parallel"),
    )(_pad_axis(x, Mp), _pad_axis(xx, Mp), maa_w.reshape(1, C),
      _pad_axis(m, Mp, axis=1), w1, w2, decay_bias.reshape(1, A))
    return out if Mp == M else out[:M]


# ----------------------------------------------------------------------------
# GroupNorm / LayerNorm
# ----------------------------------------------------------------------------
def _group_norm_kernel(x_ref, g_ref, b_ref, o_ref, *, num_groups, eps):
    x = x_ref[...].astype(jnp.float32)
    tm, C = x.shape
    gs = C // num_groups
    xg = x.reshape(tm, num_groups, gs)
    mean = jnp.mean(xg, axis=-1, keepdims=True)
    var = jnp.mean(jnp.square(xg - mean), axis=-1, keepdims=True)
    xn = ((xg - mean) * jax.lax.rsqrt(var + eps)).reshape(tm, C)
    o_ref[...] = (xn * g_ref[...] + b_ref[...]).astype(o_ref.dtype)


def group_norm(x, gamma, beta, num_groups, eps, tm=512, out_dtype=jnp.float32):
    M, C = x.shape
    tm = min(tm, _round_up(M, 8))
    Mp = _round_up(M, tm)
    out = pl.pallas_call(
        functools.partial(_group_norm_kernel, num_groups=num_groups, eps=eps),
        out_shape=jax.ShapeDtypeStruct((Mp, C), out_dtype),
        grid=(Mp // tm,),
        in_specs=[pl.BlockSpec((tm, C), lambda i: (i, 0)),
                  pl.BlockSpec((1, C), lambda i: (0, 0)),
                  pl.BlockSpec((1, C), lambda i: (0, 0))],
        out_specs=pl.BlockSpec((tm, C), lambda i: (i, 0)),
        compiler_params=_cp("parallel"),
    )(_pad_axis(x, Mp), gamma.reshape(1, C), beta.reshape(1, C))
    return out if Mp == M else out[:M]


def layer_norm(x, gamma, beta, eps=1e-5, out_dtype=jnp.float32):
    return group_norm(x, gamma, beta, num_groups=1, eps=eps, out_dtype=out_dtype)


# ----------------------------------------------------------------------------
# GroupNorm(ln_x) + gate hoisted to scratch, reused across output-proj N tiles
# ----------------------------------------------------------------------------
def _gn_gate_mm_kernel(y_ref, g_ref, gm_ref, bt_ref, w_ref, o_ref, z_ref, *,
                       num_groups, eps):
    @pl.when(pl.program_id(1) == 0)
    def _prologue():
        y = y_ref[...].astype(jnp.float32)
        tm, A = y.shape
        gs = A // num_groups
        yg = y.reshape(tm, num_groups, gs)
        mean = jnp.mean(yg, axis=-1, keepdims=True)
        var = jnp.mean(jnp.square(yg - mean), axis=-1, keepdims=True)
        yn = ((yg - mean) * jax.lax.rsqrt(var + eps)).reshape(tm, A)
        z = (yn * gm_ref[...] + bt_ref[...]) * g_ref[...].astype(jnp.float32)
        z_ref[...] = z.astype(z_ref.dtype)

    o_ref[...] = jnp.dot(z_ref[...], w_ref[...].astype(jnp.bfloat16),
                         preferred_element_type=jnp.float32).astype(o_ref.dtype)


def gn_gate_matmul(y, g, gamma, beta, w, num_groups, eps, tm=256, tn=512):
    M, A = y.shape
    N = w.shape[1]
    tm = min(tm, _round_up(M, 8))
    Mp = _round_up(M, tm)
    tn = _pick_tile(N, tn)
    out = pl.pallas_call(
        functools.partial(_gn_gate_mm_kernel, num_groups=num_groups, eps=eps),
        out_shape=jax.ShapeDtypeStruct((Mp, N), jnp.float32),
        grid=(Mp // tm, N // tn),
        in_specs=[pl.BlockSpec((tm, A), lambda i, j: (i, 0)),
                  pl.BlockSpec((tm, A), lambda i, j: (i, 0)),
                  pl.BlockSpec((1, A), lambda i, j: (0, 0)),
                  pl.BlockSpec((1, A), lambda i, j: (0, 0)),
                  pl.BlockSpec((A, tn), lambda i, j: (0, j))],
        out_specs=pl.BlockSpec((tm, tn), lambda i, j: (i, j)),
        scratch_shapes=[pltpu.VMEM((tm, A), jnp.bfloat16)],
        compiler_params=_cp("parallel", "arbitrary"),
    )(_pad_axis(y, Mp), _pad_axis(g, Mp), gamma.reshape(1, A),
      beta.reshape(1, A), w)
    return out if Mp == M else out[:M]


# ----------------------------------------------------------------------------
# rg * (k @ w): ffn_value matmul, K-tiled, sigmoid-receptance gate fused
# ----------------------------------------------------------------------------
def _gated_mm_kernel(k_ref, rg_ref, w_ref, o_ref, acc_ref, *, nk):
    @pl.when(pl.program_id(2) == 0)
    def _init():
        acc_ref[...] = jnp.zeros_like(acc_ref)

    acc_ref[...] += jnp.dot(k_ref[...].astype(jnp.bfloat16),
                            w_ref[...].astype(jnp.bfloat16),
                            preferred_element_type=jnp.float32)

    @pl.when(pl.program_id(2) == nk - 1)
    def _fin():
        o_ref[...] = (rg_ref[...].astype(jnp.float32) * acc_ref[...]).astype(o_ref.dtype)


def gated_matmul(k, rg, w, tm=256, tn=512, tk=1024):
    M, K = k.shape
    N = w.shape[1]
    tm = min(tm, _round_up(M, 8))
    Mp = _round_up(M, tm)
    tn = _pick_tile(N, tn)
    tk = _pick_tile(K, tk)
    nk = K // tk
    out = pl.pallas_call(
        functools.partial(_gated_mm_kernel, nk=nk),
        out_shape=jax.ShapeDtypeStruct((Mp, N), jnp.float32),
        grid=(Mp // tm, N // tn, nk),
        in_specs=[pl.BlockSpec((tm, tk), lambda i, j, kk: (i, kk)),
                  pl.BlockSpec((tm, tn), lambda i, j, kk: (i, j)),
                  pl.BlockSpec((tk, tn), lambda i, j, kk: (kk, j))],
        out_specs=pl.BlockSpec((tm, tn), lambda i, j, kk: (i, j)),
        scratch_shapes=[pltpu.VMEM((tm, tn), jnp.float32)],
        compiler_params=_cp("parallel", "parallel", "arbitrary"),
    )(_pad_axis(k, Mp), _pad_axis(rg, Mp), w)
    return out if Mp == M else out[:M]


# ----------------------------------------------------------------------------
# WKV6: chunked recurrence, (batch, head-group, chunk) grid
# ----------------------------------------------------------------------------
def _wkv6_kernel(r_ref, k_ref, v_ref, w_ref, u_ref, o_ref, s_ref, *, Lc, hg, N):
    """One grid step = one (batch, head-group, time-chunk).

    Per head, d[t,j] = exp(-exp(w[t,j])); with in-chunk log-decay cumsums
    a_excl / b_incl:
      y[t] = diag-u term + sum_{s<t} (r[t]*k[s]*exp(a_excl[t]-b_incl[s])) v[s]
           + (r[t]*exp(a_excl[t])) @ S
      S   <- exp(total) * S + sum_s (k[s]*exp(total-b_incl[s]))^T v[s]
    Factors are centred at the chunk midpoint so each bf16 operand is bounded
    by exp((Lc/2)*|logd|); masked (future) entries are dropped with `where`
    so an overflow there cannot create NaNs.
    """
    @pl.when(pl.program_id(2) == 0)
    def _init():
        s_ref[...] = jnp.zeros_like(s_ref)

    f32 = jnp.float32
    bf16 = jnp.bfloat16
    hi_p = jax.lax.Precision.HIGHEST

    ti = jax.lax.broadcasted_iota(jnp.int32, (Lc, Lc), 0)   # query t
    si = jax.lax.broadcasted_iota(jnp.int32, (Lc, Lc), 1)   # key   s
    lower = si < ti
    is_diag = si == ti
    le = (si <= ti).astype(f32)
    ones_col = jnp.ones((Lc, 1), f32)

    r_all = r_ref[0]                                   # (Lc, hg*N) bf16
    k_all = k_ref[0]
    v_all = v_ref[0]
    logd_all = -jnp.exp(w_ref[0].astype(f32))          # (Lc, hg*N), <= 0
    u_all = u_ref[...].astype(f32)                     # (1, hg*N)

    mid = max(Lc // 2, 1)
    ys = []
    for h in range(hg):
        cs = slice(h * N, (h + 1) * N)
        r = r_all[:, cs].astype(f32)
        k = k_all[:, cs].astype(f32)
        v = v_all[:, cs]                                # bf16 for the MXU
        logd = logd_all[:, cs]
        u = u_all[:, cs]                                # (1, N)

        # exact f32 in-chunk cumulative log-decays (tiny MXU dots)
        b_incl = jax.lax.dot_general(le, logd, (((1,), (0,)), ((), ())),
                                     precision=hi_p, preferred_element_type=f32)
        a_excl = b_incl - logd
        total_row = b_incl[Lc - 1:Lc, :]                # (1, N)
        c_mid = b_incl[mid - 1:mid, :]                  # reference, cancels exactly
        total_col = jax.lax.dot_general(logd, ones_col, (((0,), (0,)), ((), ())),
                                        precision=hi_p, preferred_element_type=f32)

        r_intra = (r * jnp.exp(a_excl - c_mid)).astype(bf16)
        k_intra = (k * jnp.exp(c_mid - b_incl)).astype(bf16)
        r_state = (r * jnp.exp(a_excl)).astype(bf16)              # factor <= 1
        k_state = (k * jnp.exp(total_row - b_incl)).astype(bf16)  # factor <= 1

        S = s_ref[h]                                    # (N, N) f32, [j, i]

        att = jax.lax.dot_general(r_intra, k_intra, (((1,), (1,)), ((), ())),
                                  preferred_element_type=f32)     # (Lc, Lc)
        diag = jnp.sum(r * u * k, axis=-1, keepdims=True)         # (Lc, 1)
        att = jnp.where(is_diag, diag, jnp.where(lower, att, 0.0))

        y = (jnp.dot(att.astype(bf16), v, preferred_element_type=f32)
             + jnp.dot(r_state, S.astype(bf16), preferred_element_type=f32))
        ys.append(y)

        s_ref[h] = (jnp.exp(total_col) * S
                    + jax.lax.dot_general(k_state, v, (((0,), (0,)), ((), ())),
                                          preferred_element_type=f32))

    o_ref[0] = jnp.concatenate(ys, axis=-1).astype(o_ref.dtype)   # lane-dense store


def wkv6(r, k, v, w, u, B, T, C, H, chunk=32):
    """r, k, v, w: (B, T, C); u: (H, N).  Returns (B, T, C) bf16."""
    N = C // H
    hg = next((g for g in (8, 4, 2) if H % g == 0), H)   # heads per grid step
    Lc = min(chunk, _round_up(T, 8))
    Tp = _round_up(T, Lc)

    def prep(t):                               # free reshape layout, pad T only
        return _pad_axis(t.astype(jnp.bfloat16), Tp, axis=1)

    rb, kb, vb, wb = (prep(t) for t in (r, k, v, w))
    u2 = u.reshape(1, C).astype(jnp.float32)
    blk = pl.BlockSpec((1, Lc, hg * N), lambda b, hi, ci: (b, ci, hi))
    y = pl.pallas_call(
        functools.partial(_wkv6_kernel, Lc=Lc, hg=hg, N=N),
        out_shape=jax.ShapeDtypeStruct((B, Tp, C), jnp.bfloat16),
        grid=(B, H // hg, Tp // Lc),
        in_specs=[blk, blk, blk, blk,
                  pl.BlockSpec((1, hg * N), lambda b, hi, ci: (0, hi))],
        out_specs=blk,
        scratch_shapes=[pltpu.VMEM((hg, N, N), jnp.float32)],
        compiler_params=_cp("parallel", "parallel", "arbitrary"),
    )(rb, kb, vb, wb, u2)
    return y if Tp == T else y[:, :T]


# ----------------------------------------------------------------------------
# Plain-JAX glue: parameter construction + module wiring
# ----------------------------------------------------------------------------
def time_shift(x):
    """nn.ZeroPad2d((0, 0, 1, -1)) on (B, T, C): xx[t] = x[t-1], xx[0] = 0."""
    return jnp.pad(x, ((0, 0), (1, 0), (0, 0)))[:, :-1, :]


def make_params(key, args):
    C, A, Ff = args["n_embd"], args["dim_att"], args["dim_ffn"]
    L, lid = args["n_layer"], args["layer_id"]
    H = A // HEAD_SIZE
    ks = jax.random.split(key, 16)
    bf16 = jnp.bfloat16

    def lin(k, fan_in, fan_out):               # torch Linear weight, pre-transposed
        s = 1.0 / jnp.sqrt(fan_in)
        return jax.random.uniform(k, (fan_in, fan_out), jnp.float32, -s, s).astype(bf16)

    r01 = lid / (L - 1)
    r1a0 = 1.0 - lid / L
    ddd = jnp.arange(C, dtype=jnp.float32) / C
    n_a = jnp.arange(A, dtype=jnp.float32)
    D_MIX = 32

    # torch stores time_maa_w1 as (C, 5*D); keep the per-segment split as (5, C, D)
    maa_w1 = (0.01 * jax.random.normal(ks[0], (C, 5 * D_MIX), jnp.float32)
              ).reshape(C, 5, D_MIX).transpose(1, 0, 2).astype(bf16)

    p = dict(
        ln0_g=jnp.ones(C), ln0_b=jnp.zeros(C),
        ln1_g=jnp.ones(C), ln1_b=jnp.zeros(C),
        ln2_g=jnp.ones(C), ln2_b=jnp.zeros(C),
        # --- RWKV_Tmix_x060 ---
        time_maa_x=1.0 - ddd ** r1a0,
        time_maa_w=1.0 - ddd ** r1a0,
        time_maa_k=1.0 - ddd ** r1a0,
        time_maa_v=1.0 - (ddd ** r1a0 + 0.3 * r01),
        time_maa_r=1.0 - ddd ** (0.5 * r1a0),
        time_maa_g=1.0 - ddd ** (0.5 * r1a0),
        # (torch inits time_maa_w1/time_decay_w1 to zeros; small random values
        #  keep the LoRA matmul paths exercised while staying deterministic.)
        time_maa_w1=maa_w1,
        time_maa_w2=jax.random.uniform(ks[1], (5, D_MIX, C), jnp.float32, -0.01, 0.01).astype(bf16),
        time_decay=(-6.0 + 5.0 * (n_a / (A - 1)) ** (0.7 + 1.3 * r01)),
        time_decay_w1=(0.01 * jax.random.normal(ks[2], (C, 64), jnp.float32)).astype(bf16),
        time_decay_w2=jax.random.uniform(ks[3], (64, A), jnp.float32, -0.01, 0.01).astype(bf16),
        time_faaaa=(r01 * (1.0 - n_a / (A - 1))
                    + ((jnp.arange(A) + 1) % 3 - 1).astype(jnp.float32) * 0.1
                    ).reshape(H, HEAD_SIZE),
        att_receptance=lin(ks[4], C, A),
        att_key=lin(ks[5], C, A),
        att_value=lin(ks[6], C, A),
        att_output=lin(ks[7], A, C),
        att_gate=lin(ks[8], C, A),
        ln_x_g=jnp.ones(A), ln_x_b=jnp.zeros(A),
        # --- RWKV_CMix_x060 ---
        ffn_time_maa_k=1.0 - ddd ** r1a0,
        ffn_time_maa_r=1.0 - ddd ** r1a0,
        ffn_key=lin(ks[9], C, Ff),
        ffn_receptance=lin(ks[10], C, C),
        ffn_value=lin(ks[11], Ff, C),
    )
    return p


def att_forward(p, x_ln, args):
    B, T, C = x_ln.shape
    A = args["dim_att"]
    H = A // HEAD_SIZE
    M = B * T
    bf16 = jnp.bfloat16

    xx = time_shift(x_ln) - x_ln
    x2 = x_ln.reshape(M, C)
    xx2 = xx.reshape(M, C)

    # 5-way token-shift LoRA (segments: w, k, v, r, g) -> (5, M, C) bf16
    mix5 = lora_mix(x2, xx2, p["time_maa_x"], p["time_maa_w1"], p["time_maa_w2"])

    # mixes fused into the projection prologues; bf16 intermediates for the MXU
    r = mix_matmul(x2, xx2, p["time_maa_r"], p["att_receptance"],
                   m=mix5, m_seg=3, out_dtype=bf16)
    k = mix_matmul(x2, xx2, p["time_maa_k"], p["att_key"],
                   m=mix5, m_seg=1, out_dtype=bf16)
    v = mix_matmul(x2, xx2, p["time_maa_v"], p["att_value"],
                   m=mix5, m_seg=2, out_dtype=bf16)
    g = mix_matmul(x2, xx2, p["time_maa_g"], p["att_gate"],
                   m=mix5, m_seg=4, act="silu", out_dtype=bf16)
    w = decay_lora(x2, xx2, p["time_maa_w"], mix5,
                   p["time_decay_w1"], p["time_decay_w2"], p["time_decay"])

    y = wkv6(r.reshape(B, T, A), k.reshape(B, T, A), v.reshape(B, T, A),
             w.reshape(B, T, A), p["time_faaaa"], B, T, A, H)

    # jit_func_2: GroupNorm(n_head) + gate + output projection, fused
    eps = 1e-5 * (args["head_size_divisor"] ** 2)
    out = gn_gate_matmul(y.reshape(M, A), g, p["ln_x_g"], p["ln_x_b"],
                         p["att_output"], num_groups=H, eps=eps)
    return out.reshape(B, T, C)


def ffn_forward(p, x_ln):
    B, T, C = x_ln.shape
    M = B * T
    bf16 = jnp.bfloat16
    xx = time_shift(x_ln) - x_ln
    x2 = x_ln.reshape(M, C)
    xx2 = xx.reshape(M, C)
    k = mix_matmul(x2, xx2, p["ffn_time_maa_k"], p["ffn_key"],
                   act="relu_sq", out_dtype=bf16)
    rg = mix_matmul(x2, xx2, p["ffn_time_maa_r"], p["ffn_receptance"],
                    act="sigmoid", out_dtype=bf16)
    out = gated_matmul(k, rg, p["ffn_value"])           # rg * (k @ value) fused
    return out.reshape(B, T, C)


def block_forward(p, x, args):
    B, T, C = x.shape
    M = B * T
    bf16 = jnp.bfloat16
    if args["layer_id"] == 0:
        x = layer_norm(x.reshape(M, C), p["ln0_g"], p["ln0_b"]).reshape(B, T, C)
    xn1 = layer_norm(x.reshape(M, C), p["ln1_g"], p["ln1_b"],
                     out_dtype=bf16).reshape(B, T, C)
    x = x + att_forward(p, xn1, args)
    xn2 = layer_norm(x.reshape(M, C), p["ln2_g"], p["ln2_b"],
                     out_dtype=bf16).reshape(B, T, C)
    x = x + ffn_forward(p, xn2)
    # TODO(synk): args.dropout > 0 path (nn.Dropout) not implemented; dropout=0 here.
    return x


# ----------------------------------------------------------------------------
if __name__ == "__main__":
    args = dict(n_embd=64, dim_att=64, dim_ffn=128, n_layer=2, layer_id=0,
                head_size_divisor=8, dropout=0)
    B, T, C = 2, 8, args["n_embd"]

    key = jax.random.PRNGKey(0)
    k_param, k_x = jax.random.split(key)
    params = make_params(k_param, args)
    x = jax.random.normal(k_x, (B, T, C), dtype=jnp.float32)

    fwd = jax.jit(lambda p, xin: block_forward(p, xin, args))
    y = jax.block_until_ready(fwd(params, x))
    assert y.shape == (B, T, C)
    assert bool(jnp.all(jnp.isfinite(y)))
    print("KERNEL_OK")
</pallas_src>

<mosaic_0001>
module attributes {stable_mosaic.version = 11 : i64} {
  func.func @_group_norm_kernel(%arg0: i32, %arg1: memref<16x64xf32, #tpu.memory_space<vmem>>, %arg2: memref<1x64xf32, #tpu.memory_space<vmem>>, %arg3: memref<1x64xf32, #tpu.memory_space<vmem>>, %arg4: memref<16x64xbf16, #tpu.memory_space<vmem>>) attributes {dimension_semantics = [#tpu.dimension_semantics<parallel>], iteration_bounds = array<i64: 1>, scalar_prefetch = 0 : i64, scratch_operands = 0 : i64, tpu.core_type = #tpu.core_type<tc>, window_params = [{transform_indices = @transform_0, window_bounds = array<i64: 16, 64>}, {pipeline_mode = #tpu.pipeline_mode<synchronous>, transform_indices = @transform_1, window_bounds = array<i64: 1, 64>}, {pipeline_mode = #tpu.pipeline_mode<synchronous>, transform_indices = @transform_2, window_bounds = array<i64: 1, 64>}, {transform_indices = @transform_3, window_bounds = array<i64: 16, 64>}]} {
    %c0 = arith.constant 0 : index
    %c0_0 = arith.constant 0 : index
    %0 = vector.load %arg1[%c0, %c0_0] : memref<16x64xf32, #tpu.memory_space<vmem>>, vector<16x64xf32>
    %1 = vector.shape_cast %0 : vector<16x64xf32> to vector<16x1x64xf32>
    %cst = arith.constant dense<0.000000e+00> : vector<16x1xf32>
    %2 = vector.multi_reduction <add>, %1, %cst [2] : vector<16x1x64xf32> to vector<16x1xf32>
    %3 = vector.shape_cast %2 : vector<16x1xf32> to vector<16x1x1xf32>
    %cst_1 = arith.constant 6.400000e+01 : f32
    %4 = vector.broadcast %cst_1 : f32 to vector<16x1x1xf32>
    %5 = arith.divf %3, %4 : vector<16x1x1xf32>
    %6 = vector.broadcast %5 : vector<16x1x1xf32> to vector<16x1x64xf32>
    %7 = arith.subf %1, %6 : vector<16x1x64xf32>
    %8 = arith.mulf %7, %7 : vector<16x1x64xf32>
    %cst_2 = arith.constant dense<0.000000e+00> : vector<16x1xf32>
    %9 = vector.multi_reduction <add>, %8, %cst_2 [2] : vector<16x1x64xf32> to vector<16x1xf32>
    %10 = vector.shape_cast %9 : vector<16x1xf32> to vector<16x1x1xf32>
    %cst_3 = arith.constant 6.400000e+01 : f32
    %11 = vector.broadcast %cst_3 : f32 to vector<16x1x1xf32>
    %12 = arith.divf %10, %11 : vector<16x1x1xf32>
    %13 = vector.broadcast %5 : vector<16x1x1xf32> to vector<16x1x64xf32>
    %14 = arith.subf %1, %13 : vector<16x1x64xf32>
    %cst_4 = arith.constant 9.99999974E-6 : f32
    %15 = vector.broadcast %cst_4 : f32 to vector<16x1x1xf32>
    %16 = arith.addf %12, %15 : vector<16x1x1xf32>
    %17 = math.rsqrt %16 : vector<16x1x1xf32>
    %18 = vector.broadcast %17 : vector<16x1x1xf32> to vector<16x1x64xf32>
    %19 = arith.mulf %14, %18 : vector<16x1x64xf32>
    %20 = vector.shape_cast %19 : vector<16x1x64xf32> to vector<16x64xf32>
    %c0_5 = arith.constant 0 : index
    %c0_6 = arith.constant 0 : index
    %21 = vector.load %arg2[%c0_5, %c0_6] : memref<1x64xf32, #tpu.memory_space<vmem>>, vector<1x64xf32>
    %22 = vector.broadcast %21 : vector<1x64xf32> to vector<16x64xf32>
    %23 = arith.mulf %20, %22 : vector<16x64xf32>
    %c0_7 = arith.constant 0 : index
    %c0_8 = arith.constant 0 : index
    %24 = vector.load %arg3[%c0_7, %c0_8] : memref<1x64xf32, #tpu.memory_space<vmem>>, vector<1x64xf32>
    %25 = vector.broadcast %24 : vector<1x64xf32> to vector<16x64xf32>
    %26 = arith.addf %23, %25 : vector<16x64xf32>
    %27 = arith.truncf %26 : vector<16x64xf32> to vector<16x64xbf16>
    %c0_9 = arith.constant 0 : index
    %c0_10 = arith.constant 0 : index
    %28 = vector.load %arg4[%c0_9, %c0_10] : memref<16x64xbf16, #tpu.memory_space<vmem>>, vector<16x64xbf16>
    tpu.vector_store %arg4[%c0_9, %c0_10], %27 {strides = array<i32>} : memref<16x64xbf16, #tpu.memory_space<vmem>>, vector<16x64xbf16>,
    return
  }
  func.func @transform_0(%arg0: i32) -> (i32, i32) {
    %c0_i32 = arith.constant 0 : i32
    %c0_i32_0 = arith.constant 0 : i32
    return %arg0, %c0_i32 : i32, i32
  }
  func.func @transform_1(%arg0: i32) -> (i32, i32) {
    %c0_i32 = arith.constant 0 : i32
    %c0_i32_0 = arith.constant 0 : i32
    %c0_i32_1 = arith.constant 0 : i32
    return %c0_i32, %c0_i32_0 : i32, i32
  }
  func.func @transform_2(%arg0: i32) -> (i32, i32) {
    %c0_i32 = arith.constant 0 : i32
    %c0_i32_0 = arith.constant 0 : i32
    %c0_i32_1 = arith.constant 0 : i32
    return %c0_i32, %c0_i32_0 : i32, i32
  }
  func.func @transform_3(%arg0: i32) -> (i32, i32) {
    %c0_i32 = arith.constant 0 : i32
    %c0_i32_0 = arith.constant 0 : i32
    return %arg0, %c0_i32 : i32, i32
  }
}

module attributes {stable_mosaic.version = 11 : i64} {
  func.func @_group_norm_kernel(%arg0: i32, %arg1: memref<16x64xf32, #tpu.memory_space<vmem>>, %arg2: memref<1x64xf32, #tpu.memory_space<vmem>>, %arg3: memref<1x64xf32, #tpu.memory_space<vmem>>, %arg4: memref<16x64xf32, #tpu.memory_space<vmem>>) attributes {dimension_semantics = [#tpu.dimension_semantics<parallel>], iteration_bounds = array<i64: 1>, scalar_prefetch = 0 : i64, scratch_operands = 0 : i64, tpu.core_type = #tpu.core_type<tc>, window_params = [{transform_indices = @transform_0, window_bounds = array<i64: 16, 64>}, {pipeline_mode = #tpu.pipeline_mode<synchronous>, transform_indices = @transform_1, window_bounds = array<i64: 1, 64>}, {pipeline_mode = #tpu.pipeline_mode<synchronous>, transform_indices = @transform_2, window_bounds = array<i64: 1, 64>}, {transform_indices = @transform_3, window_bounds = array<i64: 16, 64>}]} {
    %c0 = arith.constant 0 : index
    %c0_0 = arith.constant 0 : index
    %0 = vector.load %arg1[%c0, %c0_0] : memref<16x64xf32, #tpu.memory_space<vmem>>, vector<16x64xf32>
    %1 = vector.shape_cast %0 : vector<16x64xf32> to vector<16x1x64xf32>
    %cst = arith.constant dense<0.000000e+00> : vector<16x1xf32>
    %2 = vector.multi_reduction <add>, %1, %cst [2] : vector<16x1x64xf32> to vector<16x1xf32>
    %3 = vector.shape_cast %2 : vector<16x1xf32> to vector<16x1x1xf32>
    %cst_1 = arith.constant 6.400000e+01 : f32
    %4 = vector.broadcast %cst_1 : f32 to vector<16x1x1xf32>
    %5 = arith.divf %3, %4 : vector<16x1x1xf32>
    %6 = vector.broadcast %5 : vector<16x1x1xf32> to vector<16x1x64xf32>
    %7 = arith.subf %1, %6 : vector<16x1x64xf32>
    %8 = arith.mulf %7, %7 : vector<16x1x64xf32>
    %cst_2 = arith.constant dense<0.000000e+00> : vector<16x1xf32>
    %9 = vector.multi_reduction <add>, %8, %cst_2 [2] : vector<16x1x64xf32> to vector<16x1xf32>
    %10 = vector.shape_cast %9 : vector<16x1xf32> to vector<16x1x1xf32>
    %cst_3 = arith.constant 6.400000e+01 : f32
    %11 = vector.broadcast %cst_3 : f32 to vector<16x1x1xf32>
    %12 = arith.divf %10, %11 : vector<16x1x1xf32>
    %13 = vector.broadcast %5 : vector<16x1x1xf32> to vector<16x1x64xf32>
    %14 = arith.subf %1, %13 : vector<16x1x64xf32>
    %cst_4 = arith.constant 9.99999974E-6 : f32
    %15 = vector.broadcast %cst_4 : f32 to vector<16x1x1xf32>
    %16 = arith.addf %12, %15 : vector<16x1x1xf32>
    %17 = math.rsqrt %16 : vector<16x1x1xf32>
    %18 = vector.broadcast %17 : vector<16x1x1xf32> to vector<16x1x64xf32>
    %19 = arith.mulf %14, %18 : vector<16x1x64xf32>
    %20 = vector.shape_cast %19 : vector<16x1x64xf32> to vector<16x64xf32>
    %c0_5 = arith.constant 0 : index
    %c0_6 = arith.constant 0 : index
    %21 = vector.load %arg2[%c0_5, %c0_6] : memref<1x64xf32, #tpu.memory_space<vmem>>, vector<1x64xf32>
    %22 = vector.broadcast %21 : vector<1x64xf32> to vector<16x64xf32>
    %23 = arith.mulf %20, %22 : vector<16x64xf32>
    %c0_7 = arith.constant 0 : index
    %c0_8 = arith.constant 0 : index
    %24 = vector.load %arg3[%c0_7, %c0_8] : memref<1x64xf32, #tpu.memory_space<vmem>>, vector<1x64xf32>
    %25 = vector.broadcast %24 : vector<1x64xf32> to vector<16x64xf32>
    %26 = arith.addf %23, %25 : vector<16x64xf32>
    %c0_9 = arith.constant 0 : index
    %c0_10 = arith.constant 0 : index
    %27 = vector.load %arg4[%c0_9, %c0_10] : memref<16x64xf32, #tpu.memory_space<vmem>>, vector<16x64xf32>
    tpu.vector_store %arg4[%c0_9, %c0_10], %26 {strides = array<i32>} : memref<16x64xf32, #tpu.memory_space<vmem>>, vector<16x64xf32>,
    return
  }
  func.func @transform_0(%arg0: i32) -> (i32, i32) {
    %c0_i32 = arith.constant 0 : i32
    %c0_i32_0 = arith.constant 0 : i32
    return %arg0, %c0_i32 : i32, i32
  }
  func.func @transform_1(%arg0: i32) -> (i32, i32) {
    %c0_i32 = arith.constant 0 : i32
    %c0_i32_0 = arith.constant 0 : i32
    %c0_i32_1 = arith.constant 0 : i32
    return %c0_i32, %c0_i32_0 : i32, i32
  }
  func.func @transform_2(%arg0: i32) -> (i32, i32) {
    %c0_i32 = arith.constant 0 : i32
    %c0_i32_0 = arith.constant 0 : i32
    %c0_i32_1 = arith.constant 0 : i32
    return %c0_i32, %c0_i32_0 : i32, i32
  }
  func.func @transform_3(%arg0: i32) -> (i32, i32) {
    %c0_i32 = arith.constant 0 : i32
    %c0_i32_0 = arith.constant 0 : i32
    return %arg0, %c0_i32 : i32, i32
  }
}

module attributes {stable_mosaic.version = 11 : i64} {
  func.func @_decay_lora_kernel(%arg0: i32, %arg1: memref<16x64xbf16, #tpu.memory_space<vmem>>, %arg2: memref<16x64xbf16, #tpu.memory_space<vmem>>, %arg3: memref<1x64xf32, #tpu.memory_space<vmem>>, %arg4: memref<1x16x64xbf16, #tpu.memory_space<vmem>>, %arg5: memref<64x64xbf16, #tpu.memory_space<vmem>>, %arg6: memref<64x64xbf16, #tpu.memory_space<vmem>>, %arg7: memref<1x64xf32, #tpu.memory_space<vmem>>, %arg8: memref<16x64xbf16, #tpu.memory_space<vmem>>) attributes {dimension_semantics = [#tpu.dimension_semantics<parallel>], iteration_bounds = array<i64: 1>, scalar_prefetch = 0 : i64, scratch_operands = 0 : i64, tpu.core_type = #tpu.core_type<tc>, window_params = [{transform_indices = @transform_0, window_bounds = array<i64: 16, 64>}, {transform_indices = @transform_1, window_bounds = array<i64: 16, 64>}, {pipeline_mode = #tpu.pipeline_mode<synchronous>, transform_indices = @transform_2, window_bounds = array<i64: 1, 64>}, {transform_indices = @transform_3, window_bounds = array<i64: 1, 16, 64>}, {pipeline_mode = #tpu.pipeline_mode<synchronous>, transform_indices = @transform_4, window_bounds = array<i64: 64, 64>}, {pipeline_mode = #tpu.pipeline_mode<synchronous>, transform_indices = @transform_5, window_bounds = array<i64: 64, 64>}, {pipeline_mode = #tpu.pipeline_mode<synchronous>, transform_indices = @transform_6, window_bounds = array<i64: 1, 64>}, {transform_indices = @transform_7, window_bounds = array<i64: 16, 64>}]} {
    %c0 = arith.constant 0 : index
    %c0_0 = arith.constant 0 : index
    %0 = vector.load %arg1[%c0, %c0_0] : memref<16x64xbf16, #tpu.memory_space<vmem>>, vector<16x64xbf16>
    %1 = arith.extf %0 : vector<16x64xbf16> to vector<16x64xf32>
    %c0_1 = arith.constant 0 : index
    %c0_2 = arith.constant 0 : index
    %2 = vector.load %arg2[%c0_1, %c0_2] : memref<16x64xbf16, #tpu.memory_space<vmem>>, vector<16x64xbf16>
    %3 = arith.extf %2 : vector<16x64xbf16> to vector<16x64xf32>
    %c0_3 = arith.constant 0 : index
    %c0_4 = arith.constant 0 : index
    %4 = vector.load %arg3[%c0_3, %c0_4] : memref<1x64xf32, #tpu.memory_space<vmem>>, vector<1x64xf32>
    %c0_5 = arith.constant 0 : index
    %c0_6 = arith.constant 0 : index
    %c0_7 = arith.constant 0 : index
    %5 = vector.load %arg4[%c0_5, %c0_6, %c0_7] : memref<1x16x64xbf16, #tpu.memory_space<vmem>>, vector<1x16x64xbf16>
    %6 = vector.shape_cast %5 : vector<1x16x64xbf16> to vector<16x64xbf16>
    %7 = arith.extf %6 : vector<16x64xbf16> to vector<16x64xf32>
    %8 = vector.broadcast %4 : vector<1x64xf32> to vector<16x64xf32>
    %9 = arith.addf %8, %7 : vector<16x64xf32>
    %10 = arith.mulf %3, %9 : vector<16x64xf32>
    %11 = arith.addf %1, %10 : vector<16x64xf32>
    %12 = arith.truncf %11 : vector<16x64xf32> to vector<16x64xbf16>
    %c0_8 = arith.constant 0 : index
    %c0_9 = arith.constant 0 : index
    %13 = vector.load %arg5[%c0_8, %c0_9] : memref<64x64xbf16, #tpu.memory_space<vmem>>, vector<64x64xbf16>
    %cst = arith.constant dense<0.000000e+00> : vector<16x64xf32>
    %14 = tpu.matmul %12, %13, %cst {dimension_numbers = #tpu.dot_dimension_numbers<[1], [0], [0], [1], [0, 0, 1, 1], [], []>} : vector<16x64xbf16>, vector<64x64xbf16>, vector<16x64xf32> -> vector<16x64xf32>
    %15 = math.tanh %14 : vector<16x64xf32>
    %16 = arith.truncf %15 : vector<16x64xf32> to vector<16x64xbf16>
    %c0_10 = arith.constant 0 : index
    %c0_11 = arith.constant 0 : index
    %17 = vector.load %arg6[%c0_10, %c0_11] : memref<64x64xbf16, #tpu.memory_space<vmem>>, vector<64x64xbf16>
    %cst_12 = arith.constant dense<0.000000e+00> : vector<16x64xf32>
    %18 = tpu.matmul %16, %17, %cst_12 {dimension_numbers = #tpu.dot_dimension_numbers<[1], [0], [0], [1], [0, 0, 1, 1], [], []>} : vector<16x64xbf16>, vector<64x64xbf16>, vector<16x64xf32> -> vector<16x64xf32>
    %c0_13 = arith.constant 0 : index
    %c0_14 = arith.constant 0 : index
    %19 = vector.load %arg7[%c0_13, %c0_14] : memref<1x64xf32, #tpu.memory_space<vmem>>, vector<1x64xf32>
    %20 = vector.broadcast %19 : vector<1x64xf32> to vector<16x64xf32>
    %21 = arith.addf %18, %20 : vector<16x64xf32>
    %22 = arith.truncf %21 : vector<16x64xf32> to vector<16x64xbf16>
    %c0_15 = arith.constant 0 : index
    %c0_16 = arith.constant 0 : index
    %23 = vector.load %arg8[%c0_15, %c0_16] : memref<16x64xbf16, #tpu.memory_space<vmem>>, vector<16x64xbf16>
    tpu.vector_store %arg8[%c0_15, %c0_16], %22 {strides = array<i32>} : memref<16x64xbf16, #tpu.memory_space<vmem>>, vector<16x64xbf16>,
    return
  }
  func.func @transform_0(%arg0: i32) -> (i32, i32) {
    %c0_i32 = arith.constant 0 : i32
    %c0_i32_0 = arith.constant 0 : i32
    return %arg0, %c0_i32 : i32, i32
  }
  func.func @transform_1(%arg0: i32) -> (i32, i32) {
    %c0_i32 = arith.constant 0 : i32
    %c0_i32_0 = arith.constant 0 : i32
    return %arg0, %c0_i32 : i32, i32
  }
  func.func @transform_2(%arg0: i32) -> (i32, i32) {
    %c0_i32 = arith.constant 0 : i32
    %c0_i32_0 = arith.constant 0 : i32
    %c0_i32_1 = arith.constant 0 : i32
    return %c0_i32, %c0_i32_0 : i32, i32
  }
  func.func @transform_3(%arg0: i32) -> (i32, i32, i32) {
    %c0_i32 = arith.constant 0 : i32
    %c0_i32_0 = arith.constant 0 : i32
    %c0_i32_1 = arith.constant 0 : i32
    return %c0_i32, %arg0, %c0_i32_0 : i32, i32, i32
  }
  func.func @transform_4(%arg0: i32) -> (i32, i32) {
    %c0_i32 = arith.constant 0 : i32
    %c0_i32_0 = arith.constant 0 : i32
    %c0_i32_1 = arith.constant 0 : i32
    return %c0_i32, %c0_i32_0 : i32, i32
  }
  func.func @transform_5(%arg0: i32) -> (i32, i32) {
    %c0_i32 = arith.constant 0 : i32
    %c0_i32_0 = arith.constant 0 : i32
    %c0_i32_1 = arith.constant 0 : i32
    return %c0_i32, %c0_i32_0 : i32, i32
  }
  func.func @transform_6(%arg0: i32) -> (i32, i32) {
    %c0_i32 = arith.constant 0 : i32
    %c0_i32_0 = arith.constant 0 : i32
    %c0_i32_1 = arith.constant 0 : i32
    return %c0_i32, %c0_i32_0 : i32, i32
  }
  func.func @transform_7(%arg0: i32) -> (i32, i32) {
    %c0_i32 = arith.constant 0 : i32
    %c0_i32_0 = arith.constant 0 : i32
    return %arg0, %c0_i32 : i32, i32
  }
}

module attributes {stable_mosaic.version = 11 : i64} {
  func.func @_lora_mix_kernel(%arg0: i32, %arg1: i32, %arg2: memref<16x64xbf16, #tpu.memory_space<vmem>>, %arg3: memref<16x64xbf16, #tpu.memory_space<vmem>>, %arg4: memref<1x64xf32, #tpu.memory_space<vmem>>, %arg5: memref<1x64x32xbf16, #tpu.memory_space<vmem>>, %arg6: memref<1x32x64xbf16, #tpu.memory_space<vmem>>, %arg7: memref<1x16x64xbf16, #tpu.memory_space<vmem>>) attributes {dimension_semantics = [#tpu.dimension_semantics<parallel>, #tpu.dimension_semantics<arbitrary>], iteration_bounds = array<i64: 1, 5>, scalar_prefetch = 0 : i64, scratch_operands = 0 : i64, tpu.core_type = #tpu.core_type<tc>, window_params = [{transform_indices = @transform_0, window_bounds = array<i64: 16, 64>}, {transform_indices = @transform_1, window_bounds = array<i64: 16, 64>}, {pipeline_mode = #tpu.pipeline_mode<synchronous>, transform_indices = @transform_2, window_bounds = array<i64: 1, 64>}, {transform_indices = @transform_3, window_bounds = array<i64: 1, 64, 32>}, {transform_indices = @transform_4, window_bounds = array<i64: 1, 32, 64>}, {transform_indices = @transform_5, window_bounds = array<i64: 1, 16, 64>}]} {
    %c0 = arith.constant 0 : index
    %c0_0 = arith.constant 0 : index
    %0 = vector.load %arg2[%c0, %c0_0] : memref<16x64xbf16, #tpu.memory_space<vmem>>, vector<16x64xbf16>
    %1 = arith.extf %0 : vector<16x64xbf16> to vector<16x64xf32>
    %c0_1 = arith.constant 0 : index
    %c0_2 = arith.constant 0 : index
    %2 = vector.load %arg3[%c0_1, %c0_2] : memref<16x64xbf16, #tpu.memory_space<vmem>>, vector<16x64xbf16>
    %3 = arith.extf %2 : vector<16x64xbf16> to vector<16x64xf32>
    %c0_3 = arith.constant 0 : index
    %c0_4 = arith.constant 0 : index
    %4 = vector.load %arg4[%c0_3, %c0_4] : memref<1x64xf32, #tpu.memory_space<vmem>>, vector<1x64xf32>
    %5 = vector.broadcast %4 : vector<1x64xf32> to vector<16x64xf32>
    %6 = arith.mulf %3, %5 : vector<16x64xf32>
    %7 = arith.addf %1, %6 : vector<16x64xf32>
    %8 = arith.truncf %7 : vector<16x64xf32> to vector<16x64xbf16>
    %c0_5 = arith.constant 0 : index
    %c0_6 = arith.constant 0 : index
    %c0_7 = arith.constant 0 : index
    %9 = vector.load %arg5[%c0_5, %c0_6, %c0_7] : memref<1x64x32xbf16, #tpu.memory_space<vmem>>, vector<1x64x32xbf16>
    %10 = vector.shape_cast %9 : vector<1x64x32xbf16> to vector<64x32xbf16>
    %cst = arith.constant dense<0.000000e+00> : vector<16x32xf32>
    %11 = tpu.matmul %8, %10, %cst {dimension_numbers = #tpu.dot_dimension_numbers<[1], [0], [0], [1], [0, 0, 1, 1], [], []>} : vector<16x64xbf16>, vector<64x32xbf16>, vector<16x32xf32> -> vector<16x32xf32>
    %12 = math.tanh %11 : vector<16x32xf32>
    %13 = arith.truncf %12 : vector<16x32xf32> to vector<16x32xbf16>
    %c0_8 = arith.constant 0 : index
    %c0_9 = arith.constant 0 : index
    %c0_10 = arith.constant 0 : index
    %14 = vector.load %arg6[%c0_8, %c0_9, %c0_10] : memref<1x32x64xbf16, #tpu.memory_space<vmem>>, vector<1x32x64xbf16>
    %15 = vector.shape_cast %14 : vector<1x32x64xbf16> to vector<32x64xbf16>
    %cst_11 = arith.constant dense<0.000000e+00> : vector<16x64xf32>
    %16 = tpu.matmul %13, %15, %cst_11 {dimension_numbers = #tpu.dot_dimension_numbers<[1], [0], [0], [1], [0, 0, 1, 1], [], []>} : vector<16x32xbf16>, vector<32x64xbf16>, vector<16x64xf32> -> vector<16x64xf32>
    %17 = arith.truncf %16 : vector<16x64xf32> to vector<16x64xbf16>
    %c0_12 = arith.constant 0 : index
    %c0_13 = arith.constant 0 : index
    %c0_14 = arith.constant 0 : index
    %18 = vector.load %arg7[%c0_12, %c0_13, %c0_14] : memref<1x16x64xbf16, #tpu.memory_space<vmem>>, vector<1x16x64xbf16>
    %19 = vector.shape_cast %18 : vector<1x16x64xbf16> to vector<16x64xbf16>
    %20 = vector.shape_cast %17 : vector<16x64xbf16> to vector<1x16x64xbf16>
    tpu.vector_store %arg7[%c0_12, %c0_13, %c0_14], %20 {strides = array<i32>} : memref<1x16x64xbf16, #tpu.memory_space<vmem>>, vector<1x16x64xbf16>,
    return
  }
  func.func @transform_0(%arg0: i32, %arg1: i32) -> (i32, i32) {
    %c0_i32 = arith.constant 0 : i32
    %c0_i32_0 = arith.constant 0 : i32
    return %arg0, %c0_i32 : i32, i32
  }
  func.func @transform_1(%arg0: i32, %arg1: i32) -> (i32, i32) {
    %c0_i32 = arith.constant 0 : i32
    %c0_i32_0 = arith.constant 0 : i32
    return %arg0, %c0_i32 : i32, i32
  }
  func.func @transform_2(%arg0: i32, %arg1: i32) -> (i32, i32) {
    %c0_i32 = arith.constant 0 : i32
    %c0_i32_0 = arith.constant 0 : i32
    %c0_i32_1 = arith.constant 0 : i32
    return %c0_i32, %c0_i32_0 : i32, i32
  }
  func.func @transform_3(%arg0: i32, %arg1: i32) -> (i32, i32, i32) {
    %c0_i32 = arith.constant 0 : i32
    %c0_i32_0 = arith.constant 0 : i32
    %c0_i32_1 = arith.constant 0 : i32
    return %arg1, %c0_i32, %c0_i32_0 : i32, i32, i32
  }
  func.func @transform_4(%arg0: i32, %arg1: i32) -> (i32, i32, i32) {
    %c0_i32 = arith.constant 0 : i32
    %c0_i32_0 = arith.constant 0 : i32
    %c0_i32_1 = arith.constant 0 : i32
    return %arg1, %c0_i32, %c0_i32_0 : i32, i32, i32
  }
  func.func @transform_5(%arg0: i32, %arg1: i32) -> (i32, i32, i32) {
    %c0_i32 = arith.constant 0 : i32
    %c0_i32_0 = arith.constant 0 : i32
    return %arg1, %arg0, %c0_i32 : i32, i32, i32
  }
}

module attributes {stable_mosaic.version = 11 : i64} {
  func.func @_mix_mm_kernel(%arg0: i32, %arg1: i32, %arg2: i32, %arg3: memref<16x64xbf16, #tpu.memory_space<vmem>>, %arg4: memref<16x64xbf16, #tpu.memory_space<vmem>>, %arg5: memref<1x64xf32, #tpu.memory_space<vmem>>, %arg6: memref<1x16x64xbf16, #tpu.memory_space<vmem>>, %arg7: memref<64x64xbf16, #tpu.memory_space<vmem>>, %arg8: memref<16x64xbf16, #tpu.memory_space<vmem>>, %arg9: memref<16x64xf32, #tpu.memory_space<vmem>>) attributes {dimension_semantics = [#tpu.dimension_semantics<parallel>, #tpu.dimension_semantics<parallel>, #tpu.dimension_semantics<arbitrary>], iteration_bounds = array<i64: 1, 1, 1>, scalar_prefetch = 0 : i64, scratch_operands = 1 : i64, tpu.core_type = #tpu.core_type<tc>, window_params = [{transform_indices = @transform_0, window_bounds = array<i64: 16, 64>}, {transform_indices = @transform_1, window_bounds = array<i64: 16, 64>}, {transform_indices = @transform_2, window_bounds = array<i64: 1, 64>}, {transform_indices = @transform_3, window_bounds = array<i64: 1, 16, 64>}, {transform_indices = @transform_4, window_bounds = array<i64: 64, 64>}, {transform_indices = @transform_5, window_bounds = array<i64: 16, 64>}]} {
    %c0_i32 = arith.constant 0 : i32
    %0 = arith.cmpi eq, %arg2, %c0_i32 : i32
    %1 = arith.extui %0 : i1 to i32
    %c0_i32_0 = arith.constant 0 : i32
    %2 = arith.cmpi ne, %1, %c0_i32_0 : i32
    scf.if %2 {
      %cst_17 = arith.constant 0.000000e+00 : f32
      %24 = vector.broadcast %cst_17 : f32 to vector<16x64xf32>
      %c0_18 = arith.constant 0 : index
      %c0_19 = arith.constant 0 : index
      %25 = vector.load %arg9[%c0_18, %c0_19] : memref<16x64xf32, #tpu.memory_space<vmem>>, vector<16x64xf32>
      tpu.vector_store %arg9[%c0_18, %c0_19], %24 {strides = array<i32>} : memref<16x64xf32, #tpu.memory_space<vmem>>, vector<16x64xf32>,
    } else {
    }
    %c0 = arith.constant 0 : index
    %c0_1 = arith.constant 0 : index
    %3 = vector.load %arg5[%c0, %c0_1] : memref<1x64xf32, #tpu.memory_space<vmem>>, vector<1x64xf32>
    %c0_2 = arith.constant 0 : index
    %c0_3 = arith.constant 0 : index
    %c0_4 = arith.constant 0 : index
    %4 = vector.load %arg6[%c0_2, %c0_3, %c0_4] : memref<1x16x64xbf16, #tpu.memory_space<vmem>>, vector<1x16x64xbf16>
    %5 = vector.shape_cast %4 : vector<1x16x64xbf16> to vector<16x64xbf16>
    %6 = arith.extf %5 : vector<16x64xbf16> to vector<16x64xf32>
    %7 = vector.broadcast %3 : vector<1x64xf32> to vector<16x64xf32>
    %8 = arith.addf %7, %6 : vector<16x64xf32>
    %c0_5 = arith.constant 0 : index
    %c0_6 = arith.constant 0 : index
    %9 = vector.load %arg3[%c0_5, %c0_6] : memref<16x64xbf16, #tpu.memory_space<vmem>>, vector<16x64xbf16>
    %10 = arith.extf %9 : vector<16x64xbf16> to vector<16x64xf32>
    %c0_7 = arith.constant 0 : index
    %c0_8 = arith.constant 0 : index
    %11 = vector.load %arg4[%c0_7, %c0_8] : memref<16x64xbf16, #tpu.memory_space<vmem>>, vector<16x64xbf16>
    %12 = arith.extf %11 : vector<16x64xbf16> to vector<16x64xf32>
    %13 = arith.mulf %12, %8 : vector<16x64xf32>
    %14 = arith.addf %10, %13 : vector<16x64xf32>
    %c0_9 = arith.constant 0 : index
    %c0_10 = arith.constant 0 : index
    %15 = vector.load %arg9[%c0_9, %c0_10] : memref<16x64xf32, #tpu.memory_space<vmem>>, vector<16x64xf32>
    %16 = arith.truncf %14 : vector<16x64xf32> to vector<16x64xbf16>
    %c0_11 = arith.constant 0 : index
    %c0_12 = arith.constant 0 : index
    %17 = vector.load %arg7[%c0_11, %c0_12] : memref<64x64xbf16, #tpu.memory_space<vmem>>, vector<64x64xbf16>
    %cst = arith.constant dense<0.000000e+00> : vector<16x64xf32>
    %18 = tpu.matmul %16, %17, %cst {dimension_numbers = #tpu.dot_dimension_numbers<[1], [0], [0], [1], [0, 0, 1, 1], [], []>} : vector<16x64xbf16>, vector<64x64xbf16>, vector<16x64xf32> -> vector<16x64xf32>
    %19 = arith.addf %15, %18 : vector<16x64xf32>
    %c0_13 = arith.constant 0 : index
    %c0_14 = arith.constant 0 : index
    %20 = vector.load %arg9[%c0_13, %c0_14] : memref<16x64xf32, #tpu.memory_space<vmem>>, vector<16x64xf32>
    tpu.vector_store %arg9[%c0_13, %c0_14], %19 {strides = array<i32>} : memref<16x64xf32, #tpu.memory_space<vmem>>, vector<16x64xf32>,
    %c0_i32_15 = arith.constant 0 : i32
    %21 = arith.cmpi eq, %arg2, %c0_i32_15 : i32
    %22 = arith.extui %21 : i1 to i32
    %c0_i32_16 = arith.constant 0 : i32
    %23 = arith.cmpi ne, %22, %c0_i32_16 : i32
    scf.if %23 {
      %c0_17 = arith.constant 0 : index
      %c0_18 = arith.constant 0 : index
      %24 = vector.load %arg9[%c0_17, %c0_18] : memref<16x64xf32, #tpu.memory_space<vmem>>, vector<16x64xf32>
      %25 = arith.truncf %24 : vector<16x64xf32> to vector<16x64xbf16>
      %c0_19 = arith.constant 0 : index
      %c0_20 = arith.constant 0 : index
      %26 = vector.load %arg8[%c0_19, %c0_20] : memref<16x64xbf16, #tpu.memory_space<vmem>>, vector<16x64xbf16>
      tpu.vector_store %arg8[%c0_19, %c0_20], %25 {strides = array<i32>} : memref<16x64xbf16, #tpu.memory_space<vmem>>, vector<16x64xbf16>,
    } else {
    }
    return
  }
  func.func @transform_0(%arg0: i32, %arg1: i32, %arg2: i32) -> (i32, i32) {
    %c0_i32 = arith.constant 0 : i32
    return %arg0, %arg2 : i32, i32
  }
  func.func @transform_1(%arg0: i32, %arg1: i32, %arg2: i32) -> (i32, i32) {
    %c0_i32 = arith.constant 0 : i32
    return %arg0, %arg2 : i32, i32
  }
  func.func @transform_2(%arg0: i32, %arg1: i32, %arg2: i32) -> (i32, i32) {
    %c0_i32 = arith.constant 0 : i32
    %c0_i32_0 = arith.constant 0 : i32
    return %c0_i32, %arg2 : i32, i32
  }
  func.func @transform_3(%arg0: i32, %arg1: i32, %arg2: i32) -> (i32, i32, i32) {
    %c2_i32 = arith.constant 2 : i32
    %c0_i32 = arith.constant 0 : i32
    return %c2_i32, %arg0, %arg2 : i32, i32, i32
  }
  func.func @transform_4(%arg0: i32, %arg1: i32, %arg2: i32) -> (i32, i32) {
    %c0_i32 = arith.constant 0 : i32
    return %arg2, %arg1 : i32, i32
  }
  func.func @transform_5(%arg0: i32, %arg1: i32, %arg2: i32) -> (i32, i32) {
    %c0_i32 = arith.constant 0 : i32
    return %arg0, %arg1 : i32, i32
  }
}

module attributes {stable_mosaic.version = 11 : i64} {
  func.func @_mix_mm_kernel(%arg0: i32, %arg1: i32, %arg2: i32, %arg3: memref<16x64xbf16, #tpu.memory_space<vmem>>, %arg4: memref<16x64xbf16, #tpu.memory_space<vmem>>, %arg5: memref<1x64xf32, #tpu.memory_space<vmem>>, %arg6: memref<1x16x64xbf16, #tpu.memory_space<vmem>>, %arg7: memref<64x64xbf16, #tpu.memory_space<vmem>>, %arg8: memref<16x64xbf16, #tpu.memory_space<vmem>>, %arg9: memref<16x64xf32, #tpu.memory_space<vmem>>) attributes {dimension_semantics = [#tpu.dimension_semantics<parallel>, #tpu.dimension_semantics<parallel>, #tpu.dimension_semantics<arbitrary>], iteration_bounds = array<i64: 1, 1, 1>, scalar_prefetch = 0 : i64, scratch_operands = 1 : i64, tpu.core_type = #tpu.core_type<tc>, window_params = [{transform_indices = @transform_0, window_bounds = array<i64: 16, 64>}, {transform_indices = @transform_1, window_bounds = array<i64: 16, 64>}, {transform_indices = @transform_2, window_bounds = array<i64: 1, 64>}, {transform_indices = @transform_3, window_bounds = array<i64: 1, 16, 64>}, {transform_indices = @transform_4, window_bounds = array<i64: 64, 64>}, {transform_indices = @transform_5, window_bounds = array<i64: 16, 64>}]} {
    %c0_i32 = arith.constant 0 : i32
    %0 = arith.cmpi eq, %arg2, %c0_i32 : i32
    %1 = arith.extui %0 : i1 to i32
    %c0_i32_0 = arith.constant 0 : i32
    %2 = arith.cmpi ne, %1, %c0_i32_0 : i32
    scf.if %2 {
      %cst_17 = arith.constant 0.000000e+00 : f32
      %24 = vector.broadcast %cst_17 : f32 to vector<16x64xf32>
      %c0_18 = arith.constant 0 : index
      %c0_19 = arith.constant 0 : index
      %25 = vector.load %arg9[%c0_18, %c0_19] : memref<16x64xf32, #tpu.memory_space<vmem>>, vector<16x64xf32>
      tpu.vector_store %arg9[%c0_18, %c0_19], %24 {strides = array<i32>} : memref<16x64xf32, #tpu.memory_space<vmem>>, vector<16x64xf32>,
    } else {
    }
    %c0 = arith.constant 0 : index
    %c0_1 = arith.constant 0 : index
    %3 = vector.load %arg5[%c0, %c0_1] : memref<1x64xf32, #tpu.memory_space<vmem>>, vector<1x64xf32>
    %c0_2 = arith.constant 0 : index
    %c0_3 = arith.constant 0 : index
    %c0_4 = arith.constant 0 : index
    %4 = vector.load %arg6[%c0_2, %c0_3, %c0_4] : memref<1x16x64xbf16, #tpu.memory_space<vmem>>, vector<1x16x64xbf16>
    %5 = vector.shape_cast %4 : vector<1x16x64xbf16> to vector<16x64xbf16>
    %6 = arith.extf %5 : vector<16x64xbf16> to vector<16x64xf32>
    %7 = vector.broadcast %3 : vector<1x64xf32> to vector<16x64xf32>
    %8 = arith.addf %7, %6 : vector<16x64xf32>
    %c0_5 = arith.constant 0 : index
    %c0_6 = arith.constant 0 : index
    %9 = vector.load %arg3[%c0_5, %c0_6] : memref<16x64xbf16, #tpu.memory_space<vmem>>, vector<16x64xbf16>
    %10 = arith.extf %9 : vector<16x64xbf16> to vector<16x64xf32>
    %c0_7 = arith.constant 0 : index
    %c0_8 = arith.constant 0 : index
    %11 = vector.load %arg4[%c0_7, %c0_8] : memref<16x64xbf16, #tpu.memory_space<vmem>>, vector<16x64xbf16>
    %12 = arith.extf %11 : vector<16x64xbf16> to vector<16x64xf32>
    %13 = arith.mulf %12, %8 : vector<16x64xf32>
    %14 = arith.addf %10, %13 : vector<16x64xf32>
    %c0_9 = arith.constant 0 : index
    %c0_10 = arith.constant 0 : index
    %15 = vector.load %arg9[%c0_9, %c0_10] : memref<16x64xf32, #tpu.memory_space<vmem>>, vector<16x64xf32>
    %16 = arith.truncf %14 : vector<16x64xf32> to vector<16x64xbf16>
    %c0_11 = arith.constant 0 : index
    %c0_12 = arith.constant 0 : index
    %17 = vector.load %arg7[%c0_11, %c0_12] : memref<64x64xbf16, #tpu.memory_space<vmem>>, vector<64x64xbf16>
    %cst = arith.constant dense<0.000000e+00> : vector<16x64xf32>
    %18 = tpu.matmul %16, %17, %cst {dimension_numbers = #tpu.dot_dimension_numbers<[1], [0], [0], [1], [0, 0, 1, 1], [], []>} : vector<16x64xbf16>, vector<64x64xbf16>, vector<16x64xf32> -> vector<16x64xf32>
    %19 = arith.addf %15, %18 : vector<16x64xf32>
    %c0_13 = arith.constant 0 : index
    %c0_14 = arith.constant 0 : index
    %20 = vector.load %arg9[%c0_13, %c0_14] : memref<16x64xf32, #tpu.memory_space<vmem>>, vector<16x64xf32>
    tpu.vector_store %arg9[%c0_13, %c0_14], %19 {strides = array<i32>} : memref<16x64xf32, #tpu.memory_space<vmem>>, vector<16x64xf32>,
    %c0_i32_15 = arith.constant 0 : i32
    %21 = arith.cmpi eq, %arg2, %c0_i32_15 : i32
    %22 = arith.extui %21 : i1 to i32
    %c0_i32_16 = arith.constant 0 : i32
    %23 = arith.cmpi ne, %22, %c0_i32_16 : i32
    scf.if %23 {
      %c0_17 = arith.constant 0 : index
      %c0_18 = arith.constant 0 : index
      %24 = vector.load %arg9[%c0_17, %c0_18] : memref<16x64xf32, #tpu.memory_space<vmem>>, vector<16x64xf32>
      %25 = arith.truncf %24 : vector<16x64xf32> to vector<16x64xbf16>
      %c0_19 = arith.constant 0 : index
      %c0_20 = arith.constant 0 : index
      %26 = vector.load %arg8[%c0_19, %c0_20] : memref<16x64xbf16, #tpu.memory_space<vmem>>, vector<16x64xbf16>
      tpu.vector_store %arg8[%c0_19, %c0_20], %25 {strides = array<i32>} : memref<16x64xbf16, #tpu.memory_space<vmem>>, vector<16x64xbf16>,
    } else {
    }
    return
  }
  func.func @transform_0(%arg0: i32, %arg1: i32, %arg2: i32) -> (i32, i32) {
    %c0_i32 = arith.constant 0 : i32
    return %arg0, %arg2 : i32, i32
  }
  func.func @transform_1(%arg0: i32, %arg1: i32, %arg2: i32) -> (i32, i32) {
    %c0_i32 = arith.constant 0 : i32
    return %arg0, %arg2 : i32, i32
  }
  func.func @transform_2(%arg0: i32, %arg1: i32, %arg2: i32) -> (i32, i32) {
    %c0_i32 = arith.constant 0 : i32
    %c0_i32_0 = arith.constant 0 : i32
    return %c0_i32, %arg2 : i32, i32
  }
  func.func @transform_3(%arg0: i32, %arg1: i32, %arg2: i32) -> (i32, i32, i32) {
    %c1_i32 = arith.constant 1 : i32
    %c0_i32 = arith.constant 0 : i32
    return %c1_i32, %arg0, %arg2 : i32, i32, i32
  }
  func.func @transform_4(%arg0: i32, %arg1: i32, %arg2: i32) -> (i32, i32) {
    %c0_i32 = arith.constant 0 : i32
    return %arg2, %arg1 : i32, i32
  }
  func.func @transform_5(%arg0: i32, %arg1: i32, %arg2: i32) -> (i32, i32) {
    %c0_i32 = arith.constant 0 : i32
    return %arg0, %arg1 : i32, i32
  }
}

module attributes {stable_mosaic.version = 11 : i64} {
  func.func @_mix_mm_kernel(%arg0: i32, %arg1: i32, %arg2: i32, %arg3: memref<16x64xbf16, #tpu.memory_space<vmem>>, %arg4: memref<16x64xbf16, #tpu.memory_space<vmem>>, %arg5: memref<1x64xf32, #tpu.memory_space<vmem>>, %arg6: memref<1x16x64xbf16, #tpu.memory_space<vmem>>, %arg7: memref<64x64xbf16, #tpu.memory_space<vmem>>, %arg8: memref<16x64xbf16, #tpu.memory_space<vmem>>, %arg9: memref<16x64xf32, #tpu.memory_space<vmem>>) attributes {dimension_semantics = [#tpu.dimension_semantics<parallel>, #tpu.dimension_semantics<parallel>, #tpu.dimension_semantics<arbitrary>], iteration_bounds = array<i64: 1, 1, 1>, scalar_prefetch = 0 : i64, scratch_operands = 1 : i64, tpu.core_type = #tpu.core_type<tc>, window_params = [{transform_indices = @transform_0, window_bounds = array<i64: 16, 64>}, {transform_indices = @transform_1, window_bounds = array<i64: 16, 64>}, {transform_indices = @transform_2, window_bounds = array<i64: 1, 64>}, {transform_indices = @transform_3, window_bounds = array<i64: 1, 16, 64>}, {transform_indices = @transform_4, window_bounds = array<i64: 64, 64>}, {transform_indices = @transform_5, window_bounds = array<i64: 16, 64>}]} {
    %c0_i32 = arith.constant 0 : i32
    %0 = arith.cmpi eq, %arg2, %c0_i32 : i32
    %1 = arith.extui %0 : i1 to i32
    %c0_i32_0 = arith.constant 0 : i32
    %2 = arith.cmpi ne, %1, %c0_i32_0 : i32
    scf.if %2 {
      %cst_17 = arith.constant 0.000000e+00 : f32
      %24 = vector.broadcast %cst_17 : f32 to vector<16x64xf32>
      %c0_18 = arith.constant 0 : index
      %c0_19 = arith.constant 0 : index
      %25 = vector.load %arg9[%c0_18, %c0_19] : memref<16x64xf32, #tpu.memory_space<vmem>>, vector<16x64xf32>
      tpu.vector_store %arg9[%c0_18, %c0_19], %24 {strides = array<i32>} : memref<16x64xf32, #tpu.memory_space<vmem>>, vector<16x64xf32>,
    } else {
    }
    %c0 = arith.constant 0 : index
    %c0_1 = arith.constant 0 : index
    %3 = vector.load %arg5[%c0, %c0_1] : memref<1x64xf32, #tpu.memory_space<vmem>>, vector<1x64xf32>
    %c0_2 = arith.constant 0 : index
    %c0_3 = arith.constant 0 : index
    %c0_4 = arith.constant 0 : index
    %4 = vector.load %arg6[%c0_2, %c0_3, %c0_4] : memref<1x16x64xbf16, #tpu.memory_space<vmem>>, vector<1x16x64xbf16>
    %5 = vector.shape_cast %4 : vector<1x16x64xbf16> to vector<16x64xbf16>
    %6 = arith.extf %5 : vector<16x64xbf16> to vector<16x64xf32>
    %7 = vector.broadcast %3 : vector<1x64xf32> to vector<16x64xf32>
    %8 = arith.addf %7, %6 : vector<16x64xf32>
    %c0_5 = arith.constant 0 : index
    %c0_6 = arith.constant 0 : index
    %9 = vector.load %arg3[%c0_5, %c0_6] : memref<16x64xbf16, #tpu.memory_space<vmem>>, vector<16x64xbf16>
    %10 = arith.extf %9 : vector<16x64xbf16> to vector<16x64xf32>
    %c0_7 = arith.constant 0 : index
    %c0_8 = arith.constant 0 : index
    %11 = vector.load %arg4[%c0_7, %c0_8] : memref<16x64xbf16, #tpu.memory_space<vmem>>, vector<16x64xbf16>
    %12 = arith.extf %11 : vector<16x64xbf16> to vector<16x64xf32>
    %13 = arith.mulf %12, %8 : vector<16x64xf32>
    %14 = arith.addf %10, %13 : vector<16x64xf32>
    %c0_9 = arith.constant 0 : index
    %c0_10 = arith.constant 0 : index
    %15 = vector.load %arg9[%c0_9, %c0_10] : memref<16x64xf32, #tpu.memory_space<vmem>>, vector<16x64xf32>
    %16 = arith.truncf %14 : vector<16x64xf32> to vector<16x64xbf16>
    %c0_11 = arith.constant 0 : index
    %c0_12 = arith.constant 0 : index
    %17 = vector.load %arg7[%c0_11, %c0_12] : memref<64x64xbf16, #tpu.memory_space<vmem>>, vector<64x64xbf16>
    %cst = arith.constant dense<0.000000e+00> : vector<16x64xf32>
    %18 = tpu.matmul %16, %17, %cst {dimension_numbers = #tpu.dot_dimension_numbers<[1], [0], [0], [1], [0, 0, 1, 1], [], []>} : vector<16x64xbf16>, vector<64x64xbf16>, vector<16x64xf32> -> vector<16x64xf32>
    %19 = arith.addf %15, %18 : vector<16x64xf32>
    %c0_13 = arith.constant 0 : index
    %c0_14 = arith.constant 0 : index
    %20 = vector.load %arg9[%c0_13, %c0_14] : memref<16x64xf32, #tpu.memory_space<vmem>>, vector<16x64xf32>
    tpu.vector_store %arg9[%c0_13, %c0_14], %19 {strides = array<i32>} : memref<16x64xf32, #tpu.memory_space<vmem>>, vector<16x64xf32>,
    %c0_i32_15 = arith.constant 0 : i32
    %21 = arith.cmpi eq, %arg2, %c0_i32_15 : i32
    %22 = arith.extui %21 : i1 to i32
    %c0_i32_16 = arith.constant 0 : i32
    %23 = arith.cmpi ne, %22, %c0_i32_16 : i32
    scf.if %23 {
      %c0_17 = arith.constant 0 : index
      %c0_18 = arith.constant 0 : index
      %24 = vector.load %arg9[%c0_17, %c0_18] : memref<16x64xf32, #tpu.memory_space<vmem>>, vector<16x64xf32>
      %25 = arith.truncf %24 : vector<16x64xf32> to vector<16x64xbf16>
      %c0_19 = arith.constant 0 : index
      %c0_20 = arith.constant 0 : index
      %26 = vector.load %arg8[%c0_19, %c0_20] : memref<16x64xbf16, #tpu.memory_space<vmem>>, vector<16x64xbf16>
      tpu.vector_store %arg8[%c0_19, %c0_20], %25 {strides = array<i32>} : memref<16x64xbf16, #tpu.memory_space<vmem>>, vector<16x64xbf16>,
    } else {
    }
    return
  }
  func.func @transform_0(%arg0: i32, %arg1: i32, %arg2: i32) -> (i32, i32) {
    %c0_i32 = arith.constant 0 : i32
    return %arg0, %arg2 : i32, i32
  }
  func.func @transform_1(%arg0: i32, %arg1: i32, %arg2: i32) -> (i32, i32) {
    %c0_i32 = arith.constant 0 : i32
    return %arg0, %arg2 : i32, i32
  }
  func.func @transform_2(%arg0: i32, %arg1: i32, %arg2: i32) -> (i32, i32) {
    %c0_i32 = arith.constant 0 : i32
    %c0_i32_0 = arith.constant 0 : i32
    return %c0_i32, %arg2 : i32, i32
  }
  func.func @transform_3(%arg0: i32, %arg1: i32, %arg2: i32) -> (i32, i32, i32) {
    %c3_i32 = arith.constant 3 : i32
    %c0_i32 = arith.constant 0 : i32
    return %c3_i32, %arg0, %arg2 : i32, i32, i32
  }
  func.func @transform_4(%arg0: i32, %arg1: i32, %arg2: i32) -> (i32, i32) {
    %c0_i32 = arith.constant 0 : i32
    return %arg2, %arg1 : i32, i32
  }
  func.func @transform_5(%arg0: i32, %arg1: i32, %arg2: i32) -> (i32, i32) {
    %c0_i32 = arith.constant 0 : i32
    return %arg0, %arg1 : i32, i32
  }
}

module attributes {stable_mosaic.version = 11 : i64} {
  func.func @_wkv6_kernel(%arg0: i32, %arg1: i32, %arg2: i32, %arg3: memref<1x8x64xbf16, #tpu.memory_space<vmem>>, %arg4: memref<1x8x64xbf16, #tpu.memory_space<vmem>>, %arg5: memref<1x8x64xbf16, #tpu.memory_space<vmem>>, %arg6: memref<1x8x64xbf16, #tpu.memory_space<vmem>>, %arg7: memref<1x64xf32, #tpu.memory_space<vmem>>, %arg8: memref<1x8x64xbf16, #tpu.memory_space<vmem>>, %arg9: memref<1x64x64xf32, #tpu.memory_space<vmem>>) attributes {dimension_semantics = [#tpu.dimension_semantics<parallel>, #tpu.dimension_semantics<parallel>, #tpu.dimension_semantics<arbitrary>], iteration_bounds = array<i64: 2, 1, 1>, scalar_prefetch = 0 : i64, scratch_operands = 1 : i64, tpu.core_type = #tpu.core_type<tc>, window_params = [{transform_indices = @transform_0, window_bounds = array<i64: 1, 8, 64>}, {transform_indices = @transform_1, window_bounds = array<i64: 1, 8, 64>}, {transform_indices = @transform_2, window_bounds = array<i64: 1, 8, 64>}, {transform_indices = @transform_3, window_bounds = array<i64: 1, 8, 64>}, {transform_indices = @transform_4, window_bounds = array<i64: 1, 64>}, {transform_indices = @transform_5, window_bounds = array<i64: 1, 8, 64>}]} {
    %c0_i32 = arith.constant 0 : i32
    %0 = arith.cmpi eq, %arg2, %c0_i32 : i32
    %1 = arith.extui %0 : i1 to i32
    %c0_i32_0 = arith.constant 0 : i32
    %2 = arith.cmpi ne, %1, %c0_i32_0 : i32
    scf.if %2 {
      %cst_32 = arith.constant 0.000000e+00 : f32
      %79 = vector.broadcast %cst_32 : f32 to vector<1x64x64xf32>
      %c0_33 = arith.constant 0 : index
      %c0_34 = arith.constant 0 : index
      %c0_35 = arith.constant 0 : index
      %80 = vector.load %arg9[%c0_33, %c0_34, %c0_35] : memref<1x64x64xf32, #tpu.memory_space<vmem>>, vector<1x64x64xf32>
      tpu.vector_store %arg9[%c0_33, %c0_34, %c0_35], %79 {strides = array<i32>} : memref<1x64x64xf32, #tpu.memory_space<vmem>>, vector<1x64x64xf32>,
    } else {
    }
    %3 = tpu.iota {dimensions = array<i32: 0>} : vector<8x8xi32>
    %4 = tpu.iota {dimensions = array<i32: 1>} : vector<8x8xi32>
    %5 = arith.cmpi slt, %4, %3 : vector<8x8xi32>
    %6 = arith.cmpi eq, %4, %3 : vector<8x8xi32>
    %7 = arith.cmpi sle, %4, %3 : vector<8x8xi32>
    %8 = arith.extui %7 : vector<8x8xi1> to vector<8x8xi32>
    %9 = arith.sitofp %8 : vector<8x8xi32> to vector<8x8xf32>
    %cst = arith.constant 1.000000e+00 : f32
    %10 = vector.broadcast %cst : f32 to vector<8x1xf32>
    %c0 = arith.constant 0 : index
    %c0_1 = arith.constant 0 : index
    %c0_2 = arith.constant 0 : index
    %11 = vector.load %arg3[%c0, %c0_1, %c0_2] : memref<1x8x64xbf16, #tpu.memory_space<vmem>>, vector<1x8x64xbf16>
    %12 = vector.shape_cast %11 : vector<1x8x64xbf16> to vector<8x64xbf16>
    %c0_3 = arith.constant 0 : index
    %c0_4 = arith.constant 0 : index
    %c0_5 = arith.constant 0 : index
    %13 = vector.load %arg4[%c0_3, %c0_4, %c0_5] : memref<1x8x64xbf16, #tpu.memory_space<vmem>>, vector<1x8x64xbf16>
    %14 = vector.shape_cast %13 : vector<1x8x64xbf16> to vector<8x64xbf16>
    %c0_6 = arith.constant 0 : index
    %c0_7 = arith.constant 0 : index
    %c0_8 = arith.constant 0 : index
    %15 = vector.load %arg5[%c0_6, %c0_7, %c0_8] : memref<1x8x64xbf16, #tpu.memory_space<vmem>>, vector<1x8x64xbf16>
    %16 = vector.shape_cast %15 : vector<1x8x64xbf16> to vector<8x64xbf16>
    %c0_9 = arith.constant 0 : index
    %c0_10 = arith.constant 0 : index
    %c0_11 = arith.constant 0 : index
    %17 = vector.load %arg6[%c0_9, %c0_10, %c0_11] : memref<1x8x64xbf16, #tpu.memory_space<vmem>>, vector<1x8x64xbf16>
    %18 = vector.shape_cast %17 : vector<1x8x64xbf16> to vector<8x64xbf16>
    %19 = arith.extf %18 : vector<8x64xbf16> to vector<8x64xf32>
    %20 = math.exp %19 : vector<8x64xf32>
    %cst_12 = arith.constant 0.000000e+00 : f32
    %21 = vector.broadcast %cst_12 : f32 to vector<8x64xf32>
    %22 = arith.subf %21, %20 : vector<8x64xf32>
    %c0_13 = arith.constant 0 : index
    %c0_14 = arith.constant 0 : index
    %23 = vector.load %arg7[%c0_13, %c0_14] : memref<1x64xf32, #tpu.memory_space<vmem>>, vector<1x64xf32>
    %24 = arith.extf %12 : vector<8x64xbf16> to vector<8x64xf32>
    %25 = arith.extf %14 : vector<8x64xbf16> to vector<8x64xf32>
    %cst_15 = arith.constant dense<0.000000e+00> : vector<8x64xf32>
    %26 = tpu.matmul %9, %22, %cst_15 {dimension_numbers = #tpu.dot_dimension_numbers<[1], [0], [0], [1], [0, 0, 1, 1], [], []>, precision = #tpu.contract_precision<fp32>} : vector<8x8xf32>, vector<8x64xf32>, vector<8x64xf32> -> vector<8x64xf32>
    %27 = arith.subf %26, %22 : vector<8x64xf32>
    %28 = vector.extract_strided_slice %26 {offsets = [7, 0], sizes = [1, 64], strides = [1, 1]} : vector<8x64xf32> to vector<1x64xf32>
    %29 = vector.extract_strided_slice %26 {offsets = [3, 0], sizes = [1, 64], strides = [1, 1]} : vector<8x64xf32> to vector<1x64xf32>
    %cst_16 = arith.constant dense<0.000000e+00> : vector<64x1xf32>
    %30 = tpu.matmul %22, %10, %cst_16 {dimension_numbers = #tpu.dot_dimension_numbers<[0], [0], [1], [1], [0, 1, 1, 1], [], []>, precision = #tpu.contract_precision<fp32>} : vector<8x64xf32>, vector<8x1xf32>, vector<64x1xf32> -> vector<64x1xf32>
    %31 = vector.broadcast %29 : vector<1x64xf32> to vector<8x64xf32>
    %32 = arith.subf %27, %31 : vector<8x64xf32>
    %33 = math.exp %32 : vector<8x64xf32>
    %34 = arith.mulf %24, %33 : vector<8x64xf32>
    %35 = arith.truncf %34 : vector<8x64xf32> to vector<8x64xbf16>
    %36 = vector.broadcast %29 : vector<1x64xf32> to vector<8x64xf32>
    %37 = arith.subf %36, %26 : vector<8x64xf32>
    %38 = math.exp %37 : vector<8x64xf32>
    %39 = arith.mulf %25, %38 : vector<8x64xf32>
    %40 = arith.truncf %39 : vector<8x64xf32> to vector<8x64xbf16>
    %41 = math.exp %27 : vector<8x64xf32>
    %42 = arith.mulf %24, %41 : vector<8x64xf32>
    %43 = arith.truncf %42 : vector<8x64xf32> to vector<8x64xbf16>
    %44 = vector.broadcast %28 : vector<1x64xf32> to vector<8x64xf32>
    %45 = arith.subf %44, %26 : vector<8x64xf32>
    %46 = math.exp %45 : vector<8x64xf32>
    %47 = arith.mulf %25, %46 : vector<8x64xf32>
    %48 = arith.truncf %47 : vector<8x64xf32> to vector<8x64xbf16>
    %c0_17 = arith.constant 0 : index
    %c0_18 = arith.constant 0 : index
    %c0_19 = arith.constant 0 : index
    %49 = vector.load %arg9[%c0_17, %c0_18, %c0_19] : memref<1x64x64xf32, #tpu.memory_space<vmem>>, vector<1x64x64xf32>
    %50 = vector.shape_cast %49 : vector<1x64x64xf32> to vector<64x64xf32>
    %cst_20 = arith.constant dense<0.000000e+00> : vector<8x8xf32>
    %51 = tpu.matmul %35, %40, %cst_20 {dimension_numbers = #tpu.dot_dimension_numbers<[1], [1], [0], [0], [0, 0, 1, 0], [], []>} : vector<8x64xbf16>, vector<8x64xbf16>, vector<8x8xf32> -> vector<8x8xf32>
    %52 = vector.broadcast %23 : vector<1x64xf32> to vector<8x64xf32>
    %53 = arith.mulf %24, %52 : vector<8x64xf32>
    %54 = arith.mulf %53, %25 : vector<8x64xf32>
    %cst_21 = arith.constant dense<0.000000e+00> : vector<8xf32>
    %55 = vector.multi_reduction <add>, %54, %cst_21 [1] : vector<8x64xf32> to vector<8xf32>
    %56 = vector.shape_cast %55 : vector<8xf32> to vector<8x1xf32>
    %cst_22 = arith.constant 0.000000e+00 : f32
    %57 = vector.broadcast %cst_22 : f32 to vector<8x8xf32>
    %58 = arith.select %5, %51, %57 : vector<8x8xi1>, vector<8x8xf32>
    %59 = vector.shape_cast %56 : vector<8x1xf32> to vector<8x1xf32>
    %60 = vector.broadcast %59 : vector<8x1xf32> to vector<8x8xf32>
    %61 = arith.select %6, %60, %58 : vector<8x8xi1>, vector<8x8xf32>
    %62 = arith.truncf %61 : vector<8x8xf32> to vector<8x8xbf16>
    %cst_23 = arith.constant dense<0.000000e+00> : vector<8x64xf32>
    %63 = tpu.matmul %62, %16, %cst_23 {dimension_numbers = #tpu.dot_dimension_numbers<[1], [0], [0], [1], [0, 0, 1, 1], [], []>} : vector<8x8xbf16>, vector<8x64xbf16>, vector<8x64xf32> -> vector<8x64xf32>
    %64 = arith.truncf %50 : vector<64x64xf32> to vector<64x64xbf16>
    %cst_24 = arith.constant dense<0.000000e+00> : vector<8x64xf32>
    %65 = tpu.matmul %43, %64, %cst_24 {dimension_numbers = #tpu.dot_dimension_numbers<[1], [0], [0], [1], [0, 0, 1, 1], [], []>} : vector<8x64xbf16>, vector<64x64xbf16>, vector<8x64xf32> -> vector<8x64xf32>
    %66 = arith.addf %63, %65 : vector<8x64xf32>
    %67 = math.exp %30 : vector<64x1xf32>
    %68 = vector.broadcast %67 : vector<64x1xf32> to vector<64x64xf32>
    %69 = arith.mulf %68, %50 : vector<64x64xf32>
    %cst_25 = arith.constant dense<0.000000e+00> : vector<64x64xf32>
    %70 = tpu.matmul %48, %16, %cst_25 {dimension_numbers = #tpu.dot_dimension_numbers<[0], [0], [1], [1], [0, 1, 1, 1], [], []>} : vector<8x64xbf16>, vector<8x64xbf16>, vector<64x64xf32> -> vector<64x64xf32>
    %71 = arith.addf %69, %70 : vector<64x64xf32>
    %c0_26 = arith.constant 0 : index
    %c0_27 = arith.constant 0 : index
    %c0_28 = arith.constant 0 : index
    %72 = vector.load %arg9[%c0_26, %c0_27, %c0_28] : memref<1x64x64xf32, #tpu.memory_space<vmem>>, vector<1x64x64xf32>
    %73 = vector.shape_cast %72 : vector<1x64x64xf32> to vector<64x64xf32>
    %74 = vector.shape_cast %71 : vector<64x64xf32> to vector<1x64x64xf32>
    tpu.vector_store %arg9[%c0_26, %c0_27, %c0_28], %74 {strides = array<i32>} : memref<1x64x64xf32, #tpu.memory_space<vmem>>, vector<1x64x64xf32>,
    %75 = arith.truncf %66 : vector<8x64xf32> to vector<8x64xbf16>
    %c0_29 = arith.constant 0 : index
    %c0_30 = arith.constant 0 : index
    %c0_31 = arith.constant 0 : index
    %76 = vector.load %arg8[%c0_29, %c0_30, %c0_31] : memref<1x8x64xbf16, #tpu.memory_space<vmem>>, vector<1x8x64xbf16>
    %77 = vector.shape_cast %76 : vector<1x8x64xbf16> to vector<8x64xbf16>
    %78 = vector.shape_cast %75 : vector<8x64xbf16> to vector<1x8x64xbf16>
    tpu.vector_store %arg8[%c0_29, %c0_30, %c0_31], %78 {strides = array<i32>} : memref<1x8x64xbf16, #tpu.memory_space<vmem>>, vector<1x8x64xbf16>,
    return
  }
  func.func @transform_0(%arg0: i32, %arg1: i32, %arg2: i32) -> (i32, i32, i32) {
    %c0_i32 = arith.constant 0 : i32
    return %arg0, %arg2, %arg1 : i32, i32, i32
  }
  func.func @transform_1(%arg0: i32, %arg1: i32, %arg2: i32) -> (i32, i32, i32) {
    %c0_i32 = arith.constant 0 : i32
    return %arg0, %arg2, %arg1 : i32, i32, i32
  }
  func.func @transform_2(%arg0: i32, %arg1: i32, %arg2: i32) -> (i32, i32, i32) {
    %c0_i32 = arith.constant 0 : i32
    return %arg0, %arg2, %arg1 : i32, i32, i32
  }
  func.func @transform_3(%arg0: i32, %arg1: i32, %arg2: i32) -> (i32, i32, i32) {
    %c0_i32 = arith.constant 0 : i32
    return %arg0, %arg2, %arg1 : i32, i32, i32
  }
  func.func @transform_4(%arg0: i32, %arg1: i32, %arg2: i32) -> (i32, i32) {
    %c0_i32 = arith.constant 0 : i32
    %c0_i32_0 = arith.constant 0 : i32
    return %c0_i32, %arg1 : i32, i32
  }
  func.func @transform_5(%arg0: i32, %arg1: i32, %arg2: i32) -> (i32, i32, i32) {
    %c0_i32 = arith.constant 0 : i32
    return %arg0, %arg2, %arg1 : i32, i32, i32
  }
}

module attributes {stable_mosaic.version = 11 : i64} {
  func.func @_mix_mm_kernel(%arg0: i32, %arg1: i32, %arg2: i32, %arg3: memref<16x64xbf16, #tpu.memory_space<vmem>>, %arg4: memref<16x64xbf16, #tpu.memory_space<vmem>>, %arg5: memref<1x64xf32, #tpu.memory_space<vmem>>, %arg6: memref<1x16x64xbf16, #tpu.memory_space<vmem>>, %arg7: memref<64x64xbf16, #tpu.memory_space<vmem>>, %arg8: memref<16x64xbf16, #tpu.memory_space<vmem>>, %arg9: memref<16x64xf32, #tpu.memory_space<vmem>>) attributes {dimension_semantics = [#tpu.dimension_semantics<parallel>, #tpu.dimension_semantics<parallel>, #tpu.dimension_semantics<arbitrary>], iteration_bounds = array<i64: 1, 1, 1>, scalar_prefetch = 0 : i64, scratch_operands = 1 : i64, tpu.core_type = #tpu.core_type<tc>, window_params = [{transform_indices = @transform_0, window_bounds = array<i64: 16, 64>}, {transform_indices = @transform_1, window_bounds = array<i64: 16, 64>}, {transform_indices = @transform_2, window_bounds = array<i64: 1, 64>}, {transform_indices = @transform_3, window_bounds = array<i64: 1, 16, 64>}, {transform_indices = @transform_4, window_bounds = array<i64: 64, 64>}, {transform_indices = @transform_5, window_bounds = array<i64: 16, 64>}]} {
    %c0_i32 = arith.constant 0 : i32
    %0 = arith.cmpi eq, %arg2, %c0_i32 : i32
    %1 = arith.extui %0 : i1 to i32
    %c0_i32_0 = arith.constant 0 : i32
    %2 = arith.cmpi ne, %1, %c0_i32_0 : i32
    scf.if %2 {
      %cst_17 = arith.constant 0.000000e+00 : f32
      %24 = vector.broadcast %cst_17 : f32 to vector<16x64xf32>
      %c0_18 = arith.constant 0 : index
      %c0_19 = arith.constant 0 : index
      %25 = vector.load %arg9[%c0_18, %c0_19] : memref<16x64xf32, #tpu.memory_space<vmem>>, vector<16x64xf32>
      tpu.vector_store %arg9[%c0_18, %c0_19], %24 {strides = array<i32>} : memref<16x64xf32, #tpu.memory_space<vmem>>, vector<16x64xf32>,
    } else {
    }
    %c0 = arith.constant 0 : index
    %c0_1 = arith.constant 0 : index
    %3 = vector.load %arg5[%c0, %c0_1] : memref<1x64xf32, #tpu.memory_space<vmem>>, vector<1x64xf32>
    %c0_2 = arith.constant 0 : index
    %c0_3 = arith.constant 0 : index
    %c0_4 = arith.constant 0 : index
    %4 = vector.load %arg6[%c0_2, %c0_3, %c0_4] : memref<1x16x64xbf16, #tpu.memory_space<vmem>>, vector<1x16x64xbf16>
    %5 = vector.shape_cast %4 : vector<1x16x64xbf16> to vector<16x64xbf16>
    %6 = arith.extf %5 : vector<16x64xbf16> to vector<16x64xf32>
    %7 = vector.broadcast %3 : vector<1x64xf32> to vector<16x64xf32>
    %8 = arith.addf %7, %6 : vector<16x64xf32>
    %c0_5 = arith.constant 0 : index
    %c0_6 = arith.constant 0 : index
    %9 = vector.load %arg3[%c0_5, %c0_6] : memref<16x64xbf16, #tpu.memory_space<vmem>>, vector<16x64xbf16>
    %10 = arith.extf %9 : vector<16x64xbf16> to vector<16x64xf32>
    %c0_7 = arith.constant 0 : index
    %c0_8 = arith.constant 0 : index
    %11 = vector.load %arg4[%c0_7, %c0_8] : memref<16x64xbf16, #tpu.memory_space<vmem>>, vector<16x64xbf16>
    %12 = arith.extf %11 : vector<16x64xbf16> to vector<16x64xf32>
    %13 = arith.mulf %12, %8 : vector<16x64xf32>
    %14 = arith.addf %10, %13 : vector<16x64xf32>
    %c0_9 = arith.constant 0 : index
    %c0_10 = arith.constant 0 : index
    %15 = vector.load %arg9[%c0_9, %c0_10] : memref<16x64xf32, #tpu.memory_space<vmem>>, vector<16x64xf32>
    %16 = arith.truncf %14 : vector<16x64xf32> to vector<16x64xbf16>
    %c0_11 = arith.constant 0 : index
    %c0_12 = arith.constant 0 : index
    %17 = vector.load %arg7[%c0_11, %c0_12] : memref<64x64xbf16, #tpu.memory_space<vmem>>, vector<64x64xbf16>
    %cst = arith.constant dense<0.000000e+00> : vector<16x64xf32>
    %18 = tpu.matmul %16, %17, %cst {dimension_numbers = #tpu.dot_dimension_numbers<[1], [0], [0], [1], [0, 0, 1, 1], [], []>} : vector<16x64xbf16>, vector<64x64xbf16>, vector<16x64xf32> -> vector<16x64xf32>
    %19 = arith.addf %15, %18 : vector<16x64xf32>
    %c0_13 = arith.constant 0 : index
    %c0_14 = arith.constant 0 : index
    %20 = vector.load %arg9[%c0_13, %c0_14] : memref<16x64xf32, #tpu.memory_space<vmem>>, vector<16x64xf32>
    tpu.vector_store %arg9[%c0_13, %c0_14], %19 {strides = array<i32>} : memref<16x64xf32, #tpu.memory_space<vmem>>, vector<16x64xf32>,
    %c0_i32_15 = arith.constant 0 : i32
    %21 = arith.cmpi eq, %arg2, %c0_i32_15 : i32
    %22 = arith.extui %21 : i1 to i32
    %c0_i32_16 = arith.constant 0 : i32
    %23 = arith.cmpi ne, %22, %c0_i32_16 : i32
    scf.if %23 {
      %c0_17 = arith.constant 0 : index
      %c0_18 = arith.constant 0 : index
      %24 = vector.load %arg9[%c0_17, %c0_18] : memref<16x64xf32, #tpu.memory_space<vmem>>, vector<16x64xf32>
      %25 = arith.negf %24 : vector<16x64xf32>
      %26 = math.exp %25 : vector<16x64xf32>
      %cst_19 = arith.constant 1.000000e+00 : f32
      %27 = vector.broadcast %cst_19 : f32 to vector<16x64xf32>
      %28 = arith.addf %27, %26 : vector<16x64xf32>
      %29 = arith.divf %27, %28 : vector<16x64xf32>
      %30 = arith.mulf %24, %29 : vector<16x64xf32>
      %31 = arith.truncf %30 : vector<16x64xf32> to vector<16x64xbf16>
      %c0_20 = arith.constant 0 : index
      %c0_21 = arith.constant 0 : index
      %32 = vector.load %arg8[%c0_20, %c0_21] : memref<16x64xbf16, #tpu.memory_space<vmem>>, vector<16x64xbf16>
      tpu.vector_store %arg8[%c0_20, %c0_21], %31 {strides = array<i32>} : memref<16x64xbf16, #tpu.memory_space<vmem>>, vector<16x64xbf16>,
    } else {
    }
    return
  }
  func.func @transform_0(%arg0: i32, %arg1: i32, %arg2: i32) -> (i32, i32) {
    %c0_i32 = arith.constant 0 : i32
    return %arg0, %arg2 : i32, i32
  }
  func.func @transform_1(%arg0: i32, %arg1: i32, %arg2: i32) -> (i32, i32) {
    %c0_i32 = arith.constant 0 : i32
    return %arg0, %arg2 : i32, i32
  }
  func.func @transform_2(%arg0: i32, %arg1: i32, %arg2: i32) -> (i32, i32) {
    %c0_i32 = arith.constant 0 : i32
    %c0_i32_0 = arith.constant 0 : i32
    return %c0_i32, %arg2 : i32, i32
  }
  func.func @transform_3(%arg0: i32, %arg1: i32, %arg2: i32) -> (i32, i32, i32) {
    %c4_i32 = arith.constant 4 : i32
    %c0_i32 = arith.constant 0 : i32
    return %c4_i32, %arg0, %arg2 : i32, i32, i32
  }
  func.func @transform_4(%arg0: i32, %arg1: i32, %arg2: i32) -> (i32, i32) {
    %c0_i32 = arith.constant 0 : i32
    return %arg2, %arg1 : i32, i32
  }
  func.func @transform_5(%arg0: i32, %arg1: i32, %arg2: i32) -> (i32, i32) {
    %c0_i32 = arith.constant 0 : i32
    return %arg0, %arg1 : i32, i32
  }
}

module attributes {stable_mosaic.version = 11 : i64} {
  func.func @_gn_gate_mm_kernel(%arg0: i32, %arg1: i32, %arg2: memref<16x64xbf16, #tpu.memory_space<vmem>>, %arg3: memref<16x64xbf16, #tpu.memory_space<vmem>>, %arg4: memref<1x64xf32, #tpu.memory_space<vmem>>, %arg5: memref<1x64xf32, #tpu.memory_space<vmem>>, %arg6: memref<64x64xbf16, #tpu.memory_space<vmem>>, %arg7: memref<16x64xf32, #tpu.memory_space<vmem>>, %arg8: memref<16x64xbf16, #tpu.memory_space<vmem>>) attributes {dimension_semantics = [#tpu.dimension_semantics<parallel>, #tpu.dimension_semantics<arbitrary>], iteration_bounds = array<i64: 1, 1>, scalar_prefetch = 0 : i64, scratch_operands = 1 : i64, tpu.core_type = #tpu.core_type<tc>, window_params = [{transform_indices = @transform_0, window_bounds = array<i64: 16, 64>}, {transform_indices = @transform_1, window_bounds = array<i64: 16, 64>}, {pipeline_mode = #tpu.pipeline_mode<synchronous>, transform_indices = @transform_2, window_bounds = array<i64: 1, 64>}, {pipeline_mode = #tpu.pipeline_mode<synchronous>, transform_indices = @transform_3, window_bounds = array<i64: 1, 64>}, {transform_indices = @transform_4, window_bounds = array<i64: 64, 64>}, {transform_indices = @transform_5, window_bounds = array<i64: 16, 64>}]} {
    %c0_i32 = arith.constant 0 : i32
    %0 = arith.cmpi eq, %arg1, %c0_i32 : i32
    %1 = arith.extui %0 : i1 to i32
    %c0_i32_0 = arith.constant 0 : i32
    %2 = arith.cmpi ne, %1, %c0_i32_0 : i32
    scf.if %2 {
      %c0_6 = arith.constant 0 : index
      %c0_7 = arith.constant 0 : index
      %7 = vector.load %arg2[%c0_6, %c0_7] : memref<16x64xbf16, #tpu.memory_space<vmem>>, vector<16x64xbf16>
      %8 = arith.extf %7 : vector<16x64xbf16> to vector<16x64xf32>
      %9 = vector.shape_cast %8 : vector<16x64xf32> to vector<16x1x64xf32>
      %cst_8 = arith.constant dense<0.000000e+00> : vector<16x1xf32>
      %10 = vector.multi_reduction <add>, %9, %cst_8 [2] : vector<16x1x64xf32> to vector<16x1xf32>
      %11 = vector.shape_cast %10 : vector<16x1xf32> to vector<16x1x1xf32>
      %cst_9 = arith.constant 6.400000e+01 : f32
      %12 = vector.broadcast %cst_9 : f32 to vector<16x1x1xf32>
      %13 = arith.divf %11, %12 : vector<16x1x1xf32>
      %14 = vector.broadcast %13 : vector<16x1x1xf32> to vector<16x1x64xf32>
      %15 = arith.subf %9, %14 : vector<16x1x64xf32>
      %16 = arith.mulf %15, %15 : vector<16x1x64xf32>
      %cst_10 = arith.constant dense<0.000000e+00> : vector<16x1xf32>
      %17 = vector.multi_reduction <add>, %16, %cst_10 [2] : vector<16x1x64xf32> to vector<16x1xf32>
      %18 = vector.shape_cast %17 : vector<16x1xf32> to vector<16x1x1xf32>
      %cst_11 = arith.constant 6.400000e+01 : f32
      %19 = vector.broadcast %cst_11 : f32 to vector<16x1x1xf32>
      %20 = arith.divf %18, %19 : vector<16x1x1xf32>
      %21 = vector.broadcast %13 : vector<16x1x1xf32> to vector<16x1x64xf32>
      %22 = arith.subf %9, %21 : vector<16x1x64xf32>
      %cst_12 = arith.constant 6.400000e-04 : f32
      %23 = vector.broadcast %cst_12 : f32 to vector<16x1x1xf32>
      %24 = arith.addf %20, %23 : vector<16x1x1xf32>
      %25 = math.rsqrt %24 : vector<16x1x1xf32>
      %26 = vector.broadcast %25 : vector<16x1x1xf32> to vector<16x1x64xf32>
      %27 = arith.mulf %22, %26 : vector<16x1x64xf32>
      %28 = vector.shape_cast %27 : vector<16x1x64xf32> to vector<16x64xf32>
      %c0_13 = arith.constant 0 : index
      %c0_14 = arith.constant 0 : index
      %29 = vector.load %arg4[%c0_13, %c0_14] : memref<1x64xf32, #tpu.memory_space<vmem>>, vector<1x64xf32>
      %30 = vector.broadcast %29 : vector<1x64xf32> to vector<16x64xf32>
      %31 = arith.mulf %28, %30 : vector<16x64xf32>
      %c0_15 = arith.constant 0 : index
      %c0_16 = arith.constant 0 : index
      %32 = vector.load %arg5[%c0_15, %c0_16] : memref<1x64xf32, #tpu.memory_space<vmem>>, vector<1x64xf32>
      %33 = vector.broadcast %32 : vector<1x64xf32> to vector<16x64xf32>
      %34 = arith.addf %31, %33 : vector<16x64xf32>
      %c0_17 = arith.constant 0 : index
      %c0_18 = arith.constant 0 : index
      %35 = vector.load %arg3[%c0_17, %c0_18] : memref<16x64xbf16, #tpu.memory_space<vmem>>, vector<16x64xbf16>
      %36 = arith.extf %35 : vector<16x64xbf16> to vector<16x64xf32>
      %37 = arith.mulf %34, %36 : vector<16x64xf32>
      %38 = arith.truncf %37 : vector<16x64xf32> to vector<16x64xbf16>
      %c0_19 = arith.constant 0 : index
      %c0_20 = arith.constant 0 : index
      %39 = vector.load %arg8[%c0_19, %c0_20] : memref<16x64xbf16, #tpu.memory_space<vmem>>, vector<16x64xbf16>
      tpu.vector_store %arg8[%c0_19, %c0_20], %38 {strides = array<i32>} : memref<16x64xbf16, #tpu.memory_space<vmem>>, vector<16x64xbf16>,
    } else {
    }
    %c0 = arith.constant 0 : index
    %c0_1 = arith.constant 0 : index
    %3 = vector.load %arg8[%c0, %c0_1] : memref<16x64xbf16, #tpu.memory_space<vmem>>, vector<16x64xbf16>
    %c0_2 = arith.constant 0 : index
    %c0_3 = arith.constant 0 : index
    %4 = vector.load %arg6[%c0_2, %c0_3] : memref<64x64xbf16, #tpu.memory_space<vmem>>, vector<64x64xbf16>
    %cst = arith.constant dense<0.000000e+00> : vector<16x64xf32>
    %5 = tpu.matmul %3, %4, %cst {dimension_numbers = #tpu.dot_dimension_numbers<[1], [0], [0], [1], [0, 0, 1, 1], [], []>} : vector<16x64xbf16>, vector<64x64xbf16>, vector<16x64xf32> -> vector<16x64xf32>
    %c0_4 = arith.constant 0 : index
    %c0_5 = arith.constant 0 : index
    %6 = vector.load %arg7[%c0_4, %c0_5] : memref<16x64xf32, #tpu.memory_space<vmem>>, vector<16x64xf32>
    tpu.vector_store %arg7[%c0_4, %c0_5], %5 {strides = array<i32>} : memref<16x64xf32, #tpu.memory_space<vmem>>, vector<16x64xf32>,
    return
  }
  func.func @transform_0(%arg0: i32, %arg1: i32) -> (i32, i32) {
    %c0_i32 = arith.constant 0 : i32
    %c0_i32_0 = arith.constant 0 : i32
    return %arg0, %c0_i32 : i32, i32
  }
  func.func @transform_1(%arg0: i32, %arg1: i32) -> (i32, i32) {
    %c0_i32 = arith.constant 0 : i32
    %c0_i32_0 = arith.constant 0 : i32
    return %arg0, %c0_i32 : i32, i32
  }
  func.func @transform_2(%arg0: i32, %arg1: i32) -> (i32, i32) {
    %c0_i32 = arith.constant 0 : i32
    %c0_i32_0 = arith.constant 0 : i32
    %c0_i32_1 = arith.constant 0 : i32
    return %c0_i32, %c0_i32_0 : i32, i32
  }
  func.func @transform_3(%arg0: i32, %arg1: i32) -> (i32, i32) {
    %c0_i32 = arith.constant 0 : i32
    %c0_i32_0 = arith.constant 0 : i32
    %c0_i32_1 = arith.constant 0 : i32
    return %c0_i32, %c0_i32_0 : i32, i32
  }
  func.func @transform_4(%arg0: i32, %arg1: i32) -> (i32, i32) {
    %c0_i32 = arith.constant 0 : i32
    %c0_i32_0 = arith.constant 0 : i32
    return %c0_i32, %arg1 : i32, i32
  }
  func.func @transform_5(%arg0: i32, %arg1: i32) -> (i32, i32) {
    %c0_i32 = arith.constant 0 : i32
    return %arg0, %arg1 : i32, i32
  }
}

module attributes {stable_mosaic.version = 11 : i64} {
  func.func @_mix_mm_kernel(%arg0: i32, %arg1: i32, %arg2: i32, %arg3: memref<16x64xbf16, #tpu.memory_space<vmem>>, %arg4: memref<16x64xbf16, #tpu.memory_space<vmem>>, %arg5: memref<1x64xf32, #tpu.memory_space<vmem>>, %arg6: memref<64x64xbf16, #tpu.memory_space<vmem>>, %arg7: memref<16x64xbf16, #tpu.memory_space<vmem>>, %arg8: memref<16x64xf32, #tpu.memory_space<vmem>>) attributes {dimension_semantics = [#tpu.dimension_semantics<parallel>, #tpu.dimension_semantics<parallel>, #tpu.dimension_semantics<arbitrary>], iteration_bounds = array<i64: 1, 1, 1>, scalar_prefetch = 0 : i64, scratch_operands = 1 : i64, tpu.core_type = #tpu.core_type<tc>, window_params = [{transform_indices = @transform_0, window_bounds = array<i64: 16, 64>}, {transform_indices = @transform_1, window_bounds = array<i64: 16, 64>}, {transform_indices = @transform_2, window_bounds = array<i64: 1, 64>}, {transform_indices = @transform_3, window_bounds = array<i64: 64, 64>}, {transform_indices = @transform_4, window_bounds = array<i64: 16, 64>}]} {
    %c0_i32 = arith.constant 0 : i32
    %0 = arith.cmpi eq, %arg2, %c0_i32 : i32
    %1 = arith.extui %0 : i1 to i32
    %c0_i32_0 = arith.constant 0 : i32
    %2 = arith.cmpi ne, %1, %c0_i32_0 : i32
    scf.if %2 {
      %cst_14 = arith.constant 0.000000e+00 : f32
      %20 = vector.broadcast %cst_14 : f32 to vector<16x64xf32>
      %c0_15 = arith.constant 0 : index
      %c0_16 = arith.constant 0 : index
      %21 = vector.load %arg8[%c0_15, %c0_16] : memref<16x64xf32, #tpu.memory_space<vmem>>, vector<16x64xf32>
      tpu.vector_store %arg8[%c0_15, %c0_16], %20 {strides = array<i32>} : memref<16x64xf32, #tpu.memory_space<vmem>>, vector<16x64xf32>,
    } else {
    }
    %c0 = arith.constant 0 : index
    %c0_1 = arith.constant 0 : index
    %3 = vector.load %arg5[%c0, %c0_1] : memref<1x64xf32, #tpu.memory_space<vmem>>, vector<1x64xf32>
    %c0_2 = arith.constant 0 : index
    %c0_3 = arith.constant 0 : index
    %4 = vector.load %arg3[%c0_2, %c0_3] : memref<16x64xbf16, #tpu.memory_space<vmem>>, vector<16x64xbf16>
    %5 = arith.extf %4 : vector<16x64xbf16> to vector<16x64xf32>
    %c0_4 = arith.constant 0 : index
    %c0_5 = arith.constant 0 : index
    %6 = vector.load %arg4[%c0_4, %c0_5] : memref<16x64xbf16, #tpu.memory_space<vmem>>, vector<16x64xbf16>
    %7 = arith.extf %6 : vector<16x64xbf16> to vector<16x64xf32>
    %8 = vector.broadcast %3 : vector<1x64xf32> to vector<16x64xf32>
    %9 = arith.mulf %7, %8 : vector<16x64xf32>
    %10 = arith.addf %5, %9 : vector<16x64xf32>
    %c0_6 = arith.constant 0 : index
    %c0_7 = arith.constant 0 : index
    %11 = vector.load %arg8[%c0_6, %c0_7] : memref<16x64xf32, #tpu.memory_space<vmem>>, vector<16x64xf32>
    %12 = arith.truncf %10 : vector<16x64xf32> to vector<16x64xbf16>
    %c0_8 = arith.constant 0 : index
    %c0_9 = arith.constant 0 : index
    %13 = vector.load %arg6[%c0_8, %c0_9] : memref<64x64xbf16, #tpu.memory_space<vmem>>, vector<64x64xbf16>
    %cst = arith.constant dense<0.000000e+00> : vector<16x64xf32>
    %14 = tpu.matmul %12, %13, %cst {dimension_numbers = #tpu.dot_dimension_numbers<[1], [0], [0], [1], [0, 0, 1, 1], [], []>} : vector<16x64xbf16>, vector<64x64xbf16>, vector<16x64xf32> -> vector<16x64xf32>
    %15 = arith.addf %11, %14 : vector<16x64xf32>
    %c0_10 = arith.constant 0 : index
    %c0_11 = arith.constant 0 : index
    %16 = vector.load %arg8[%c0_10, %c0_11] : memref<16x64xf32, #tpu.memory_space<vmem>>, vector<16x64xf32>
    tpu.vector_store %arg8[%c0_10, %c0_11], %15 {strides = array<i32>} : memref<16x64xf32, #tpu.memory_space<vmem>>, vector<16x64xf32>,
    %c0_i32_12 = arith.constant 0 : i32
    %17 = arith.cmpi eq, %arg2, %c0_i32_12 : i32
    %18 = arith.extui %17 : i1 to i32
    %c0_i32_13 = arith.constant 0 : i32
    %19 = arith.cmpi ne, %18, %c0_i32_13 : i32
    scf.if %19 {
      %c0_14 = arith.constant 0 : index
      %c0_15 = arith.constant 0 : index
      %20 = vector.load %arg8[%c0_14, %c0_15] : memref<16x64xf32, #tpu.memory_space<vmem>>, vector<16x64xf32>
      %21 = arith.negf %20 : vector<16x64xf32>
      %22 = math.exp %21 : vector<16x64xf32>
      %cst_16 = arith.constant 1.000000e+00 : f32
      %23 = vector.broadcast %cst_16 : f32 to vector<16x64xf32>
      %24 = arith.addf %23, %22 : vector<16x64xf32>
      %25 = arith.divf %23, %24 : vector<16x64xf32>
      %26 = arith.truncf %25 : vector<16x64xf32> to vector<16x64xbf16>
      %c0_17 = arith.constant 0 : index
      %c0_18 = arith.constant 0 : index
      %27 = vector.load %arg7[%c0_17, %c0_18] : memref<16x64xbf16, #tpu.memory_space<vmem>>, vector<16x64xbf16>
      tpu.vector_store %arg7[%c0_17, %c0_18], %26 {strides = array<i32>} : memref<16x64xbf16, #tpu.memory_space<vmem>>, vector<16x64xbf16>,
    } else {
    }
    return
  }
  func.func @transform_0(%arg0: i32, %arg1: i32, %arg2: i32) -> (i32, i32) {
    %c0_i32 = arith.constant 0 : i32
    return %arg0, %arg2 : i32, i32
  }
  func.func @transform_1(%arg0: i32, %arg1: i32, %arg2: i32) -> (i32, i32) {
    %c0_i32 = arith.constant 0 : i32
    return %arg0, %arg2 : i32, i32
  }
  func.func @transform_2(%arg0: i32, %arg1: i32, %arg2: i32) -> (i32, i32) {
    %c0_i32 = arith.constant 0 : i32
    %c0_i32_0 = arith.constant 0 : i32
    return %c0_i32, %arg2 : i32, i32
  }
  func.func @transform_3(%arg0: i32, %arg1: i32, %arg2: i32) -> (i32, i32) {
    %c0_i32 = arith.constant 0 : i32
    return %arg2, %arg1 : i32, i32
  }
  func.func @transform_4(%arg0: i32, %arg1: i32, %arg2: i32) -> (i32, i32) {
    %c0_i32 = arith.constant 0 : i32
    return %arg0, %arg1 : i32, i32
  }
}

module attributes {stable_mosaic.version = 11 : i64} {
  func.func @_mix_mm_kernel(%arg0: i32, %arg1: i32, %arg2: i32, %arg3: memref<16x64xbf16, #tpu.memory_space<vmem>>, %arg4: memref<16x64xbf16, #tpu.memory_space<vmem>>, %arg5: memref<1x64xf32, #tpu.memory_space<vmem>>, %arg6: memref<64x128xbf16, #tpu.memory_space<vmem>>, %arg7: memref<16x128xbf16, #tpu.memory_space<vmem>>, %arg8: memref<16x128xf32, #tpu.memory_space<vmem>>) attributes {dimension_semantics = [#tpu.dimension_semantics<parallel>, #tpu.dimension_semantics<parallel>, #tpu.dimension_semantics<arbitrary>], iteration_bounds = array<i64: 1, 1, 1>, scalar_prefetch = 0 : i64, scratch_operands = 1 : i64, tpu.core_type = #tpu.core_type<tc>, window_params = [{transform_indices = @transform_0, window_bounds = array<i64: 16, 64>}, {transform_indices = @transform_1, window_bounds = array<i64: 16, 64>}, {transform_indices = @transform_2, window_bounds = array<i64: 1, 64>}, {transform_indices = @transform_3, window_bounds = array<i64: 64, 128>}, {transform_indices = @transform_4, window_bounds = array<i64: 16, 128>}]} {
    %c0_i32 = arith.constant 0 : i32
    %0 = arith.cmpi eq, %arg2, %c0_i32 : i32
    %1 = arith.extui %0 : i1 to i32
    %c0_i32_0 = arith.constant 0 : i32
    %2 = arith.cmpi ne, %1, %c0_i32_0 : i32
    scf.if %2 {
      %cst_14 = arith.constant 0.000000e+00 : f32
      %20 = vector.broadcast %cst_14 : f32 to vector<16x128xf32>
      %c0_15 = arith.constant 0 : index
      %c0_16 = arith.constant 0 : index
      %21 = vector.load %arg8[%c0_15, %c0_16] : memref<16x128xf32, #tpu.memory_space<vmem>>, vector<16x128xf32>
      tpu.vector_store %arg8[%c0_15, %c0_16], %20 {strides = array<i32>} : memref<16x128xf32, #tpu.memory_space<vmem>>, vector<16x128xf32>,
    } else {
    }
    %c0 = arith.constant 0 : index
    %c0_1 = arith.constant 0 : index
    %3 = vector.load %arg5[%c0, %c0_1] : memref<1x64xf32, #tpu.memory_space<vmem>>, vector<1x64xf32>
    %c0_2 = arith.constant 0 : index
    %c0_3 = arith.constant 0 : index
    %4 = vector.load %arg3[%c0_2, %c0_3] : memref<16x64xbf16, #tpu.memory_space<vmem>>, vector<16x64xbf16>
    %5 = arith.extf %4 : vector<16x64xbf16> to vector<16x64xf32>
    %c0_4 = arith.constant 0 : index
    %c0_5 = arith.constant 0 : index
    %6 = vector.load %arg4[%c0_4, %c0_5] : memref<16x64xbf16, #tpu.memory_space<vmem>>, vector<16x64xbf16>
    %7 = arith.extf %6 : vector<16x64xbf16> to vector<16x64xf32>
    %8 = vector.broadcast %3 : vector<1x64xf32> to vector<16x64xf32>
    %9 = arith.mulf %7, %8 : vector<16x64xf32>
    %10 = arith.addf %5, %9 : vector<16x64xf32>
    %c0_6 = arith.constant 0 : index
    %c0_7 = arith.constant 0 : index
    %11 = vector.load %arg8[%c0_6, %c0_7] : memref<16x128xf32, #tpu.memory_space<vmem>>, vector<16x128xf32>
    %12 = arith.truncf %10 : vector<16x64xf32> to vector<16x64xbf16>
    %c0_8 = arith.constant 0 : index
    %c0_9 = arith.constant 0 : index
    %13 = vector.load %arg6[%c0_8, %c0_9] : memref<64x128xbf16, #tpu.memory_space<vmem>>, vector<64x128xbf16>
    %cst = arith.constant dense<0.000000e+00> : vector<16x128xf32>
    %14 = tpu.matmul %12, %13, %cst {dimension_numbers = #tpu.dot_dimension_numbers<[1], [0], [0], [1], [0, 0, 1, 1], [], []>} : vector<16x64xbf16>, vector<64x128xbf16>, vector<16x128xf32> -> vector<16x128xf32>
    %15 = arith.addf %11, %14 : vector<16x128xf32>
    %c0_10 = arith.constant 0 : index
    %c0_11 = arith.constant 0 : index
    %16 = vector.load %arg8[%c0_10, %c0_11] : memref<16x128xf32, #tpu.memory_space<vmem>>, vector<16x128xf32>
    tpu.vector_store %arg8[%c0_10, %c0_11], %15 {strides = array<i32>} : memref<16x128xf32, #tpu.memory_space<vmem>>, vector<16x128xf32>,
    %c0_i32_12 = arith.constant 0 : i32
    %17 = arith.cmpi eq, %arg2, %c0_i32_12 : i32
    %18 = arith.extui %17 : i1 to i32
    %c0_i32_13 = arith.constant 0 : i32
    %19 = arith.cmpi ne, %18, %c0_i32_13 : i32
    scf.if %19 {
      %c0_14 = arith.constant 0 : index
      %c0_15 = arith.constant 0 : index
      %20 = vector.load %arg8[%c0_14, %c0_15] : memref<16x128xf32, #tpu.memory_space<vmem>>, vector<16x128xf32>
      %cst_16 = arith.constant 0.000000e+00 : f32
      %21 = vector.broadcast %cst_16 : f32 to vector<16x128xf32>
      %22 = arith.maximumf %20, %21 : vector<16x128xf32>
      %23 = arith.mulf %22, %22 : vector<16x128xf32>
      %24 = arith.truncf %23 : vector<16x128xf32> to vector<16x128xbf16>
      %c0_17 = arith.constant 0 : index
      %c0_18 = arith.constant 0 : index
      %25 = vector.load %arg7[%c0_17, %c0_18] : memref<16x128xbf16, #tpu.memory_space<vmem>>, vector<16x128xbf16>
      tpu.vector_store %arg7[%c0_17, %c0_18], %24 {strides = array<i32>} : memref<16x128xbf16, #tpu.memory_space<vmem>>, vector<16x128xbf16>,
    } else {
    }
    return
  }
  func.func @transform_0(%arg0: i32, %arg1: i32, %arg2: i32) -> (i32, i32) {
    %c0_i32 = arith.constant 0 : i32
    return %arg0, %arg2 : i32, i32
  }
  func.func @transform_1(%arg0: i32, %arg1: i32, %arg2: i32) -> (i32, i32) {
    %c0_i32 = arith.constant 0 : i32
    return %arg0, %arg2 : i32, i32
  }
  func.func @transform_2(%arg0: i32, %arg1: i32, %arg2: i32) -> (i32, i32) {
    %c0_i32 = arith.constant 0 : i32
    %c0_i32_0 = arith.constant 0 : i32
    return %c0_i32, %arg2 : i32, i32
  }
  func.func @transform_3(%arg0: i32, %arg1: i32, %arg2: i32) -> (i32, i32) {
    %c0_i32 = arith.constant 0 : i32
    return %arg2, %arg1 : i32, i32
  }
  func.func @transform_4(%arg0: i32, %arg1: i32, %arg2: i32) -> (i32, i32) {
    %c0_i32 = arith.constant 0 : i32
    return %arg0, %arg1 : i32, i32
  }
}

module attributes {stable_mosaic.version = 11 : i64} {
  func.func @_gated_mm_kernel(%arg0: i32, %arg1: i32, %arg2: i32, %arg3: memref<16x128xbf16, #tpu.memory_space<vmem>>, %arg4: memref<16x64xbf16, #tpu.memory_space<vmem>>, %arg5: memref<128x64xbf16, #tpu.memory_space<vmem>>, %arg6: memref<16x64xf32, #tpu.memory_space<vmem>>, %arg7: memref<16x64xf32, #tpu.memory_space<vmem>>) attributes {dimension_semantics = [#tpu.dimension_semantics<parallel>, #tpu.dimension_semantics<parallel>, #tpu.dimension_semantics<arbitrary>], iteration_bounds = array<i64: 1, 1, 1>, scalar_prefetch = 0 : i64, scratch_operands = 1 : i64, tpu.core_type = #tpu.core_type<tc>, window_params = [{transform_indices = @transform_0, window_bounds = array<i64: 16, 128>}, {transform_indices = @transform_1, window_bounds = array<i64: 16, 64>}, {transform_indices = @transform_2, window_bounds = array<i64: 128, 64>}, {transform_indices = @transform_3, window_bounds = array<i64: 16, 64>}]} {
    %c0_i32 = arith.constant 0 : i32
    %0 = arith.cmpi eq, %arg2, %c0_i32 : i32
    %1 = arith.extui %0 : i1 to i32
    %c0_i32_0 = arith.constant 0 : i32
    %2 = arith.cmpi ne, %1, %c0_i32_0 : i32
    scf.if %2 {
      %cst_10 = arith.constant 0.000000e+00 : f32
      %12 = vector.broadcast %cst_10 : f32 to vector<16x64xf32>
      %c0_11 = arith.constant 0 : index
      %c0_12 = arith.constant 0 : index
      %13 = vector.load %arg7[%c0_11, %c0_12] : memref<16x64xf32, #tpu.memory_space<vmem>>, vector<16x64xf32>
      tpu.vector_store %arg7[%c0_11, %c0_12], %12 {strides = array<i32>} : memref<16x64xf32, #tpu.memory_space<vmem>>, vector<16x64xf32>,
    } else {
    }
    %c0 = arith.constant 0 : index
    %c0_1 = arith.constant 0 : index
    %3 = vector.load %arg7[%c0, %c0_1] : memref<16x64xf32, #tpu.memory_space<vmem>>, vector<16x64xf32>
    %c0_2 = arith.constant 0 : index
    %c0_3 = arith.constant 0 : index
    %4 = vector.load %arg3[%c0_2, %c0_3] : memref<16x128xbf16, #tpu.memory_space<vmem>>, vector<16x128xbf16>
    %c0_4 = arith.constant 0 : index
    %c0_5 = arith.constant 0 : index
    %5 = vector.load %arg5[%c0_4, %c0_5] : memref<128x64xbf16, #tpu.memory_space<vmem>>, vector<128x64xbf16>
    %cst = arith.constant dense<0.000000e+00> : vector<16x64xf32>
    %6 = tpu.matmul %4, %5, %cst {dimension_numbers = #tpu.dot_dimension_numbers<[1], [0], [0], [1], [0, 0, 1, 1], [], []>} : vector<16x128xbf16>, vector<128x64xbf16>, vector<16x64xf32> -> vector<16x64xf32>
    %7 = arith.addf %3, %6 : vector<16x64xf32>
    %c0_6 = arith.constant 0 : index
    %c0_7 = arith.constant 0 : index
    %8 = vector.load %arg7[%c0_6, %c0_7] : memref<16x64xf32, #tpu.memory_space<vmem>>, vector<16x64xf32>
    tpu.vector_store %arg7[%c0_6, %c0_7], %7 {strides = array<i32>} : memref<16x64xf32, #tpu.memory_space<vmem>>, vector<16x64xf32>,
    %c0_i32_8 = arith.constant 0 : i32
    %9 = arith.cmpi eq, %arg2, %c0_i32_8 : i32
    %10 = arith.extui %9 : i1 to i32
    %c0_i32_9 = arith.constant 0 : i32
    %11 = arith.cmpi ne, %10, %c0_i32_9 : i32
    scf.if %11 {
      %c0_10 = arith.constant 0 : index
      %c0_11 = arith.constant 0 : index
      %12 = vector.load %arg4[%c0_10, %c0_11] : memref<16x64xbf16, #tpu.memory_space<vmem>>, vector<16x64xbf16>
      %13 = arith.extf %12 : vector<16x64xbf16> to vector<16x64xf32>
      %c0_12 = arith.constant 0 : index
      %c0_13 = arith.constant 0 : index
      %14 = vector.load %arg7[%c0_12, %c0_13] : memref<16x64xf32, #tpu.memory_space<vmem>>, vector<16x64xf32>
      %15 = arith.mulf %13, %14 : vector<16x64xf32>
      %c0_14 = arith.constant 0 : index
      %c0_15 = arith.constant 0 : index
      %16 = vector.load %arg6[%c0_14, %c0_15] : memref<16x64xf32, #tpu.memory_space<vmem>>, vector<16x64xf32>
      tpu.vector_store %arg6[%c0_14, %c0_15], %15 {strides = array<i32>} : memref<16x64xf32, #tpu.memory_space<vmem>>, vector<16x64xf32>,
    } else {
    }
    return
  }
  func.func @transform_0(%arg0: i32, %arg1: i32, %arg2: i32) -> (i32, i32) {
    %c0_i32 = arith.constant 0 : i32
    return %arg0, %arg2 : i32, i32
  }
  func.func @transform_1(%arg0: i32, %arg1: i32, %arg2: i32) -> (i32, i32) {
    %c0_i32 = arith.constant 0 : i32
    return %arg0, %arg1 : i32, i32
  }
  func.func @transform_2(%arg0: i32, %arg1: i32, %arg2: i32) -> (i32, i32) {
    %c0_i32 = arith.constant 0 : i32
    return %arg2, %arg1 : i32, i32
  }
  func.func @transform_3(%arg0: i32, %arg1: i32, %arg2: i32) -> (i32, i32) {
    %c0_i32 = arith.constant 0 : i32
    return %arg0, %arg1 : i32, i32
  }
}

</mosaic_0001>

<llo_original>
// kernel: _lambda_.21
$region0: #{_lambda_.21}
  #allocation0 [shape = 'u32[]', space=smem, size = 0x4, offset = 0x4, fixed_abs, tag = 'smem constant byte address 0x4 - core index']
  #allocation1 [shape = 'u32[72,128]{1,0:T(1,128)}', space=vmem, size = 0x9000, scoped, tag = 'internal scratch']
  %s0 = inlined_call_operand.vmem [shape: bf16[16,64], index: 0, kind: input, shape index: {}]
  %s1 = inlined_call_operand.vmem [shape: bf16[16,64], index: 1, kind: input, shape index: {}]
  %s2 = inlined_call_operand.vmem [shape: f32[1,64], index: 2, kind: input, shape index: {}]
  %s3 = inlined_call_operand.vmem [shape: bf16[5,16,64], index: 3, kind: input, shape index: {}]
  %s4 = inlined_call_operand.vmem [shape: bf16[64,64], index: 4, kind: input, shape index: {}]
  %s5 = inlined_call_operand.vmem [shape: bf16[64,64], index: 5, kind: input, shape index: {}]
  %s6 = inlined_call_operand.vmem [shape: f32[1,64], index: 6, kind: input, shape index: {}]
  %s7 = inlined_call_operand.vmem [shape: bf16[16,64], index: 7, kind: output, shape index: {}]
  %s8 = sld [smem:[#allocation0]]
  $region38: #{_lambda_.21} parent=0
    _
  %s10 = ssub.s32 1, %s8
  %s11 = scalar_select 0, %s10, %s8
  // Predicated region
  $region2: #{_lambda_.21} parent=0 // pred_check
    _
  $region3: #{_lambda_.21} parent=0 // pred_check_branch
    %13 = sbr.rel (0) target = $region5
  $region4: #{_lambda_.21} parent=0 // pred_region
    _
  $region5: #{_lambda_.21} parent=0 // pred_fallthru
    _
  // Predicated region
  $region6: #{_lambda_.21} parent=0 // pred_check
    _
  $region7: #{_lambda_.21} parent=0 // pred_check_branch
    %15 = sbr.rel (0) target = $region9
  $region8: #{_lambda_.21} parent=0 // pred_region
    _
  $region9: #{_lambda_.21} parent=0 // pred_fallthru
    _
  // Predicated region
  $region10: #{_lambda_.21} parent=0 // pred_check
    _
  $region11: #{_lambda_.21} parent=0 // pred_check_branch
    %17 = sbr.rel (0) target = $region13
  $region12: #{_lambda_.21} parent=0 // pred_region
    _
  $region13: #{_lambda_.21} parent=0 // pred_fallthru
    _
  // Predicated region
  $region14: #{_lambda_.21} parent=0 // pred_check
    _
  $region15: #{_lambda_.21} parent=0 // pred_check_branch
    %19 = sbr.rel (0) target = $region17
  $region16: #{_lambda_.21} parent=0 // pred_region
    _
  $region17: #{_lambda_.21} parent=0 // pred_fallthru
    _
  // Predicated region
  $region18: #{_lambda_.21} parent=0 // pred_check
    _
  $region19: #{_lambda_.21} parent=0 // pred_check_branch
    %21 = sbr.rel (0) target = $region21
  $region20: #{_lambda_.21} parent=0 // pred_region
    _
  $region21: #{_lambda_.21} parent=0 // pred_fallthru
    _
  // Predicated region
  $region22: #{_lambda_.21} parent=0 // pred_check
    _
  $region23: #{_lambda_.21} parent=0 // pred_check_branch
    %23 = sbr.rel (0) target = $region25
  $region24: #{_lambda_.21} parent=0 // pred_region
    _
  $region25: #{_lambda_.21} parent=0 // pred_fallthru
    _
  // Predicated region
  $region26: #{_lambda_.21} parent=0 // pred_check
    _
  $region27: #{_lambda_.21} parent=0 // pred_check_branch
    %25 = sbr.rel (0) target = $region29
  $region28: #{_lambda_.21} parent=0 // pred_region
    _
  $region29: #{_lambda_.21} parent=0 // pred_fallthru
    _
  %v27 = vld [vmem:[%s0] sm:$0xf]
  %v28 = vld [vmem:[%s0 + $0x4] sm:$0xf]
  %v29 = vunpack.c.l.bf16 %v27
  %v30 = vunpack.c.l.bf16 %v28
  %v31 = vld [vmem:[%s1] sm:$0xf]
  %v32 = vld [vmem:[%s1 + $0x4] sm:$0xf]
  %v33 = vunpack.c.l.bf16 %v31
  %v34 = vunpack.c.l.bf16 %v32
  %v35 = vld [vmem:[%s2] sm:$0x1]
  %v36 = vld [vmem:[%s3] sm:$0xf]
  %v37 = vld [vmem:[%s3 + $0x4] sm:$0xf]
  %v38 = vunpack.c.l.bf16 %v36
  %v39 = vunpack.c.l.bf16 %v37
  %v41 = vperm.slane %v35, 0
  %v43 = vadd.f32 %v41, %v38
  %v44 = vadd.f32 %v41, %v39
  %v45 = vmul.f32 %v33, %v43
  %v46 = vmul.f32 %v34, %v44
  %v47 = vadd.f32 %v29, %v45
  %v48 = vadd.f32 %v30, %v46
  %v49 = vpack.c.bf16 %v48, %v47
  %v50 = vld [vmem:[%s4] sm:$0xf]
  %v51 = vld [vmem:[%s4 + $0x4] sm:$0xf]
  %v52 = vld [vmem:[%s4 + $0x8] sm:$0xf]
  %v53 = vld [vmem:[%s4 + $0xc] sm:$0xf]
  %v54 = vld [vmem:[%s4 + $0x10] sm:$0xf]
  %v55 = vld [vmem:[%s4 + $0x14] sm:$0xf]
  %v56 = vld [vmem:[%s4 + $0x18] sm:$0xf]
  %v57 = vld [vmem:[%s4 + $0x1c] sm:$0xf]
  %v66 = vunpack.c.l.b16 %v50
  %v67 = vunpack.c.l.b16 %v51
  %v68 = vunpack.c.l.b16 %v52
  %v69 = vunpack.c.l.b16 %v53
  %v70 = vunpack.c.l.b16 %v54
  %v71 = vunpack.c.l.b16 %v55
  %v72 = vunpack.c.l.b16 %v56
  %v73 = vunpack.c.l.b16 %v57
  %v74 = vpack.c.b16 %v67, %v66
  %v75 = vpack.c.b16 %v69, %v68
  %v76 = vpack.c.b16 %v71, %v70
  %v77 = vpack.c.b16 %v73, %v72
  %vm82 = vcmask 523264
  %v84 = vsel %vm82, %v49, 0
  %86 = vmatpush.bf16.msra.mxu0 0
  %87 = vmatpush.bf16.msra.mxu0 0
  %88 = vmatpush.bf16.msra.mxu0 0
  %89 = vmatpush.bf16.msra.mxu0 0
  %90 = vmatpush.bf16.msra.mxu0 %v77
  %91 = vmatpush.bf16.msra.mxu0 %v76
  %92 = vmatpush.bf16.msra.mxu0 %v75
  %93 = vmatpush.bf16.msra.mxu0 %v74
  %94 = vmatmul.bf16.gmra.mxu0 %v84
  %v95 = vpop.f32.mrf.mxu0
  %v96 = vadd.f32 0.0, %v95
  %v97 = vpop.f32.mrf.mxu0
  %v98 = vadd.f32 0.0, %v97
  %99 = vdwg.mxu0
  %v100 = vtanh.pop %v96
  %v101 = vtanh.pop %v98
  %v102 = vpack.c.bf16 %v101, %v100
  %v103 = vld [vmem:[%s5] sm:$0xf]
  %v104 = vld [vmem:[%s5 + $0x4] sm:$0xf]
  %v105 = vld [vmem:[%s5 + $0x8] sm:$0xf]
  %v106 = vld [vmem:[%s5 + $0xc] sm:$0xf]
  %v107 = vld [vmem:[%s5 + $0x10] sm:$0xf]
  %v108 = vld [vmem:[%s5 + $0x14] sm:$0xf]
  %v109 = vld [vmem:[%s5 + $0x18] sm:$0xf]
  %v110 = vld [vmem:[%s5 + $0x1c] sm:$0xf]
  %v111 = vld [vmem:[%s6] sm:$0x1]
  %v113 = vperm.slane %v111, 0
  %v123 = vunpack.c.l.b16 %v103
  %v124 = vunpack.c.l.b16 %v104
  %v125 = vunpack.c.l.b16 %v105
  %v126 = vunpack.c.l.b16 %v106
  %v127 = vunpack.c.l.b16 %v107
  %v128 = vunpack.c.l.b16 %v108
  %v129 = vunpack.c.l.b16 %v109
  %v130 = vunpack.c.l.b16 %v110
  %v131 = vpack.c.b16 %v124, %v123
  %v132 = vpack.c.b16 %v126, %v125
  %v133 = vpack.c.b16 %v128, %v127
  %v134 = vpack.c.b16 %v130, %v129
  %v140 = vsel %vm82, %v102, 0
  %142 = vmatpush.bf16.msra.mxu0 0
  %143 = vmatpush.bf16.msra.mxu0 0
  %144 = vmatpush.bf16.msra.mxu0 0
  %145 = vmatpush.bf16.msra.mxu0 0
  %146 = vmatpush.bf16.msra.mxu0 %v134
  %147 = vmatpush.bf16.msra.mxu0 %v133
  %148 = vmatpush.bf16.msra.mxu0 %v132
  %149 = vmatpush.bf16.msra.mxu0 %v131
  %150 = vmatmul.bf16.gmra.mxu0 %v140
  %v151 = vpop.f32.mrf.mxu0
  %v152 = vadd.f32 %v113, %v151
  %v153 = vpop.f32.mrf.mxu0
  %v154 = vadd.f32 %v113, %v153
  %155 = vdwg.mxu0
  %v156 = vpack.c.bf16 %v152, %v152
  %v157 = vpack.c.bf16 %v154, %v154
  %vm158 = vcmask 519168
  %159 = vst.msk [vmem:[%s7] sm:$0xf] %vm158, %v156
  %160 = vst.msk [vmem:[%s7 + $0x4] sm:$0xf] %vm158, %v157
  // Predicated region
  $region30: #{_lambda_.21} parent=0 // pred_check
    _
  $region31: #{_lambda_.21} parent=0 // pred_check_branch
    %162 = sbr.rel (0) target = $region33
  $region32: #{_lambda_.21} parent=0 // pred_region
    _
  $region33: #{_lambda_.21} parent=0 // pred_fallthru
    _
  // Predicated region
  $region34: #{_lambda_.21} parent=0 // pred_check
    _
  $region35: #{_lambda_.21} parent=0 // pred_check_branch
    %164 = sbr.rel (0) target = $region37
  $region36: #{_lambda_.21} parent=0 // pred_region
    _
  $region37: #{_lambda_.21} parent=0 // pred_fallthru
    _

// kernel: _lambda_.15
$region0: #{_lambda_.15}
  #allocation0 [shape = 'u32[]', space=smem, size = 0x4, offset = 0x4, fixed_abs, tag = 'smem constant byte address 0x4 - core index']
  #allocation1 [shape = 'u32[72,128]{1,0:T(1,128)}', space=vmem, size = 0x9000, scoped, tag = 'internal scratch']
  %s0 = inlined_call_operand.vmem [shape: f32[16,64], index: 0, kind: input, shape index: {}]
  %s1 = inlined_call_operand.vmem [shape: f32[1,64], index: 1, kind: input, shape index: {}]
  %s2 = inlined_call_operand.vmem [shape: f32[1,64], index: 2, kind: input, shape index: {}]
  %s3 = inlined_call_operand.vmem [shape: bf16[16,64], index: 3, kind: output, shape index: {}]
  %s4 = sld [smem:[#allocation0]]
  $region22: #{_lambda_.15} parent=0
    _
  %s6 = ssub.s32 1, %s4
  %s7 = scalar_select 0, %s6, %s4
  // Predicated region
  $region2: #{_lambda_.15} parent=0 // pred_check
    _
  $region3: #{_lambda_.15} parent=0 // pred_check_branch
    %9 = sbr.rel (0) target = $region5
  $region4: #{_lambda_.15} parent=0 // pred_region
    _
  $region5: #{_lambda_.15} parent=0 // pred_fallthru
    _
  // Predicated region
  $region6: #{_lambda_.15} parent=0 // pred_check
    _
  $region7: #{_lambda_.15} parent=0 // pred_check_branch
    %11 = sbr.rel (0) target = $region9
  $region8: #{_lambda_.15} parent=0 // pred_region
    _
  $region9: #{_lambda_.15} parent=0 // pred_fallthru
    _
  // Predicated region
  $region10: #{_lambda_.15} parent=0 // pred_check
    _
  $region11: #{_lambda_.15} parent=0 // pred_check_branch
    %13 = sbr.rel (0) target = $region13
  $region12: #{_lambda_.15} parent=0 // pred_region
    _
  $region13: #{_lambda_.15} parent=0 // pred_fallthru
    _
  %v14 = vld [vmem:[%s0] sm:$0xff]
  %v15 = vld [vmem:[%s0 + $0x8] sm:$0xff]
  %v18 = vrot.slane %v14, 1
  %v19 = vrot.slane %v14, 2
  %v20 = vrot.slane %v14, 3
  %v21 = vrot.slane %v14, 4
  %v22 = vrot.slane %v14, 5
  %v23 = vrot.slane %v14, 6
  %v24 = vrot.slane %v14, 7
  %v25 = vrot.slane %v15, 1
  %v26 = vrot.slane %v15, 2
  %v27 = vrot.slane %v15, 3
  %v28 = vrot.slane %v15, 4
  %v29 = vrot.slane %v15, 5
  %v30 = vrot.slane %v15, 6
  %v31 = vrot.slane %v15, 7
  %vm46 = vcmask 516096
  %v47 = vsel %vm46, %v14, 0.0
  %48 = vadd.xlane.f32.xlu0 %v47
  %v49 = vpop.xlane.xlu0 %48
  %v50 = vsel %vm46, %v18, 0.0
  %51 = vadd.xlane.f32.xlu0 %v50
  %v52 = vpop.xlane.xlu0 %51
  %v53 = vsel %vm46, %v19, 0.0
  %54 = vadd.xlane.f32.xlu0 %v53
  %v55 = vpop.xlane.xlu0 %54
  %v56 = vsel %vm46, %v20, 0.0
  %57 = vadd.xlane.f32.xlu0 %v56
  %v58 = vpop.xlane.xlu0 %57
  %v59 = vsel %vm46, %v21, 0.0
  %60 = vadd.xlane.f32.xlu0 %v59
  %v61 = vpop.xlane.xlu0 %60
  %v62 = vsel %vm46, %v22, 0.0
  %63 = vadd.xlane.f32.xlu0 %v62
  %v64 = vpop.xlane.xlu0 %63
  %v65 = vsel %vm46, %v23, 0.0
  %66 = vadd.xlane.f32.xlu0 %v65
  %v67 = vpop.xlane.xlu0 %66
  %v68 = vsel %vm46, %v24, 0.0
  %69 = vadd.xlane.f32.xlu0 %v68
  %v70 = vpop.xlane.xlu0 %69
  %v71 = vsel %vm46, %v15, 0.0
  %72 = vadd.xlane.f32.xlu0 %v71
  %v73 = vpop.xlane.xlu0 %72
  %v74 = vsel %vm46, %v25, 0.0
  %75 = vadd.xlane.f32.xlu0 %v74
  %v76 = vpop.xlane.xlu0 %75
  %v77 = vsel %vm46, %v26, 0.0
  %78 = vadd.xlane.f32.xlu0 %v77
  %v79 = vpop.xlane.xlu0 %78
  %v80 = vsel %vm46, %v27, 0.0
  %81 = vadd.xlane.f32.xlu0 %v80
  %v82 = vpop.xlane.xlu0 %81
  %v83 = vsel %vm46, %v28, 0.0
  %84 = vadd.xlane.f32.xlu0 %v83
  %v85 = vpop.xlane.xlu0 %84
  %v86 = vsel %vm46, %v29, 0.0
  %87 = vadd.xlane.f32.xlu0 %v86
  %v88 = vpop.xlane.xlu0 %87
  %v89 = vsel %vm46, %v30, 0.0
  %90 = vadd.xlane.f32.xlu0 %v89
  %v91 = vpop.xlane.xlu0 %90
  %v92 = vsel %vm46, %v31, 0.0
  %93 = vadd.xlane.f32.xlu0 %v92
  %v94 = vpop.xlane.xlu0 %93
  %v95 = vrcp.pop 64.0
  %v96 = vmul.f32 64.0, %v95
  %v97 = vsub.f32 1.0, %v96
  %v98 = vmul.f32 %v95, %v97
  %v99 = vadd.f32 %v95, %v98
  %vm100 = vweird.f32 %v95
  %v101 = vsel %vm100, %v95, %v99
  %v102 = vmul.f32 %v49, %v101
  %v103 = vmul.f32 %v52, %v101
  %v104 = vmul.f32 %v55, %v101
  %v105 = vmul.f32 %v58, %v101
  %v106 = vmul.f32 %v61, %v101
  %v107 = vmul.f32 %v64, %v101
  %v108 = vmul.f32 %v67, %v101
  %v109 = vmul.f32 %v70, %v101
  %v110 = vmul.f32 %v73, %v101
  %v111 = vmul.f32 %v76, %v101
  %v112 = vmul.f32 %v79, %v101
  %v113 = vmul.f32 %v82, %v101
  %v114 = vmul.f32 %v85, %v101
  %v115 = vmul.f32 %v88, %v101
  %v116 = vmul.f32 %v91, %v101
  %v117 = vmul.f32 %v94, %v101
  %v118 = vsub.f32 %v14, %v102
  %v119 = vsub.f32 %v18, %v103
  %v120 = vsub.f32 %v19, %v104
  %v121 = vsub.f32 %v20, %v105
  %v122 = vsub.f32 %v21, %v106
  %v123 = vsub.f32 %v22, %v107
  %v124 = vsub.f32 %v23, %v108
  %v125 = vsub.f32 %v24, %v109
  %v126 = vsub.f32 %v15, %v110
  %v127 = vsub.f32 %v25, %v111
  %v128 = vsub.f32 %v26, %v112
  %v129 = vsub.f32 %v27, %v113
  %v130 = vsub.f32 %v28, %v114
  %v131 = vsub.f32 %v29, %v115
  %v132 = vsub.f32 %v30, %v116
  %v133 = vsub.f32 %v31, %v117
  %v134 = vmul.f32 %v118, %v118
  %v135 = vmul.f32 %v119, %v119
  %v136 = vmul.f32 %v120, %v120
  %v137 = vmul.f32 %v121, %v121
  %v138 = vmul.f32 %v122, %v122
  %v139 = vmul.f32 %v123, %v123
  %v140 = vmul.f32 %v124, %v124
  %v141 = vmul.f32 %v125, %v125
  %v142 = vmul.f32 %v126, %v126
  %v143 = vmul.f32 %v127, %v127
  %v144 = vmul.f32 %v128, %v128
  %v145 = vmul.f32 %v129, %v129
  %v146 = vmul.f32 %v130, %v130
  %v147 = vmul.f32 %v131, %v131
  %v148 = vmul.f32 %v132, %v132
  %v149 = vmul.f32 %v133, %v133
  %v150 = vsel %vm46, %v134, 0.0
  %151 = vadd.xlane.f32.xlu0 %v150
  %v152 = vpop.xlane.xlu0 %151
  %v153 = vsel %vm46, %v135, 0.0
  %154 = vadd.xlane.f32.xlu0 %v153
  %v155 = vpop.xlane.xlu0 %154
  %v156 = vsel %vm46, %v136, 0.0
  %157 = vadd.xlane.f32.xlu0 %v156
  %v158 = vpop.xlane.xlu0 %157
  %v159 = vsel %vm46, %v137, 0.0
  %160 = vadd.xlane.f32.xlu0 %v159
  %v161 = vpop.xlane.xlu0 %160
  %v162 = vsel %vm46, %v138, 0.0
  %163 = vadd.xlane.f32.xlu0 %v162
  %v164 = vpop.xlane.xlu0 %163
  %v165 = vsel %vm46, %v139, 0.0
  %166 = vadd.xlane.f32.xlu0 %v165
  %v167 = vpop.xlane.xlu0 %166
  %v168 = vsel %vm46, %v140, 0.0
  %169 = vadd.xlane.f32.xlu0 %v168
  %v170 = vpop.xlane.xlu0 %169
  %v171 = vsel %vm46, %v141, 0.0
  %172 = vadd.xlane.f32.xlu0 %v171
  %v173 = vpop.xlane.xlu0 %172
  %v174 = vsel %vm46, %v142, 0.0
  %175 = vadd.xlane.f32.xlu0 %v174
  %v176 = vpop.xlane.xlu0 %175
  %v177 = vsel %vm46, %v143, 0.0
  %178 = vadd.xlane.f32.xlu0 %v177
  %v179 = vpop.xlane.xlu0 %178
  %v180 = vsel %vm46, %v144, 0.0
  %181 = vadd.xlane.f32.xlu0 %v180
  %v182 = vpop.xlane.xlu0 %181
  %v183 = vsel %vm46, %v145, 0.0
  %184 = vadd.xlane.f32.xlu0 %v183
  %v185 = vpop.xlane.xlu0 %184
  %v186 = vsel %vm46, %v146, 0.0
  %187 = vadd.xlane.f32.xlu0 %v186
  %v188 = vpop.xlane.xlu0 %187
  %v189 = vsel %vm46, %v147, 0.0
  %190 = vadd.xlane.f32.xlu0 %v189
  %v191 = vpop.xlane.xlu0 %190
  %v192 = vsel %vm46, %v148, 0.0
  %193 = vadd.xlane.f32.xlu0 %v192
  %v194 = vpop.xlane.xlu0 %193
  %v195 = vsel %vm46, %v149, 0.0
  %196 = vadd.xlane.f32.xlu0 %v195
  %v197 = vpop.xlane.xlu0 %196
  %v198 = vmul.f32 %v152, %v101
  %v199 = vmul.f32 %v155, %v101
  %v200 = vmul.f32 %v158, %v101
  %v201 = vmul.f32 %v161, %v101
  %v202 = vmul.f32 %v164, %v101
  %v203 = vmul.f32 %v167, %v101
  %v204 = vmul.f32 %v170, %v101
  %v205 = vmul.f32 %v173, %v101
  %v206 = vmul.f32 %v176, %v101
  %v207 = vmul.f32 %v179, %v101
  %v208 = vmul.f32 %v182, %v101
  %v209 = vmul.f32 %v185, %v101
  %v210 = vmul.f32 %v188, %v101
  %v211 = vmul.f32 %v191, %v101
  %v212 = vmul.f32 %v194, %v101
  %v213 = vmul.f32 %v197, %v101
  %v214 = vadd.f32 %v198, 1e-05
  %v215 = vadd.f32 %v199, 1e-05
  %v216 = vadd.f32 %v200, 1e-05
  %v217 = vadd.f32 %v201, 1e-05
  %v218 = vadd.f32 %v202, 1e-05
  %v219 = vadd.f32 %v203, 1e-05
  %v220 = vadd.f32 %v204, 1e-05
  %v221 = vadd.f32 %v205, 1e-05
  %v222 = vadd.f32 %v206, 1e-05
  %v223 = vadd.f32 %v207, 1e-05
  %v224 = vadd.f32 %v208, 1e-05
  %v225 = vadd.f32 %v209, 1e-05
  %v226 = vadd.f32 %v210, 1e-05
  %v227 = vadd.f32 %v211, 1e-05
  %v228 = vadd.f32 %v212, 1e-05
  %v229 = vadd.f32 %v213, 1e-05
  %v230 = vrsqrt.pop %v214
  %v231 = vmul.f32 %v230, %v214
  %v232 = vmul.f32 %v231, %v230
  %v233 = vmul.f32 0.5, %v232
  %v234 = vsub.f32 1.5, %v233
  %v235 = vmul.f32 %v230, %v234
  %vm236 = vweird.f32 %v214
  %vm237 = vweird.f32 %v230
  %vm238 = vmor %vm236, %vm237
  %v239 = vsel %vm238, %v230, %v235
  %v240 = vrsqrt.pop %v215
  %v241 = vmul.f32 %v240, %v215
  %v242 = vmul.f32 %v241, %v240
  %v243 = vmul.f32 0.5, %v242
  %v244 = vsub.f32 1.5, %v243
  %v245 = vmul.f32 %v240, %v244
  %vm246 = vweird.f32 %v215
  %vm247 = vweird.f32 %v240
  %vm248 = vmor %vm246, %vm247
  %v249 = vsel %vm248, %v240, %v245
  %v250 = vrsqrt.pop %v216
  %v251 = vmul.f32 %v250, %v216
  %v252 = vmul.f32 %v251, %v250
  %v253 = vmul.f32 0.5, %v252
  %v254 = vsub.f32 1.5, %v253
  %v255 = vmul.f32 %v250, %v254
  %vm256 = vweird.f32 %v216
  %vm257 = vweird.f32 %v250
  %vm258 = vmor %vm256, %vm257
  %v259 = vsel %vm258, %v250, %v255
  %v260 = vrsqrt.pop %v217
  %v261 = vmul.f32 %v260, %v217
  %v262 = vmul.f32 %v261, %v260
  %v263 = vmul.f32 0.5, %v262
  %v264 = vsub.f32 1.5, %v263
  %v265 = vmul.f32 %v260, %v264
  %vm266 = vweird.f32 %v217
  %vm267 = vweird.f32 %v260
  %vm268 = vmor %vm266, %vm267
  %v269 = vsel %vm268, %v260, %v265
  %v270 = vrsqrt.pop %v218
  %v271 = vmul.f32 %v270, %v218
  %v272 = vmul.f32 %v271, %v270
  %v273 = vmul.f32 0.5, %v272
  %v274 = vsub.f32 1.5, %v273
  %v275 = vmul.f32 %v270, %v274
  %vm276 = vweird.f32 %v218
  %vm277 = vweird.f32 %v270
  %vm278 = vmor %vm276, %vm277
  %v279 = vsel %vm278, %v270, %v275
  %v280 = vrsqrt.pop %v219
  %v281 = vmul.f32 %v280, %v219
  %v282 = vmul.f32 %v281, %v280
  %v283 = vmul.f32 0.5, %v282
  %v284 = vsub.f32 1.5, %v283
  %v285 = vmul.f32 %v280, %v284
  %vm286 = vweird.f32 %v219
  %vm287 = vweird.f32 %v280
  %vm288 = vmor %vm286, %vm287
  %v289 = vsel %vm288, %v280, %v285
  %v290 = vrsqrt.pop %v220
  %v291 = vmul.f32 %v290, %v220
  %v292 = vmul.f32 %v291, %v290
  %v293 = vmul.f32 0.5, %v292
  %v294 = vsub.f32 1.5, %v293
  %v295 = vmul.f32 %v290, %v294
  %vm296 = vweird.f32 %v220
  %vm297 = vweird.f32 %v290
  %vm298 = vmor %vm296, %vm297
  %v299 = vsel %vm298, %v290, %v295
  %v300 = vrsqrt.pop %v221
  %v301 = vmul.f32 %v300, %v221
  %v302 = vmul.f32 %v301, %v300
  %v303 = vmul.f32 0.5, %v302
  %v304 = vsub.f32 1.5, %v303
  %v305 = vmul.f32 %v300, %v304
  %vm306 = vweird.f32 %v221
  %vm307 = vweird.f32 %v300
  %vm308 = vmor %vm306, %vm307
  %v309 = vsel %vm308, %v300, %v305
  %v310 = vrsqrt.pop %v222
  %v311 = vmul.f32 %v310, %v222
  %v312 = vmul.f32 %v311, %v310
  %v313 = vmul.f32 0.5, %v312
  %v314 = vsub.f32 1.5, %v313
  %v315 = vmul.f32 %v310, %v314
  %vm316 = vweird.f32 %v222
  %vm317 = vweird.f32 %v310
  %vm318 = vmor %vm316, %vm317
  %v319 = vsel %vm318, %v310, %v315
  %v320 = vrsqrt.pop %v223
  %v321 = vmul.f32 %v320, %v223
  %v322 = vmul.f32 %v321, %v320
  %v323 = vmul.f32 0.5, %v322
  %v324 = vsub.f32 1.5, %v323
  %v325 = vmul.f32 %v320, %v324
  %vm326 = vweird.f32 %v223
  %vm327 = vweird.f32 %v320
  %vm328 = vmor %vm326, %vm327
  %v329 = vsel %vm328, %v320, %v325
  %v330 = vrsqrt.pop %v224
  %v331 = vmul.f32 %v330, %v224
  %v332 = vmul.f32 %v331, %v330
  %v333 = vmul.f32 0.5, %v332
  %v334 = vsub.f32 1.5, %v333
  %v335 = vmul.f32 %v330, %v334
  %vm336 = vweird.f32 %v224
  %vm337 = vweird.f32 %v330
  %vm338 = vmor %vm336, %vm337
  %v339 = vsel %vm338, %v330, %v335
  %v340 = vrsqrt.pop %v225
  %v341 = vmul.f32 %v340, %v225
  %v342 = vmul.f32 %v341, %v340
  %v343 = vmul.f32 0.5, %v342
  %v344 = vsub.f32 1.5, %v343
  %v345 = vmul.f32 %v340, %v344
  %vm346 = vweird.f32 %v225
  %vm347 = vweird.f32 %v340
  %vm348 = vmor %vm346, %vm347
  %v349 = vsel %vm348, %v340, %v345
  %v350 = vrsqrt.pop %v226
  %v351 = vmul.f32 %v350, %v226
  %v352 = vmul.f32 %v351, %v350
  %v353 = vmul.f32 0.5, %v352
  %v354 = vsub.f32 1.5, %v353
  %v355 = vmul.f32 %v350, %v354
  %vm356 = vweird.f32 %v226
  %vm357 = vweird.f32 %v350
  %vm358 = vmor %vm356, %vm357
  %v359 = vsel %vm358, %v350, %v355
  %v360 = vrsqrt.pop %v227
  %v361 = vmul.f32 %v360, %v227
  %v362 = vmul.f32 %v361, %v360
  %v363 = vmul.f32 0.5, %v362
  %v364 = vsub.f32 1.5, %v363
  %v365 = vmul.f32 %v360, %v364
  %vm366 = vweird.f32 %v227
  %vm367 = vweird.f32 %v360
  %vm368 = vmor %vm366, %vm367
  %v369 = vsel %vm368, %v360, %v365
  %v370 = vrsqrt.pop %v228
  %v371 = vmul.f32 %v370, %v228
  %v372 = vmul.f32 %v371, %v370
  %v373 = vmul.f32 0.5, %v372
  %v374 = vsub.f32 1.5, %v373
  %v375 = vmul.f32 %v370, %v374
  %vm376 = vweird.f32 %v228
  %vm377 = vweird.f32 %v370
  %vm378 = vmor %vm376, %vm377
  %v379 = vsel %vm378, %v370, %v375
  %v380 = vrsqrt.pop %v229
  %v381 = vmul.f32 %v380, %v229
  %v382 = vmul.f32 %v381, %v380
  %v383 = vmul.f32 0.5, %v382
  %v384 = vsub.f32 1.5, %v383
  %v385 = vmul.f32 %v380, %v384
  %vm386 = vweird.f32 %v229
  %vm387 = vweird.f32 %v380
  %vm388 = vmor %vm386, %vm387
  %v389 = vsel %vm388, %v380, %v385
  %v390 = vmul.f32 %v118, %v239
  %v391 = vmul.f32 %v119, %v249
  %v392 = vmul.f32 %v120, %v259
  %v393 = vmul.f32 %v121, %v269
  %v394 = vmul.f32 %v122, %v279
  %v395 = vmul.f32 %v123, %v289
  %v396 = vmul.f32 %v124, %v299
  %v397 = vmul.f32 %v125, %v309
  %v398 = vmul.f32 %v126, %v319
  %v399 = vmul.f32 %v127, %v329
  %v400 = vmul.f32 %v128, %v339
  %v401 = vmul.f32 %v129, %v349
  %v402 = vmul.f32 %v130, %v359
  %v403 = vmul.f32 %v131, %v369
  %v404 = vmul.f32 %v132, %v379
  %v405 = vmul.f32 %v133, %v389
  %v406 = vld [vmem:[%s1] sm:$0x1]
  %v408 = vperm.slane %v406, 0
  %v410 = vrot.slane %v408, 1
  %v411 = vrot.slane %v408, 2
  %v412 = vrot.slane %v408, 3
  %v413 = vrot.slane %v408, 4
  %v414 = vrot.slane %v408, 5
  %v415 = vrot.slane %v408, 6
  %v416 = vrot.slane %v408, 7
  %v424 = vmul.f32 %v390, %v408
  %v425 = vmul.f32 %v391, %v410
  %v426 = vmul.f32 %v392, %v411
  %v427 = vmul.f32 %v393, %v412
  %v428 = vmul.f32 %v394, %v413
  %v429 = vmul.f32 %v395, %v414
  %v430 = vmul.f32 %v396, %v415
  %v431 = vmul.f32 %v397, %v416
  %v432 = vmul.f32 %v398, %v408
  %v433 = vmul.f32 %v399, %v410
  %v434 = vmul.f32 %v400, %v411
  %v435 = vmul.f32 %v401, %v412
  %v436 = vmul.f32 %v402, %v413
  %v437 = vmul.f32 %v403, %v414
  %v438 = vmul.f32 %v404, %v415
  %v439 = vmul.f32 %v405, %v416
  %v440 = vld [vmem:[%s2] sm:$0x1]
  %v442 = vperm.slane %v440, 0
  %v444 = vrot.slane %v442, 1
  %v445 = vrot.slane %v442, 2
  %v446 = vrot.slane %v442, 3
  %v447 = vrot.slane %v442, 4
  %v448 = vrot.slane %v442, 5
  %v449 = vrot.slane %v442, 6
  %v450 = vrot.slane %v442, 7
  %v458 = vadd.f32 %v424, %v442
  %v459 = vadd.f32 %v425, %v444
  %v460 = vadd.f32 %v426, %v445
  %v461 = vadd.f32 %v427, %v446
  %v462 = vadd.f32 %v428, %v447
  %v463 = vadd.f32 %v429, %v448
  %v464 = vadd.f32 %v430, %v449
  %v465 = vadd.f32 %v431, %v450
  %v466 = vadd.f32 %v432, %v442
  %v467 = vadd.f32 %v433, %v444
  %v468 = vadd.f32 %v434, %v445
  %v469 = vadd.f32 %v435, %v446
  %v470 = vadd.f32 %v436, %v447
  %v471 = vadd.f32 %v437, %v448
  %v472 = vadd.f32 %v438, %v449
  %v473 = vadd.f32 %v439, %v450
  %v474 = vpack.c.bf16 %v458, %v458
  %v475 = vpack.c.bf16 %v459, %v459
  %v476 = vpack.c.bf16 %v460, %v460
  %v477 = vpack.c.bf16 %v461, %v461
  %v478 = vpack.c.bf16 %v462, %v462
  %v479 = vpack.c.bf16 %v463, %v463
  %v480 = vpack.c.bf16 %v464, %v464
  %v481 = vpack.c.bf16 %v465, %v465
  %v482 = vpack.c.bf16 %v466, %v466
  %v483 = vpack.c.bf16 %v467, %v467
  %v484 = vpack.c.bf16 %v468, %v468
  %v485 = vpack.c.bf16 %v469, %v469
  %v486 = vpack.c.bf16 %v470, %v470
  %v487 = vpack.c.bf16 %v471, %v471
  %v488 = vpack.c.bf16 %v472, %v472
  %v489 = vpack.c.bf16 %v473, %v473
  %v506 = vunpack.c.l.b16 %v474
  %v507 = vunpack.c.l.b16 %v475
  %v508 = vunpack.c.l.b16 %v476
  %v509 = vunpack.c.l.b16 %v477
  %v510 = vunpack.c.l.b16 %v478
  %v511 = vunpack.c.l.b16 %v479
  %v512 = vunpack.c.l.b16 %v480
  %v513 = vunpack.c.l.b16 %v481
  %v514 = vunpack.c.l.b16 %v482
  %v515 = vunpack.c.l.b16 %v483
  %v516 = vunpack.c.l.b16 %v484
  %v517 = vunpack.c.l.b16 %v485
  %v518 = vunpack.c.l.b16 %v486
  %v519 = vunpack.c.l.b16 %v487
  %v520 = vunpack.c.l.b16 %v488
  %v521 = vunpack.c.l.b16 %v489
  %v522 = vrot.slane %v507, 7
  %vm523 = vcmask 1041409
  %v524 = vsel %vm523, %v522, %v506
  %v525 = vrot.slane %v508, 6
  %vm526 = vcmask 1042434
  %v527 = vsel %vm526, %v525, %v524
  %v528 = vrot.slane %v509, 5
  %vm529 = vcmask 1043459
  %v530 = vsel %vm529, %v528, %v527
  %v531 = vrot.slane %v510, 4
  %vm532 = vcmask 1044484
  %v533 = vsel %vm532, %v531, %v530
  %v534 = vrot.slane %v511, 3
  %vm535 = vcmask 1045509
  %v536 = vsel %vm535, %v534, %v533
  %v537 = vrot.slane %v512, 2
  %vm538 = vcmask 1046534
  %v539 = vsel %vm538, %v537, %v536
  %v540 = vrot.slane %v513, 1
  %vm541 = vcmask 1047559
  %v542 = vsel %vm541, %v540, %v539
  %v543 = vrot.slane %v515, 7
  %v544 = vsel %vm523, %v543, %v514
  %v545 = vrot.slane %v516, 6
  %v546 = vsel %vm526, %v545, %v544
  %v547 = vrot.slane %v517, 5
  %v548 = vsel %vm529, %v547, %v546
  %v549 = vrot.slane %v518, 4
  %v550 = vsel %vm532, %v549, %v548
  %v551 = vrot.slane %v519, 3
  %v552 = vsel %vm535, %v551, %v550
  %v553 = vrot.slane %v520, 2
  %v554 = vsel %vm538, %v553, %v552
  %v555 = vrot.slane %v521, 1
  %v556 = vsel %vm541, %v555, %v554
  %v557 = vpack.c.b16 %v542, %v542
  %v558 = vpack.c.b16 %v556, %v556
  %vm561 = vcmask 519168
  %562 = vst.msk [vmem:[%s3] sm:$0xf] %vm561, %v557
  %563 = vst.msk [vmem:[%s3 + $0x4] sm:$0xf] %vm561, %v558
  // Predicated region
  $region14: #{_lambda_.15} parent=0 // pred_check
    _
  $region15: #{_lambda_.15} parent=0 // pred_check_branch
    %565 = sbr.rel (0) target = $region17
  $region16: #{_lambda_.15} parent=0 // pred_region
    _
  $region17: #{_lambda_.15} parent=0 // pred_fallthru
    _
  // Predicated region
  $region18: #{_lambda_.15} parent=0 // pred_check
    _
  $region19: #{_lambda_.15} parent=0 // pred_check_branch
    %567 = sbr.rel (0) target = $region21
  $region20: #{_lambda_.15} parent=0 // pred_region
    _
  $region21: #{_lambda_.15} parent=0 // pred_fallthru
    _

// kernel: _lambda_.16
$region0: #{_lambda_.16}
  #allocation0 [shape = 'u32[]', space=smem, size = 0x4, offset = 0x4, fixed_abs, tag = 'smem constant byte address 0x4 - core index']
  #allocation1 [shape = 'u32[72,128]{1,0:T(1,128)}', space=vmem, size = 0x9000, scoped, tag = 'internal scratch']
  %s0 = inlined_call_operand.vmem [shape: bf16[16,64], index: 0, kind: input, shape index: {}]
  %s1 = inlined_call_operand.vmem [shape: bf16[16,64], index: 1, kind: input, shape index: {}]
  %s2 = inlined_call_operand.vmem [shape: f32[1,64], index: 2, kind: input, shape index: {}]
  %s3 = inlined_call_operand.vmem [shape: bf16[5,64,32], index: 3, kind: input, shape index: {}]
  %s4 = inlined_call_operand.vmem [shape: bf16[5,32,64], index: 4, kind: input, shape index: {}]
  %s5 = inlined_call_operand.vmem [shape: bf16[5,16,64], index: 5, kind: output, shape index: {}]
  %s6 = sld [smem:[#allocation0]]
  $region53: #{_lambda_.16} parent=0
    _
  %s8 = ssub.s32 1, %s6
  %s9 = scalar_select 0, %s8, %s6
  loop: start=0, step=1, limit=7
  $region2: #{_lambda_.16} parent=0 // loop_pre_header
    _
  $region3: #{_lambda_.16} parent=0 // loop_header
    %s11 = sphi 0, %s15
    %p12 = scmp.ge.s32.totalorder %s11, 7
    %s18 = sphi 0, %s30
    %s19 = sphi 0, %s26
    %s20 = sphi 0, %s18
    %s21 = sphi 0, %s19
    %s22 = sphi 0, %s20
    %s23 = sphi 0, %s21
    %s33 = sphi 0, %s35
    %s36 = sphi 0, %s33
    %s37 = sphi 0, %s36
    %s53 = sphi 0, %s37
    %s59 = sphi 0, %s61
    %s62 = sphi 0, %s59
    %s63 = sphi 0, %s62
    %s79 = sphi 0, %s63
    %s83 = sphi 0, %s83
    %s85 = sphi 0, %s83
    %s86 = sphi 0, %s85
    %s100 = sphi 0, %s86
    %s106 = sphi 0, %s108
    %s109 = sphi 0, %s106
    %s110 = sphi 0, %s109
    %s126 = sphi 0, %s110
    %s132 = sphi 0, %s134
    %s135 = sphi 0, %s132
    %s136 = sphi 0, %s135
    %s152 = sphi 0, %s136
    %s160 = sphi 0, %s162
    %s163 = sphi 0, %s160
    %s164 = sphi 0, %s163
    %s180 = sphi 0, %s164
  $region4: #{_lambda_.16} parent=0 // loop_header_branch
    %14 = sbr.rel (%p12) target = $region8
  $region5: #{_lambda_.16} parent=0 // loop_body
    %s16 = ssub.s32 %s11, 1
    %s17 = ssub.s32 %s11, 2
    %s24 = sadd.s32 1, %s19
    %p25 = scmp.ge.s32.totalorder %s24, 5
    %s26 = scalar_select %p25, 0, %s24
    %s27 = sadd.s32 1, %s18
    %s28 = scalar_select %p25, %s27, %s18
    %p29 = scmp.ge.s32.totalorder %s28, 1
    %s30 = scalar_select %p29, 0, %s28
    %s31 = ssub.s32 %s18, %s30
    %p32 = scmp.eq.s32.totalorder %s31, 0
    %s34 = sadd.s32 %s33, 1
    %s35 = scalar_select %p32, %s33, %s34
    %p38 = pneg %p32
    %p39 = scmp.eq.s32.totalorder %s11, 4
    %p40 = por %p38, %p39
    %p41 = scmp.ne.s32.totalorder %s33, %s36
    %p42 = scmp.eq.s32.totalorder %s11, 0
    %p43 = por %p41, %p42
    %p44 = scmp.ne.s32.totalorder %s33, %s36
    %p45 = scmp.eq.s32.totalorder %s16, 4
    %p46 = por %p44, %p45
    %p47 = scmp.ne.s32.totalorder %s36, %s37
    %p48 = scmp.eq.s32.totalorder %s16, 0
    %p49 = por %p47, %p48
    %p50 = scmp.ne.s32.totalorder %s36, %s37
    %p51 = scmp.eq.s32.totalorder %s17, 4
    %p52 = por %p50, %p51
    %p54 = scmp.ne.s32.totalorder %s37, %s53
    %p55 = scmp.eq.s32.totalorder %s17, 0
    %p56 = por %p54, %p55
    %s57 = ssub.s32 %s18, %s30
    %p58 = scmp.eq.s32.totalorder %s57, 0
    %s60 = sadd.s32 %s59, 1
    %s61 = scalar_select %p58, %s59, %s60
    %p64 = pneg %p58
    %p65 = scmp.eq.s32.totalorder %s11, 4
    %p66 = por %p64, %p65
    %p67 = scmp.ne.s32.totalorder %s59, %s62
    %p68 = scmp.eq.s32.totalorder %s11, 0
    %p69 = por %p67, %p68
    %p70 = scmp.ne.s32.totalorder %s59, %s62
    %p71 = scmp.eq.s32.totalorder %s16, 4
    %p72 = por %p70, %p71
    %p73 = scmp.ne.s32.totalorder %s62, %s63
    %p74 = scmp.eq.s32.totalorder %s16, 0
    %p75 = por %p73, %p74
    %p76 = scmp.ne.s32.totalorder %s62, %s63
    %p77 = scmp.eq.s32.totalorder %s17, 4
    %p78 = por %p76, %p77
    %p80 = scmp.ne.s32.totalorder %s63, %s79
    %p81 = scmp.eq.s32.totalorder %s17, 0
    %p82 = por %p80, %p81
    %s84 = sadd.s32 %s83, 1
    %p87 = scmp.eq.s32.totalorder %s11, 4
    %p88 = scmp.ne.s32.totalorder %s83, %s85
    %p89 = scmp.eq.s32.totalorder %s11, 0
    %p90 = por %p88, %p89
    %p91 = scmp.ne.s32.totalorder %s83, %s85
    %p92 = scmp.eq.s32.totalorder %s16, 4
    %p93 = por %p91, %p92
    %p94 = scmp.ne.s32.totalorder %s85, %s86
    %p95 = scmp.eq.s32.totalorder %s16, 0
    %p96 = por %p94, %p95
    %p97 = scmp.ne.s32.totalorder %s85, %s86
    %p98 = scmp.eq.s32.totalorder %s17, 4
    %p99 = por %p97, %p98
    %p101 = scmp.ne.s32.totalorder %s86, %s100
    %p102 = scmp.eq.s32.totalorder %s17, 0
    %p103 = por %p101, %p102
    %s104 = ssub.s32 %s19, %s26
    %p105 = scmp.eq.s32.totalorder %s104, 0
    %s107 = sadd.s32 %s106, 1
    %s108 = scalar_select %p105, %s106, %s107
    %p111 = pneg %p105
    %p112 = scmp.eq.s32.totalorder %s11, 4
    %p113 = por %p111, %p112
    %p114 = scmp.ne.s32.totalorder %s106, %s109
    %p115 = scmp.eq.s32.totalorder %s11, 0
    %p116 = por %p114, %p115
    %p117 = scmp.ne.s32.totalorder %s106, %s109
    %p118 = scmp.eq.s32.totalorder %s16, 4
    %p119 = por %p117, %p118
    %p120 = scmp.ne.s32.totalorder %s109, %s110
    %p121 = scmp.eq.s32.totalorder %s16, 0
    %p122 = por %p120, %p121
    %p123 = scmp.ne.s32.totalorder %s109, %s110
    %p124 = scmp.eq.s32.totalorder %s17, 4
    %p125 = por %p123, %p124
    %p127 = scmp.ne.s32.totalorder %s110, %s126
    %p128 = scmp.eq.s32.totalorder %s17, 0
    %p129 = por %p127, %p128
    %s130 = ssub.s32 %s19, %s26
    %p131 = scmp.eq.s32.totalorder %s130, 0
    %s133 = sadd.s32 %s132, 1
    %s134 = scalar_select %p131, %s132, %s133
    %p137 = pneg %p131
    %p138 = scmp.eq.s32.totalorder %s11, 4
    %p139 = por %p137, %p138
    %p140 = scmp.ne.s32.totalorder %s132, %s135
    %p141 = scmp.eq.s32.totalorder %s11, 0
    %p142 = por %p140, %p141
    %p143 = scmp.ne.s32.totalorder %s132, %s135
    %p144 = scmp.eq.s32.totalorder %s16, 4
    %p145 = por %p143, %p144
    %p146 = scmp.ne.s32.totalorder %s135, %s136
    %p147 = scmp.eq.s32.totalorder %s16, 0
    %p148 = por %p146, %p147
    %p149 = scmp.ne.s32.totalorder %s135, %s136
    %p150 = scmp.eq.s32.totalorder %s17, 4
    %p151 = por %p149, %p150
    %p153 = scmp.ne.s32.totalorder %s136, %s152
    %p154 = scmp.eq.s32.totalorder %s17, 0
    %p155 = por %p153, %p154
    %s156 = ssub.s32 %s19, %s26
    %s157 = ssub.s32 %s18, %s30
    %s158 = sor.u32 %s156, %s157
    %p159 = scmp.eq.s32.totalorder %s158, 0
    %s161 = sadd.s32 %s160, 1
    %s162 = scalar_select %p159, %s160, %s161
    %p165 = pneg %p159
    %p166 = scmp.eq.s32.totalorder %s11, 4
    %p167 = por %p165, %p166
    %p168 = scmp.ne.s32.totalorder %s160, %s163
    %p169 = scmp.eq.s32.totalorder %s11, 0
    %p170 = por %p168, %p169
    %p171 = scmp.ne.s32.totalorder %s160, %s163
    %p172 = scmp.eq.s32.totalorder %s16, 4
    %p173 = por %p171, %p172
    %p174 = scmp.ne.s32.totalorder %s163, %s164
    %p175 = scmp.eq.s32.totalorder %s16, 0
    %p176 = por %p174, %p175
    %p177 = scmp.ne.s32.totalorder %s163, %s164
    %p178 = scmp.eq.s32.totalorder %s17, 4
    %p179 = por %p177, %p178
    %p181 = scmp.ne.s32.totalorder %s164, %s180
    %p182 = scmp.eq.s32.totalorder %s17, 0
    %p183 = por %p181, %p182
    %p184 = scmp.le.s32.totalorder 1, %s11
    %p185 = scmp.lt.s32.totalorder %s11, 6
    %p186 = pnand %p184, %p185
    %p187 = pneg %p186
    // Predicated region
    $region9: #{_lambda_.16} parent=5 // pred_check
      _
    $region10: #{_lambda_.16} parent=5 // pred_check_branch
      %189 = sbr.rel (%p186) target = $region12
    $region11: #{_lambda_.16} parent=5 // pred_region
      %s190 = ssub.s32 %s11, 1
      // Predicated region
      $region13: #{_lambda_.16} parent=11 // pred_check
        %p191 = pneg %p49
      $region14: #{_lambda_.16} parent=11 // pred_check_branch
        %193 = sbr.rel (%p191) target = $region16
      $region15: #{_lambda_.16} parent=11 // pred_region
        %s194 = smul.u32 2, %s20
        %p195 = scmp.lt.s32.totalorder %s194, 1
        %s196 = scalar_select %p195, %s194, 1
        %s197 = smul.addr %s196, 4
        %s198 = scalar_lea.vmem %s0, %s197
        %s199 = smul.u32 2, %s20
      $region16: #{_lambda_.16} parent=11 // pred_fallthru
        _
      // Predicated region
      $region17: #{_lambda_.16} parent=11 // pred_check
        %p200 = pneg %p75
      $region18: #{_lambda_.16} parent=11 // pred_check_branch
        %202 = sbr.rel (%p200) target = $region20
      $region19: #{_lambda_.16} parent=11 // pred_region
        %s203 = smul.u32 2, %s20
        %p204 = scmp.lt.s32.totalorder %s203, 1
        %s205 = scalar_select %p204, %s203, 1
        %s206 = smul.addr %s205, 4
        %s207 = scalar_lea.vmem %s1, %s206
        %s208 = smul.u32 2, %s20
      $region20: #{_lambda_.16} parent=11 // pred_fallthru
        _
      // Predicated region
      $region21: #{_lambda_.16} parent=11 // pred_check
        %p209 = pneg %p96
      $region22: #{_lambda_.16} parent=11 // pred_check_branch
        %211 = sbr.rel (%p209) target = $region24
      $region23: #{_lambda_.16} parent=11 // pred_region
        _
      $region24: #{_lambda_.16} parent=11 // pred_fallthru
        _
    $region12: #{_lambda_.16} parent=5 // pred_fallthru
      _
    %p212 = scmp.lt.s32.totalorder %s11, 5
    // Predicated region
    $region25: #{_lambda_.16} parent=5 // pred_check
      %p213 = pneg %p212
    $region26: #{_lambda_.16} parent=5 // pred_check_branch
      %215 = sbr.rel (%p213) target = $region28
    $region27: #{_lambda_.16} parent=5 // pred_region
      // Predicated region
      $region29: #{_lambda_.16} parent=27 // pred_check
        %p216 = pneg %p116
      $region30: #{_lambda_.16} parent=27 // pred_check_branch
        %218 = sbr.rel (%p216) target = $region32
      $region31: #{_lambda_.16} parent=27 // pred_region
        %p219 = scmp.lt.s32.totalorder %s19, 4
        %s220 = scalar_select %p219, %s19, 4
        %s221 = smul.addr %s220, 8
        %s222 = smul.addr %s221, 4
        %s223 = scalar_lea.vmem %s3, %s222
      $region32: #{_lambda_.16} parent=27 // pred_fallthru
        _
      // Predicated region
      $region33: #{_lambda_.16} parent=27 // pred_check
        %p224 = pneg %p142
      $region34: #{_lambda_.16} parent=27 // pred_check_branch
        %226 = sbr.rel (%p224) target = $region36
      $region35: #{_lambda_.16} parent=27 // pred_region
        %p227 = scmp.lt.s32.totalorder %s19, 4
        %s228 = scalar_select %p227, %s19, 4
        %s229 = smul.addr %s228, 4
        %s230 = smul.addr %s229, 4
        %s231 = scalar_lea.vmem %s4, %s230
      $region36: #{_lambda_.16} parent=27 // pred_fallthru
        _
    $region28: #{_lambda_.16} parent=5 // pred_fallthru
      _
    %p232 = scmp.le.s32.totalorder 1, %s11
    %p233 = scmp.lt.s32.totalorder %s11, 6
    %p234 = pnand %p232, %p233
    %p235 = pneg %p234
    // Predicated region
    $region37: #{_lambda_.16} parent=5 // pred_check
      _
    $region38: #{_lambda_.16} parent=5 // pred_check_branch
      %237 = sbr.rel (%p234) target = $region40
    $region39: #{_lambda_.16} parent=5 // pred_region
      %s238 = ssub.s32 %s11, 1
      %s239 = smul.u32 2, %s20
      %p240 = scmp.lt.s32.totalorder %s239, 1
      %s241 = scalar_select %p240, %s239, 1
      %s242 = smul.addr %s241, 4
      %s243 = scalar_lea.vmem %s0, %s242
      %p244 = pneg %p49
      %p245 = pneg %p46
      %s246 = smul.u32 2, %s20
      %p247 = scmp.lt.s32.totalorder %s246, 1
      %s248 = scalar_select %p247, %s246, 1
      %s249 = smul.addr %s248, 4
      %s250 = scalar_lea.vmem %s1, %s249
      %p251 = pneg %p75
      %p252 = pneg %p72
      %p253 = pneg %p96
      %p254 = pneg %p93
      %p255 = scmp.lt.s32.totalorder %s21, 4
      %s256 = scalar_select %p255, %s21, 4
      %s257 = smul.addr %s256, 8
      %s258 = smul.addr %s257, 4
      %s259 = scalar_lea.vmem %s3, %s258
      %p260 = pneg %p122
      %p261 = pneg %p119
      %p262 = scmp.lt.s32.totalorder %s21, 4
      %s263 = scalar_select %p262, %s21, 4
      %s264 = smul.addr %s263, 4
      %s265 = smul.addr %s264, 4
      %s266 = scalar_lea.vmem %s4, %s265
      %p267 = pneg %p148
      %p268 = pneg %p145
      %p269 = pneg %p176
      %p270 = pneg %p173
      %s271 = smul.u32 2, %s20
      %p272 = scmp.lt.s32.totalorder %s21, 4
      %s273 = scalar_select %p272, %s21, 4
      %p274 = scmp.lt.s32.totalorder %s271, 1
      %s275 = scalar_select %p274, %s271, 1
      %s276 = smul.addr %s273, 2
      %s277 = sadd.s32 %s275, %s276
      %s278 = smul.addr %s277, 4
      %s279 = scalar_lea.vmem %s5, %s278
      %s280 = smul.u32 2, %s20
      %p281 = scmp.lt.s32.totalorder %s280, 1
      %s282 = scalar_select %p281, %s280, 1
      %s283 = smul.addr %s282, 4
      %s284 = scalar_lea.vmem %s0, %s283
      %s285 = smul.u32 2, %s20
      %s286 = smul.u32 2, %s20
      %p287 = scmp.lt.s32.totalorder %s286, 1
      %s288 = scalar_select %p287, %s286, 1
      %s289 = smul.addr %s288, 4
      %s290 = scalar_lea.vmem %s1, %s289
      %s291 = smul.u32 2, %s20
      %p292 = scmp.lt.s32.totalorder %s21, 4
      %s293 = scalar_select %p292, %s21, 4
      %s294 = smul.addr %s293, 8
      %s295 = smul.addr %s294, 4
      %s296 = scalar_lea.vmem %s3, %s295
      %p297 = scmp.lt.s32.totalorder %s21, 4
      %s298 = scalar_select %p297, %s21, 4
      %s299 = smul.addr %s298, 4
      %s300 = smul.addr %s299, 4
      %s301 = scalar_lea.vmem %s4, %s300
      %s302 = smul.u32 2, %s20
      %p303 = scmp.lt.s32.totalorder %s21, 4
      %s304 = scalar_select %p303, %s21, 4
      %p305 = scmp.lt.s32.totalorder %s302, 1
      %s306 = scalar_select %p305, %s302, 1
      %s307 = smul.addr %s304, 2
      %s308 = sadd.s32 %s306, %s307
      %s309 = smul.addr %s308, 4
      %s310 = scalar_lea.vmem %s5, %s309
      %s311 = smul.u32 2, %s20
      %v313 = vld [vmem:[%s284] sm:$0xf]
      %v314 = vld [vmem:[%s284 + $0x4] sm:$0xf]
      %v315 = vunpack.c.l.bf16 %v313
      %v316 = vunpack.c.l.bf16 %v314
      %v317 = vld [vmem:[%s290] sm:$0xf]
      %v318 = vld [vmem:[%s290 + $0x4] sm:$0xf]
      %v319 = vunpack.c.l.bf16 %v317
      %v320 = vunpack.c.l.bf16 %v318
      %v321 = vld [vmem:[%s2] sm:$0x1]
      %v323 = vperm.slane %v321, 0
      %v325 = vmul.f32 %v319, %v323
      %v326 = vmul.f32 %v320, %v323
      %v327 = vadd.f32 %v315, %v325
      %v328 = vadd.f32 %v316, %v326
      %v329 = vpack.c.bf16 %v328, %v327
      %v330 = vld [vmem:[%s296] sm:$0xf]
      %v331 = vld [vmem:[%s296 + $0x4] sm:$0xf]
      %v332 = vld [vmem:[%s296 + $0x8] sm:$0xf]
      %v333 = vld [vmem:[%s296 + $0xc] sm:$0xf]
      %v334 = vld [vmem:[%s296 + $0x10] sm:$0xf]
      %v335 = vld [vmem:[%s296 + $0x14] sm:$0xf]
      %v336 = vld [vmem:[%s296 + $0x18] sm:$0xf]
      %v337 = vld [vmem:[%s296 + $0x1c] sm:$0xf]
      %v346 = vunpack.c.l.b16 %v330
      %v347 = vunpack.c.l.b16 %v331
      %v348 = vunpack.c.l.b16 %v332
      %v349 = vunpack.c.l.b16 %v333
      %v350 = vunpack.c.l.b16 %v334
      %v351 = vunpack.c.l.b16 %v335
      %v352 = vunpack.c.l.b16 %v336
      %v353 = vunpack.c.l.b16 %v337
      %v354 = vpack.c.b16 %v347, %v346
      %v355 = vpack.c.b16 %v349, %v348
      %v356 = vpack.c.b16 %v351, %v350
      %v357 = vpack.c.b16 %v353, %v352
      %vm362 = vcmask 523264
      %v364 = vsel %vm362, %v329, 0
      %366 = vmatpush.bf16.msra.mxu0 0
      %367 = vmatpush.bf16.msra.mxu0 0
      %368 = vmatpush.bf16.msra.mxu0 0
      %369 = vmatpush.bf16.msra.mxu0 0
      %370 = vmatpush.bf16.msra.mxu0 %v357
      %371 = vmatpush.bf16.msra.mxu0 %v356
      %372 = vmatpush.bf16.msra.mxu0 %v355
      %373 = vmatpush.bf16.msra.mxu0 %v354
      %374 = vmatmul.bf16.gmra.mxu0 %v364
      %v375 = vpop.f32.mrf.mxu0
      %v376 = vadd.f32 0.0, %v375
      %v377 = vpop.f32.mrf.mxu0
      %v378 = vadd.f32 0.0, %v377
      %379 = vdwg.mxu0
      %v380 = vtanh.pop %v376
      %v381 = vtanh.pop %v378
      %v382 = vpack.c.bf16 %v381, %v380
      %v383 = vld [vmem:[%s301] sm:$0xf]
      %v384 = vld [vmem:[%s301 + $0x4] sm:$0xf]
      %v385 = vld [vmem:[%s301 + $0x8] sm:$0xf]
      %v386 = vld [vmem:[%s301 + $0xc] sm:$0xf]
      %v391 = vunpack.c.l.b16 %v383
      %v392 = vunpack.c.l.b16 %v384
      %v393 = vunpack.c.l.b16 %v385
      %v394 = vunpack.c.l.b16 %v386
      %v395 = vpack.c.b16 %v392, %v391
      %v396 = vpack.c.b16 %v394, %v393
      %vm399 = vcmask 261120
      %v401 = vsel %vm399, %v382, 0
      %403 = vmatpush.bf16.msra.mxu0 0
      %404 = vmatpush.bf16.msra.mxu0 0
      %405 = vmatpush.bf16.msra.mxu0 0
      %406 = vmatpush.bf16.msra.mxu0 0
      %407 = vmatpush.bf16.msra.mxu0 0
      %408 = vmatpush.bf16.msra.mxu0 0
      %409 = vmatpush.bf16.msra.mxu0 %v396
      %410 = vmatpush.bf16.msra.mxu0 %v395
      %411 = vmatmul.bf16.gmra.mxu0 %v401
      %v412 = vpop.f32.mrf.mxu0
      %v413 = vadd.f32 0.0, %v412
      %v414 = vpop.f32.mrf.mxu0
      %v415 = vadd.f32 0.0, %v414
      %416 = vdwg.mxu0
      %v417 = vpack.c.bf16 %v413, %v413
      %v418 = vpack.c.bf16 %v415, %v415
      %vm419 = vcmask 519168
      %420 = vst.msk [vmem:[%s310] sm:$0xf] %vm419, %v417
      %421 = vst.msk [vmem:[%s310 + $0x4] sm:$0xf] %vm419, %v418
      %s422 = smul.u32 2, %s20
      %p423 = scmp.lt.s32.totalorder %s21, 4
      %s424 = scalar_select %p423, %s21, 4
      %p425 = scmp.lt.s32.totalorder %s422, 1
      %s426 = scalar_select %p425, %s422, 1
      %s427 = smul.addr %s424, 2
      %s428 = sadd.s32 %s426, %s427
      %s429 = smul.addr %s428, 4
      %s430 = scalar_lea.vmem %s5, %s429
      // Predicated region
      $region41: #{_lambda_.16} parent=39 // pred_check
        %p431 = pneg %p173
      $region42: #{_lambda_.16} parent=39 // pred_check_branch
        %433 = sbr.rel (%p431) target = $region44
      $region43: #{_lambda_.16} parent=39 // pred_region
        %s434 = smul.u32 2, %s20
      $region44: #{_lambda_.16} parent=39 // pred_fallthru
        _
    $region40: #{_lambda_.16} parent=5 // pred_fallthru
      _
    %p435 = scmp.le.s32.totalorder 2, %s11
    // Predicated region
    $region45: #{_lambda_.16} parent=5 // pred_check
      %p436 = pneg %p435
    $region46: #{_lambda_.16} parent=5 // pred_check_branch
      %438 = sbr.rel (%p436) target = $region48
    $region47: #{_lambda_.16} parent=5 // pred_region
      %s439 = ssub.s32 %s11, 2
      // Predicated region
      $region49: #{_lambda_.16} parent=47 // pred_check
        %p440 = pneg %p179
      $region50: #{_lambda_.16} parent=47 // pred_check_branch
        %442 = sbr.rel (%p440) target = $region52
      $region51: #{_lambda_.16} parent=47 // pred_region
        %s443 = smul.u32 2, %s22
        %p444 = scmp.lt.s32.totalorder %s23, 4
        %s445 = scalar_select %p444, %s23, 4
        %p446 = scmp.lt.s32.totalorder %s443, 1
        %s447 = scalar_select %p446, %s443, 1
        %s448 = smul.addr %s445, 2
        %s449 = sadd.s32 %s447, %s448
        %s450 = smul.addr %s449, 4
        %s451 = scalar_lea.vmem %s5, %s450
      $region52: #{_lambda_.16} parent=47 // pred_fallthru
        _
    $region48: #{_lambda_.16} parent=5 // pred_fallthru
      _
  $region6: #{_lambda_.16} parent=0 // loop_footer
    %s15 = sadd.s32 1, %s11
  $region7: #{_lambda_.16} parent=0 // loop_footer_branch
    %10 = sbr.rel target = $region3
  $region8: #{_lambda_.16} parent=0 // loop_exit
    _

// kernel: _lambda_.14
$region0: #{_lambda_.14}
  #allocation0 [shape = 'u32[]', space=smem, size = 0x4, offset = 0x4, fixed_abs, tag = 'smem constant byte address 0x4 - core index']
  #allocation1 [shape = 'u32[72,128]{1,0:T(1,128)}', space=vmem, size = 0x9000, scoped, tag = 'internal scratch']
  %s0 = inlined_call_operand.vmem [shape: f32[16,64], index: 0, kind: input, shape index: {}]
  %s1 = inlined_call_operand.vmem [shape: f32[1,64], index: 1, kind: input, shape index: {}]
  %s2 = inlined_call_operand.vmem [shape: f32[1,64], index: 2, kind: input, shape index: {}]
  %s3 = inlined_call_operand.vmem [shape: f32[16,64], index: 3, kind: output, shape index: {}]
  %s4 = sld [smem:[#allocation0]]
  $region22: #{_lambda_.14} parent=0
    _
  %s6 = ssub.s32 1, %s4
  %s7 = scalar_select 0, %s6, %s4
  // Predicated region
  $region2: #{_lambda_.14} parent=0 // pred_check
    _
  $region3: #{_lambda_.14} parent=0 // pred_check_branch
    %9 = sbr.rel (0) target = $region5
  $region4: #{_lambda_.14} parent=0 // pred_region
    _
  $region5: #{_lambda_.14} parent=0 // pred_fallthru
    _
  // Predicated region
  $region6: #{_lambda_.14} parent=0 // pred_check
    _
  $region7: #{_lambda_.14} parent=0 // pred_check_branch
    %11 = sbr.rel (0) target = $region9
  $region8: #{_lambda_.14} parent=0 // pred_region
    _
  $region9: #{_lambda_.14} parent=0 // pred_fallthru
    _
  // Predicated region
  $region10: #{_lambda_.14} parent=0 // pred_check
    _
  $region11: #{_lambda_.14} parent=0 // pred_check_branch
    %13 = sbr.rel (0) target = $region13
  $region12: #{_lambda_.14} parent=0 // pred_region
    _
  $region13: #{_lambda_.14} parent=0 // pred_fallthru
    _
  %v14 = vld [vmem:[%s0] sm:$0xff]
  %v15 = vld [vmem:[%s0 + $0x8] sm:$0xff]
  %v18 = vrot.slane %v14, 1
  %v19 = vrot.slane %v14, 2
  %v20 = vrot.slane %v14, 3
  %v21 = vrot.slane %v14, 4
  %v22 = vrot.slane %v14, 5
  %v23 = vrot.slane %v14, 6
  %v24 = vrot.slane %v14, 7
  %v25 = vrot.slane %v15, 1
  %v26 = vrot.slane %v15, 2
  %v27 = vrot.slane %v15, 3
  %v28 = vrot.slane %v15, 4
  %v29 = vrot.slane %v15, 5
  %v30 = vrot.slane %v15, 6
  %v31 = vrot.slane %v15, 7
  %vm46 = vcmask 516096
  %v47 = vsel %vm46, %v14, 0.0
  %48 = vadd.xlane.f32.xlu0 %v47
  %v49 = vpop.xlane.xlu0 %48
  %v50 = vsel %vm46, %v18, 0.0
  %51 = vadd.xlane.f32.xlu0 %v50
  %v52 = vpop.xlane.xlu0 %51
  %v53 = vsel %vm46, %v19, 0.0
  %54 = vadd.xlane.f32.xlu0 %v53
  %v55 = vpop.xlane.xlu0 %54
  %v56 = vsel %vm46, %v20, 0.0
  %57 = vadd.xlane.f32.xlu0 %v56
  %v58 = vpop.xlane.xlu0 %57
  %v59 = vsel %vm46, %v21, 0.0
  %60 = vadd.xlane.f32.xlu0 %v59
  %v61 = vpop.xlane.xlu0 %60
  %v62 = vsel %vm46, %v22, 0.0
  %63 = vadd.xlane.f32.xlu0 %v62
  %v64 = vpop.xlane.xlu0 %63
  %v65 = vsel %vm46, %v23, 0.0
  %66 = vadd.xlane.f32.xlu0 %v65
  %v67 = vpop.xlane.xlu0 %66
  %v68 = vsel %vm46, %v24, 0.0
  %69 = vadd.xlane.f32.xlu0 %v68
  %v70 = vpop.xlane.xlu0 %69
  %v71 = vsel %vm46, %v15, 0.0
  %72 = vadd.xlane.f32.xlu0 %v71
  %v73 = vpop.xlane.xlu0 %72
  %v74 = vsel %vm46, %v25, 0.0
  %75 = vadd.xlane.f32.xlu0 %v74
  %v76 = vpop.xlane.xlu0 %75
  %v77 = vsel %vm46, %v26, 0.0
  %78 = vadd.xlane.f32.xlu0 %v77
  %v79 = vpop.xlane.xlu0 %78
  %v80 = vsel %vm46, %v27, 0.0
  %81 = vadd.xlane.f32.xlu0 %v80
  %v82 = vpop.xlane.xlu0 %81
  %v83 = vsel %vm46, %v28, 0.0
  %84 = vadd.xlane.f32.xlu0 %v83
  %v85 = vpop.xlane.xlu0 %84
  %v86 = vsel %vm46, %v29, 0.0
  %87 = vadd.xlane.f32.xlu0 %v86
  %v88 = vpop.xlane.xlu0 %87
  %v89 = vsel %vm46, %v30, 0.0
  %90 = vadd.xlane.f32.xlu0 %v89
  %v91 = vpop.xlane.xlu0 %90
  %v92 = vsel %vm46, %v31, 0.0
  %93 = vadd.xlane.f32.xlu0 %v92
  %v94 = vpop.xlane.xlu0 %93
  %v95 = vrcp.pop 64.0
  %v96 = vmul.f32 64.0, %v95
  %v97 = vsub.f32 1.0, %v96
  %v98 = vmul.f32 %v95, %v97
  %v99 = vadd.f32 %v95, %v98
  %vm100 = vweird.f32 %v95
  %v101 = vsel %vm100, %v95, %v99
  %v102 = vmul.f32 %v49, %v101
  %v103 = vmul.f32 %v52, %v101
  %v104 = vmul.f32 %v55, %v101
  %v105 = vmul.f32 %v58, %v101
  %v106 = vmul.f32 %v61, %v101
  %v107 = vmul.f32 %v64, %v101
  %v108 = vmul.f32 %v67, %v101
  %v109 = vmul.f32 %v70, %v101
  %v110 = vmul.f32 %v73, %v101
  %v111 = vmul.f32 %v76, %v101
  %v112 = vmul.f32 %v79, %v101
  %v113 = vmul.f32 %v82, %v101
  %v114 = vmul.f32 %v85, %v101
  %v115 = vmul.f32 %v88, %v101
  %v116 = vmul.f32 %v91, %v101
  %v117 = vmul.f32 %v94, %v101
  %v118 = vsub.f32 %v14, %v102
  %v119 = vsub.f32 %v18, %v103
  %v120 = vsub.f32 %v19, %v104
  %v121 = vsub.f32 %v20, %v105
  %v122 = vsub.f32 %v21, %v106
  %v123 = vsub.f32 %v22, %v107
  %v124 = vsub.f32 %v23, %v108
  %v125 = vsub.f32 %v24, %v109
  %v126 = vsub.f32 %v15, %v110
  %v127 = vsub.f32 %v25, %v111
  %v128 = vsub.f32 %v26, %v112
  %v129 = vsub.f32 %v27, %v113
  %v130 = vsub.f32 %v28, %v114
  %v131 = vsub.f32 %v29, %v115
  %v132 = vsub.f32 %v30, %v116
  %v133 = vsub.f32 %v31, %v117
  %v134 = vmul.f32 %v118, %v118
  %v135 = vmul.f32 %v119, %v119
  %v136 = vmul.f32 %v120, %v120
  %v137 = vmul.f32 %v121, %v121
  %v138 = vmul.f32 %v122, %v122
  %v139 = vmul.f32 %v123, %v123
  %v140 = vmul.f32 %v124, %v124
  %v141 = vmul.f32 %v125, %v125
  %v142 = vmul.f32 %v126, %v126
  %v143 = vmul.f32 %v127, %v127
  %v144 = vmul.f32 %v128, %v128
  %v145 = vmul.f32 %v129, %v129
  %v146 = vmul.f32 %v130, %v130
  %v147 = vmul.f32 %v131, %v131
  %v148 = vmul.f32 %v132, %v132
  %v149 = vmul.f32 %v133, %v133
  %v150 = vsel %vm46, %v134, 0.0
  %151 = vadd.xlane.f32.xlu0 %v150
  %v152 = vpop.xlane.xlu0 %151
  %v153 = vsel %vm46, %v135, 0.0
  %154 = vadd.xlane.f32.xlu0 %v153
  %v155 = vpop.xlane.xlu0 %154
  %v156 = vsel %vm46, %v136, 0.0
  %157 = vadd.xlane.f32.xlu0 %v156
  %v158 = vpop.xlane.xlu0 %157
  %v159 = vsel %vm46, %v137, 0.0
  %160 = vadd.xlane.f32.xlu0 %v159
  %v161 = vpop.xlane.xlu0 %160
  %v162 = vsel %vm46, %v138, 0.0
  %163 = vadd.xlane.f32.xlu0 %v162
  %v164 = vpop.xlane.xlu0 %163
  %v165 = vsel %vm46, %v139, 0.0
  %166 = vadd.xlane.f32.xlu0 %v165
  %v167 = vpop.xlane.xlu0 %166
  %v168 = vsel %vm46, %v140, 0.0
  %169 = vadd.xlane.f32.xlu0 %v168
  %v170 = vpop.xlane.xlu0 %169
  %v171 = vsel %vm46, %v141, 0.0
  %172 = vadd.xlane.f32.xlu0 %v171
  %v173 = vpop.xlane.xlu0 %172
  %v174 = vsel %vm46, %v142, 0.0
  %175 = vadd.xlane.f32.xlu0 %v174
  %v176 = vpop.xlane.xlu0 %175
  %v177 = vsel %vm46, %v143, 0.0
  %178 = vadd.xlane.f32.xlu0 %v177
  %v179 = vpop.xlane.xlu0 %178
  %v180 = vsel %vm46, %v144, 0.0
  %181 = vadd.xlane.f32.xlu0 %v180
  %v182 = vpop.xlane.xlu0 %181
  %v183 = vsel %vm46, %v145, 0.0
  %184 = vadd.xlane.f32.xlu0 %v183
  %v185 = vpop.xlane.xlu0 %184
  %v186 = vsel %vm46, %v146, 0.0
  %187 = vadd.xlane.f32.xlu0 %v186
  %v188 = vpop.xlane.xlu0 %187
  %v189 = vsel %vm46, %v147, 0.0
  %190 = vadd.xlane.f32.xlu0 %v189
  %v191 = vpop.xlane.xlu0 %190
  %v192 = vsel %vm46, %v148, 0.0
  %193 = vadd.xlane.f32.xlu0 %v192
  %v194 = vpop.xlane.xlu0 %193
  %v195 = vsel %vm46, %v149, 0.0
  %196 = vadd.xlane.f32.xlu0 %v195
  %v197 = vpop.xlane.xlu0 %196
  %v198 = vmul.f32 %v152, %v101
  %v199 = vmul.f32 %v155, %v101
  %v200 = vmul.f32 %v158, %v101
  %v201 = vmul.f32 %v161, %v101
  %v202 = vmul.f32 %v164, %v101
  %v203 = vmul.f32 %v167, %v101
  %v204 = vmul.f32 %v170, %v101
  %v205 = vmul.f32 %v173, %v101
  %v206 = vmul.f32 %v176, %v101
  %v207 = vmul.f32 %v179, %v101
  %v208 = vmul.f32 %v182, %v101
  %v209 = vmul.f32 %v185, %v101
  %v210 = vmul.f32 %v188, %v101
  %v211 = vmul.f32 %v191, %v101
  %v212 = vmul.f32 %v194, %v101
  %v213 = vmul.f32 %v197, %v101
  %v214 = vadd.f32 %v198, 1e-05
  %v215 = vadd.f32 %v199, 1e-05
  %v216 = vadd.f32 %v200, 1e-05
  %v217 = vadd.f32 %v201, 1e-05
  %v218 = vadd.f32 %v202, 1e-05
  %v219 = vadd.f32 %v203, 1e-05
  %v220 = vadd.f32 %v204, 1e-05
  %v221 = vadd.f32 %v205, 1e-05
  %v222 = vadd.f32 %v206, 1e-05
  %v223 = vadd.f32 %v207, 1e-05
  %v224 = vadd.f32 %v208, 1e-05
  %v225 = vadd.f32 %v209, 1e-05
  %v226 = vadd.f32 %v210, 1e-05
  %v227 = vadd.f32 %v211, 1e-05
  %v228 = vadd.f32 %v212, 1e-05
  %v229 = vadd.f32 %v213, 1e-05
  %v230 = vrsqrt.pop %v214
  %v231 = vmul.f32 %v230, %v214
  %v232 = vmul.f32 %v231, %v230
  %v233 = vmul.f32 0.5, %v232
  %v234 = vsub.f32 1.5, %v233
  %v235 = vmul.f32 %v230, %v234
  %vm236 = vweird.f32 %v214
  %vm237 = vweird.f32 %v230
  %vm238 = vmor %vm236, %vm237
  %v239 = vsel %vm238, %v230, %v235
  %v240 = vrsqrt.pop %v215
  %v241 = vmul.f32 %v240, %v215
  %v242 = vmul.f32 %v241, %v240
  %v243 = vmul.f32 0.5, %v242
  %v244 = vsub.f32 1.5, %v243
  %v245 = vmul.f32 %v240, %v244
  %vm246 = vweird.f32 %v215
  %vm247 = vweird.f32 %v240
  %vm248 = vmor %vm246, %vm247
  %v249 = vsel %vm248, %v240, %v245
  %v250 = vrsqrt.pop %v216
  %v251 = vmul.f32 %v250, %v216
  %v252 = vmul.f32 %v251, %v250
  %v253 = vmul.f32 0.5, %v252
  %v254 = vsub.f32 1.5, %v253
  %v255 = vmul.f32 %v250, %v254
  %vm256 = vweird.f32 %v216
  %vm257 = vweird.f32 %v250
  %vm258 = vmor %vm256, %vm257
  %v259 = vsel %vm258, %v250, %v255
  %v260 = vrsqrt.pop %v217
  %v261 = vmul.f32 %v260, %v217
  %v262 = vmul.f32 %v261, %v260
  %v263 = vmul.f32 0.5, %v262
  %v264 = vsub.f32 1.5, %v263
  %v265 = vmul.f32 %v260, %v264
  %vm266 = vweird.f32 %v217
  %vm267 = vweird.f32 %v260
  %vm268 = vmor %vm266, %vm267
  %v269 = vsel %vm268, %v260, %v265
  %v270 = vrsqrt.pop %v218
  %v271 = vmul.f32 %v270, %v218
  %v272 = vmul.f32 %v271, %v270
  %v273 = vmul.f32 0.5, %v272
  %v274 = vsub.f32 1.5, %v273
  %v275 = vmul.f32 %v270, %v274
  %vm276 = vweird.f32 %v218
  %vm277 = vweird.f32 %v270
  %vm278 = vmor %vm276, %vm277
  %v279 = vsel %vm278, %v270, %v275
  %v280 = vrsqrt.pop %v219
  %v281 = vmul.f32 %v280, %v219
  %v282 = vmul.f32 %v281, %v280
  %v283 = vmul.f32 0.5, %v282
  %v284 = vsub.f32 1.5, %v283
  %v285 = vmul.f32 %v280, %v284
  %vm286 = vweird.f32 %v219
  %vm287 = vweird.f32 %v280
  %vm288 = vmor %vm286, %vm287
  %v289 = vsel %vm288, %v280, %v285
  %v290 = vrsqrt.pop %v220
  %v291 = vmul.f32 %v290, %v220
  %v292 = vmul.f32 %v291, %v290
  %v293 = vmul.f32 0.5, %v292
  %v294 = vsub.f32 1.5, %v293
  %v295 = vmul.f32 %v290, %v294
  %vm296 = vweird.f32 %v220
  %vm297 = vweird.f32 %v290
  %vm298 = vmor %vm296, %vm297
  %v299 = vsel %vm298, %v290, %v295
  %v300 = vrsqrt.pop %v221
  %v301 = vmul.f32 %v300, %v221
  %v302 = vmul.f32 %v301, %v300
  %v303 = vmul.f32 0.5, %v302
  %v304 = vsub.f32 1.5, %v303
  %v305 = vmul.f32 %v300, %v304
  %vm306 = vweird.f32 %v221
  %vm307 = vweird.f32 %v300
  %vm308 = vmor %vm306, %vm307
  %v309 = vsel %vm308, %v300, %v305
  %v310 = vrsqrt.pop %v222
  %v311 = vmul.f32 %v310, %v222
  %v312 = vmul.f32 %v311, %v310
  %v313 = vmul.f32 0.5, %v312
  %v314 = vsub.f32 1.5, %v313
  %v315 = vmul.f32 %v310, %v314
  %vm316 = vweird.f32 %v222
  %vm317 = vweird.f32 %v310
  %vm318 = vmor %vm316, %vm317
  %v319 = vsel %vm318, %v310, %v315
  %v320 = vrsqrt.pop %v223
  %v321 = vmul.f32 %v320, %v223
  %v322 = vmul.f32 %v321, %v320
  %v323 = vmul.f32 0.5, %v322
  %v324 = vsub.f32 1.5, %v323
  %v325 = vmul.f32 %v320, %v324
  %vm326 = vweird.f32 %v223
  %vm327 = vweird.f32 %v320
  %vm328 = vmor %vm326, %vm327
  %v329 = vsel %vm328, %v320, %v325
  %v330 = vrsqrt.pop %v224
  %v331 = vmul.f32 %v330, %v224
  %v332 = vmul.f32 %v331, %v330
  %v333 = vmul.f32 0.5, %v332
  %v334 = vsub.f32 1.5, %v333
  %v335 = vmul.f32 %v330, %v334
  %vm336 = vweird.f32 %v224
  %vm337 = vweird.f32 %v330
  %vm338 = vmor %vm336, %vm337
  %v339 = vsel %vm338, %v330, %v335
  %v340 = vrsqrt.pop %v225
  %v341 = vmul.f32 %v340, %v225
  %v342 = vmul.f32 %v341, %v340
  %v343 = vmul.f32 0.5, %v342
  %v344 = vsub.f32 1.5, %v343
  %v345 = vmul.f32 %v340, %v344
  %vm346 = vweird.f32 %v225
  %vm347 = vweird.f32 %v340
  %vm348 = vmor %vm346, %vm347
  %v349 = vsel %vm348, %v340, %v345
  %v350 = vrsqrt.pop %v226
  %v351 = vmul.f32 %v350, %v226
  %v352 = vmul.f32 %v351, %v350
  %v353 = vmul.f32 0.5, %v352
  %v354 = vsub.f32 1.5, %v353
  %v355 = vmul.f32 %v350, %v354
  %vm356 = vweird.f32 %v226
  %vm357 = vweird.f32 %v350
  %vm358 = vmor %vm356, %vm357
  %v359 = vsel %vm358, %v350, %v355
  %v360 = vrsqrt.pop %v227
  %v361 = vmul.f32 %v360, %v227
  %v362 = vmul.f32 %v361, %v360
  %v363 = vmul.f32 0.5, %v362
  %v364 = vsub.f32 1.5, %v363
  %v365 = vmul.f32 %v360, %v364
  %vm366 = vweird.f32 %v227
  %vm367 = vweird.f32 %v360
  %vm368 = vmor %vm366, %vm367
  %v369 = vsel %vm368, %v360, %v365
  %v370 = vrsqrt.pop %v228
  %v371 = vmul.f32 %v370, %v228
  %v372 = vmul.f32 %v371, %v370
  %v373 = vmul.f32 0.5, %v372
  %v374 = vsub.f32 1.5, %v373
  %v375 = vmul.f32 %v370, %v374
  %vm376 = vweird.f32 %v228
  %vm377 = vweird.f32 %v370
  %vm378 = vmor %vm376, %vm377
  %v379 = vsel %vm378, %v370, %v375
  %v380 = vrsqrt.pop %v229
  %v381 = vmul.f32 %v380, %v229
  %v382 = vmul.f32 %v381, %v380
  %v383 = vmul.f32 0.5, %v382
  %v384 = vsub.f32 1.5, %v383
  %v385 = vmul.f32 %v380, %v384
  %vm386 = vweird.f32 %v229
  %vm387 = vweird.f32 %v380
  %vm388 = vmor %vm386, %vm387
  %v389 = vsel %vm388, %v380, %v385
  %v390 = vmul.f32 %v118, %v239
  %v391 = vmul.f32 %v119, %v249
  %v392 = vmul.f32 %v120, %v259
  %v393 = vmul.f32 %v121, %v269
  %v394 = vmul.f32 %v122, %v279
  %v395 = vmul.f32 %v123, %v289
  %v396 = vmul.f32 %v124, %v299
  %v397 = vmul.f32 %v125, %v309
  %v398 = vmul.f32 %v126, %v319
  %v399 = vmul.f32 %v127, %v329
  %v400 = vmul.f32 %v128, %v339
  %v401 = vmul.f32 %v129, %v349
  %v402 = vmul.f32 %v130, %v359
  %v403 = vmul.f32 %v131, %v369
  %v404 = vmul.f32 %v132, %v379
  %v405 = vmul.f32 %v133, %v389
  %v406 = vld [vmem:[%s1] sm:$0x1]
  %v408 = vperm.slane %v406, 0
  %v410 = vrot.slane %v408, 1
  %v411 = vrot.slane %v408, 2
  %v412 = vrot.slane %v408, 3
  %v413 = vrot.slane %v408, 4
  %v414 = vrot.slane %v408, 5
  %v415 = vrot.slane %v408, 6
  %v416 = vrot.slane %v408, 7
  %v424 = vmul.f32 %v390, %v408
  %v425 = vmul.f32 %v391, %v410
  %v426 = vmul.f32 %v392, %v411
  %v427 = vmul.f32 %v393, %v412
  %v428 = vmul.f32 %v394, %v413
  %v429 = vmul.f32 %v395, %v414
  %v430 = vmul.f32 %v396, %v415
  %v431 = vmul.f32 %v397, %v416
  %v432 = vmul.f32 %v398, %v408
  %v433 = vmul.f32 %v399, %v410
  %v434 = vmul.f32 %v400, %v411
  %v435 = vmul.f32 %v401, %v412
  %v436 = vmul.f32 %v402, %v413
  %v437 = vmul.f32 %v403, %v414
  %v438 = vmul.f32 %v404, %v415
  %v439 = vmul.f32 %v405, %v416
  %v440 = vld [vmem:[%s2] sm:$0x1]
  %v442 = vperm.slane %v440, 0
  %v444 = vrot.slane %v442, 1
  %v445 = vrot.slane %v442, 2
  %v446 = vrot.slane %v442, 3
  %v447 = vrot.slane %v442, 4
  %v448 = vrot.slane %v442, 5
  %v449 = vrot.slane %v442, 6
  %v450 = vrot.slane %v442, 7
  %v458 = vadd.f32 %v424, %v442
  %v459 = vadd.f32 %v425, %v444
  %v460 = vadd.f32 %v426, %v445
  %v461 = vadd.f32 %v427, %v446
  %v462 = vadd.f32 %v428, %v447
  %v463 = vadd.f32 %v429, %v448
  %v464 = vadd.f32 %v430, %v449
  %v465 = vadd.f32 %v431, %v450
  %v466 = vadd.f32 %v432, %v442
  %v467 = vadd.f32 %v433, %v444
  %v468 = vadd.f32 %v434, %v445
  %v469 = vadd.f32 %v435, %v446
  %v470 = vadd.f32 %v436, %v447
  %v471 = vadd.f32 %v437, %v448
  %v472 = vadd.f32 %v438, %v449
  %v473 = vadd.f32 %v439, %v450
  %490 = vst [vmem:[#allocation1] ss:$9 sm:$0xff] %v458
  %s491 = scalar_lea.vmem [#allocation1], 1
  %492 = vst [vmem:[%s491] ss:$9 sm:$0xff] %v459
  %s493 = scalar_lea.vmem [#allocation1], 2
  %494 = vst [vmem:[%s493] ss:$9 sm:$0xff] %v460
  %s495 = scalar_lea.vmem [#allocation1], 3
  %496 = vst [vmem:[%s495] ss:$9 sm:$0xff] %v461
  %s497 = scalar_lea.vmem [#allocation1], 4
  %498 = vst [vmem:[%s497] ss:$9 sm:$0xff] %v462
  %s499 = scalar_lea.vmem [#allocation1], 5
  %500 = vst [vmem:[%s499] ss:$9 sm:$0xff] %v463
  %s501 = scalar_lea.vmem [#allocation1], 6
  %502 = vst [vmem:[%s501] ss:$9 sm:$0xff] %v464
  %s503 = scalar_lea.vmem [#allocation1], 7
  %504 = vst [vmem:[%s503] ss:$9 sm:$0xff] %v465
  %v505 = vld [vmem:[#allocation1] sm:$0xff]
  %506 = vst [vmem:[#allocation1] ss:$9 sm:$0xff] %v466
  %507 = vst [vmem:[%s491] ss:$9 sm:$0xff] %v467
  %508 = vst [vmem:[%s493] ss:$9 sm:$0xff] %v468
  %509 = vst [vmem:[%s495] ss:$9 sm:$0xff] %v469
  %510 = vst [vmem:[%s497] ss:$9 sm:$0xff] %v470
  %511 = vst [vmem:[%s499] ss:$9 sm:$0xff] %v471
  %512 = vst [vmem:[%s501] ss:$9 sm:$0xff] %v472
  %513 = vst [vmem:[%s503] ss:$9 sm:$0xff] %v473
  %v514 = vld [vmem:[#allocation1] sm:$0xff]
  %vm517 = vcmask 523264
  %518 = vst.msk [vmem:[%s3] sm:$0xff] %vm517, %v505
  %519 = vst.msk [vmem:[%s3 + $0x8] sm:$0xff] %vm517, %v514
  // Predicated region
  $region14: #{_lambda_.14} parent=0 // pred_check
    _
  $region15: #{_lambda_.14} parent=0 // pred_check_branch
    %521 = sbr.rel (0) target = $region17
  $region16: #{_lambda_.14} parent=0 // pred_region
    _
  $region17: #{_lambda_.14} parent=0 // pred_fallthru
    _
  // Predicated region
  $region18: #{_lambda_.14} parent=0 // pred_check
    _
  $region19: #{_lambda_.14} parent=0 // pred_check_branch
    %523 = sbr.rel (0) target = $region21
  $region20: #{_lambda_.14} parent=0 // pred_region
    _
  $region21: #{_lambda_.14} parent=0 // pred_fallthru
    _

// kernel: _lambda_.19
$region0: #{_lambda_.19}
  #allocation0 [shape = 'u32[]', space=smem, size = 0x4, offset = 0x4, fixed_abs, tag = 'smem constant byte address 0x4 - core index']
  #allocation1 [shape = 'u32[72,128]{1,0:T(1,128)}', space=vmem, size = 0x9000, scoped, tag = 'internal scratch']
  #allocation2 [shape = 'f32[16,64]{1,0:T(8,128)}', space=vmem, size = 0x2000, scoped, tag = 'scratch operand']
  %s0 = inlined_call_operand.vmem [shape: bf16[16,64], index: 0, kind: input, shape index: {}]
  %s1 = inlined_call_operand.vmem [shape: bf16[16,64], index: 1, kind: input, shape index: {}]
  %s2 = inlined_call_operand.vmem [shape: f32[1,64], index: 2, kind: input, shape index: {}]
  %s3 = inlined_call_operand.vmem [shape: bf16[5,16,64], index: 3, kind: input, shape index: {}]
  %s4 = inlined_call_operand.vmem [shape: bf16[64,64], index: 4, kind: input, shape index: {}]
  %s5 = inlined_call_operand.vmem [shape: bf16[16,64], index: 5, kind: output, shape index: {}]
  %s6 = sld [smem:[#allocation0]]
  $region38: #{_lambda_.19} parent=0
    _
  %s8 = ssub.s32 1, %s6
  %s9 = scalar_select 0, %s8, %s6
  // Predicated region
  $region2: #{_lambda_.19} parent=0 // pred_check
    _
  $region3: #{_lambda_.19} parent=0 // pred_check_branch
    %11 = sbr.rel (0) target = $region5
  $region4: #{_lambda_.19} parent=0 // pred_region
    _
  $region5: #{_lambda_.19} parent=0 // pred_fallthru
    _
  // Predicated region
  $region6: #{_lambda_.19} parent=0 // pred_check
    _
  $region7: #{_lambda_.19} parent=0 // pred_check_branch
    %13 = sbr.rel (0) target = $region9
  $region8: #{_lambda_.19} parent=0 // pred_region
    _
  $region9: #{_lambda_.19} parent=0 // pred_fallthru
    _
  // Predicated region
  $region10: #{_lambda_.19} parent=0 // pred_check
    _
  $region11: #{_lambda_.19} parent=0 // pred_check_branch
    %15 = sbr.rel (0) target = $region13
  $region12: #{_lambda_.19} parent=0 // pred_region
    _
  $region13: #{_lambda_.19} parent=0 // pred_fallthru
    _
  // Predicated region
  $region14: #{_lambda_.19} parent=0 // pred_check
    _
  $region15: #{_lambda_.19} parent=0 // pred_check_branch
    %17 = sbr.rel (0) target = $region17
  $region16: #{_lambda_.19} parent=0 // pred_region
    %s18 = scalar_lea.vmem %s3, 16
  $region17: #{_lambda_.19} parent=0 // pred_fallthru
    _
  // Predicated region
  $region18: #{_lambda_.19} parent=0 // pred_check
    _
  $region19: #{_lambda_.19} parent=0 // pred_check_branch
    %20 = sbr.rel (0) target = $region21
  $region20: #{_lambda_.19} parent=0 // pred_region
    _
  $region21: #{_lambda_.19} parent=0 // pred_fallthru
    _
  %s21 = scalar_lea.vmem %s3, 16
  %s22 = scalar_lea.vmem %s3, 16
  %p24 = scmp.eq.s32.totalorder 0, 0
  // Predicated region
  $region22: #{_lambda_.19} parent=0 // pred_check
    %p25 = pneg %p24
  $region23: #{_lambda_.19} parent=0 // pred_check_branch
    %27 = sbr.rel (%p25) target = $region25
  $region24: #{_lambda_.19} parent=0 // pred_region
    %vm28 = vcmask 523264
    %29 = vst.msk [vmem:[#allocation2] sm:$0xff] %vm28, 0.0
    %30 = vst.msk [vmem:[#allocation2 + $0x8] sm:$0xff] %vm28, 0.0
  $region25: #{_lambda_.19} parent=0 // pred_fallthru
    _
  %v31 = vld [vmem:[%s2] sm:$0x1]
  %v32 = vld [vmem:[%s22] sm:$0xf]
  %v33 = vld [vmem:[%s22 + $0x4] sm:$0xf]
  %v34 = vunpack.c.l.bf16 %v32
  %v35 = vunpack.c.l.bf16 %v33
  %v37 = vperm.slane %v31, 0
  %v39 = vadd.f32 %v37, %v34
  %v40 = vadd.f32 %v37, %v35
  %v41 = vld [vmem:[%s0] sm:$0xf]
  %v42 = vld [vmem:[%s0 + $0x4] sm:$0xf]
  %v43 = vunpack.c.l.bf16 %v41
  %v44 = vunpack.c.l.bf16 %v42
  %v45 = vld [vmem:[%s1] sm:$0xf]
  %v46 = vld [vmem:[%s1 + $0x4] sm:$0xf]
  %v47 = vunpack.c.l.bf16 %v45
  %v48 = vunpack.c.l.bf16 %v46
  %v49 = vmul.f32 %v47, %v39
  %v50 = vmul.f32 %v48, %v40
  %v51 = vadd.f32 %v43, %v49
  %v52 = vadd.f32 %v44, %v50
  %v53 = vld [vmem:[#allocation2] sm:$0xff]
  %v54 = vld [vmem:[#allocation2 + $0x8] sm:$0xff]
  %v55 = vpack.c.bf16 %v52, %v51
  %v56 = vld [vmem:[%s4] sm:$0xf]
  %v57 = vld [vmem:[%s4 + $0x4] sm:$0xf]
  %v58 = vld [vmem:[%s4 + $0x8] sm:$0xf]
  %v59 = vld [vmem:[%s4 + $0xc] sm:$0xf]
  %v60 = vld [vmem:[%s4 + $0x10] sm:$0xf]
  %v61 = vld [vmem:[%s4 + $0x14] sm:$0xf]
  %v62 = vld [vmem:[%s4 + $0x18] sm:$0xf]
  %v63 = vld [vmem:[%s4 + $0x1c] sm:$0xf]
  %v72 = vunpack.c.l.b16 %v56
  %v73 = vunpack.c.l.b16 %v57
  %v74 = vunpack.c.l.b16 %v58
  %v75 = vunpack.c.l.b16 %v59
  %v76 = vunpack.c.l.b16 %v60
  %v77 = vunpack.c.l.b16 %v61
  %v78 = vunpack.c.l.b16 %v62
  %v79 = vunpack.c.l.b16 %v63
  %v80 = vpack.c.b16 %v73, %v72
  %v81 = vpack.c.b16 %v75, %v74
  %v82 = vpack.c.b16 %v77, %v76
  %v83 = vpack.c.b16 %v79, %v78
  %vm88 = vcmask 523264
  %v90 = vsel %vm88, %v55, 0
  %92 = vmatpush.bf16.msra.mxu0 0
  %93 = vmatpush.bf16.msra.mxu0 0
  %94 = vmatpush.bf16.msra.mxu0 0
  %95 = vmatpush.bf16.msra.mxu0 0
  %96 = vmatpush.bf16.msra.mxu0 %v83
  %97 = vmatpush.bf16.msra.mxu0 %v82
  %98 = vmatpush.bf16.msra.mxu0 %v81
  %99 = vmatpush.bf16.msra.mxu0 %v80
  %100 = vmatmul.bf16.gmra.mxu0 %v90
  %v101 = vpop.f32.mrf.mxu0
  %v102 = vadd.f32 0.0, %v101
  %v103 = vpop.f32.mrf.mxu0
  %v104 = vadd.f32 0.0, %v103
  %105 = vdwg.mxu0
  %v106 = vadd.f32 %v53, %v102
  %v107 = vadd.f32 %v54, %v104
  %108 = vst.msk [vmem:[#allocation2] sm:$0xff] %vm88, %v106
  %109 = vst.msk [vmem:[#allocation2 + $0x8] sm:$0xff] %vm88, %v107
  // Predicated region
  $region26: #{_lambda_.19} parent=0 // pred_check
    %p110 = pneg %p24
  $region27: #{_lambda_.19} parent=0 // pred_check_branch
    %112 = sbr.rel (%p110) target = $region29
  $region28: #{_lambda_.19} parent=0 // pred_region
    %v113 = vld [vmem:[#allocation2] sm:$0xff]
    %v114 = vld [vmem:[#allocation2 + $0x8] sm:$0xff]
    %v115 = vpack.c.bf16 %v113, %v113
    %v116 = vpack.c.bf16 %v114, %v114
    %vm117 = vcmask 519168
    %118 = vst.msk [vmem:[%s5] sm:$0xf] %vm117, %v115
    %119 = vst.msk [vmem:[%s5 + $0x4] sm:$0xf] %vm117, %v116
  $region29: #{_lambda_.19} parent=0 // pred_fallthru
    _
  // Predicated region
  $region30: #{_lambda_.19} parent=0 // pred_check
    _
  $region31: #{_lambda_.19} parent=0 // pred_check_branch
    %121 = sbr.rel (0) target = $region33
  $region32: #{_lambda_.19} parent=0 // pred_region
    _
  $region33: #{_lambda_.19} parent=0 // pred_fallthru
    _
  // Predicated region
  $region34: #{_lambda_.19} parent=0 // pred_check
    _
  $region35: #{_lambda_.19} parent=0 // pred_check_branch
    %123 = sbr.rel (0) target = $region37
  $region36: #{_lambda_.19} parent=0 // pred_region
    _
  $region37: #{_lambda_.19} parent=0 // pred_fallthru
    _

// kernel: _lambda_.18
$region0: #{_lambda_.18}
  #allocation0 [shape = 'u32[]', space=smem, size = 0x4, offset = 0x4, fixed_abs, tag = 'smem constant byte address 0x4 - core index']
  #allocation1 [shape = 'u32[72,128]{1,0:T(1,128)}', space=vmem, size = 0x9000, scoped, tag = 'internal scratch']
  #allocation2 [shape = 'f32[16,64]{1,0:T(8,128)}', space=vmem, size = 0x2000, scoped, tag = 'scratch operand']
  %s0 = inlined_call_operand.vmem [shape: bf16[16,64], index: 0, kind: input, shape index: {}]
  %s1 = inlined_call_operand.vmem [shape: bf16[16,64], index: 1, kind: input, shape index: {}]
  %s2 = inlined_call_operand.vmem [shape: f32[1,64], index: 2, kind: input, shape index: {}]
  %s3 = inlined_call_operand.vmem [shape: bf16[5,16,64], index: 3, kind: input, shape index: {}]
  %s4 = inlined_call_operand.vmem [shape: bf16[64,64], index: 4, kind: input, shape index: {}]
  %s5 = inlined_call_operand.vmem [shape: bf16[16,64], index: 5, kind: output, shape index: {}]
  %s6 = sld [smem:[#allocation0]]
  $region38: #{_lambda_.18} parent=0
    _
  %s8 = ssub.s32 1, %s6
  %s9 = scalar_select 0, %s8, %s6
  // Predicated region
  $region2: #{_lambda_.18} parent=0 // pred_check
    _
  $region3: #{_lambda_.18} parent=0 // pred_check_branch
    %11 = sbr.rel (0) target = $region5
  $region4: #{_lambda_.18} parent=0 // pred_region
    _
  $region5: #{_lambda_.18} parent=0 // pred_fallthru
    _
  // Predicated region
  $region6: #{_lambda_.18} parent=0 // pred_check
    _
  $region7: #{_lambda_.18} parent=0 // pred_check_branch
    %13 = sbr.rel (0) target = $region9
  $region8: #{_lambda_.18} parent=0 // pred_region
    _
  $region9: #{_lambda_.18} parent=0 // pred_fallthru
    _
  // Predicated region
  $region10: #{_lambda_.18} parent=0 // pred_check
    _
  $region11: #{_lambda_.18} parent=0 // pred_check_branch
    %15 = sbr.rel (0) target = $region13
  $region12: #{_lambda_.18} parent=0 // pred_region
    _
  $region13: #{_lambda_.18} parent=0 // pred_fallthru
    _
  // Predicated region
  $region14: #{_lambda_.18} parent=0 // pred_check
    _
  $region15: #{_lambda_.18} parent=0 // pred_check_branch
    %17 = sbr.rel (0) target = $region17
  $region16: #{_lambda_.18} parent=0 // pred_region
    %s18 = scalar_lea.vmem %s3, 8
  $region17: #{_lambda_.18} parent=0 // pred_fallthru
    _
  // Predicated region
  $region18: #{_lambda_.18} parent=0 // pred_check
    _
  $region19: #{_lambda_.18} parent=0 // pred_check_branch
    %20 = sbr.rel (0) target = $region21
  $region20: #{_lambda_.18} parent=0 // pred_region
    _
  $region21: #{_lambda_.18} parent=0 // pred_fallthru
    _
  %s21 = scalar_lea.vmem %s3, 8
  %s22 = scalar_lea.vmem %s3, 8
  %p24 = scmp.eq.s32.totalorder 0, 0
  // Predicated region
  $region22: #{_lambda_.18} parent=0 // pred_check
    %p25 = pneg %p24
  $region23: #{_lambda_.18} parent=0 // pred_check_branch
    %27 = sbr.rel (%p25) target = $region25
  $region24: #{_lambda_.18} parent=0 // pred_region
    %vm28 = vcmask 523264
    %29 = vst.msk [vmem:[#allocation2] sm:$0xff] %vm28, 0.0
    %30 = vst.msk [vmem:[#allocation2 + $0x8] sm:$0xff] %vm28, 0.0
  $region25: #{_lambda_.18} parent=0 // pred_fallthru
    _
  %v31 = vld [vmem:[%s2] sm:$0x1]
  %v32 = vld [vmem:[%s22] sm:$0xf]
  %v33 = vld [vmem:[%s22 + $0x4] sm:$0xf]
  %v34 = vunpack.c.l.bf16 %v32
  %v35 = vunpack.c.l.bf16 %v33
  %v37 = vperm.slane %v31, 0
  %v39 = vadd.f32 %v37, %v34
  %v40 = vadd.f32 %v37, %v35
  %v41 = vld [vmem:[%s0] sm:$0xf]
  %v42 = vld [vmem:[%s0 + $0x4] sm:$0xf]
  %v43 = vunpack.c.l.bf16 %v41
  %v44 = vunpack.c.l.bf16 %v42
  %v45 = vld [vmem:[%s1] sm:$0xf]
  %v46 = vld [vmem:[%s1 + $0x4] sm:$0xf]
  %v47 = vunpack.c.l.bf16 %v45
  %v48 = vunpack.c.l.bf16 %v46
  %v49 = vmul.f32 %v47, %v39
  %v50 = vmul.f32 %v48, %v40
  %v51 = vadd.f32 %v43, %v49
  %v52 = vadd.f32 %v44, %v50
  %v53 = vld [vmem:[#allocation2] sm:$0xff]
  %v54 = vld [vmem:[#allocation2 + $0x8] sm:$0xff]
  %v55 = vpack.c.bf16 %v52, %v51
  %v56 = vld [vmem:[%s4] sm:$0xf]
  %v57 = vld [vmem:[%s4 + $0x4] sm:$0xf]
  %v58 = vld [vmem:[%s4 + $0x8] sm:$0xf]
  %v59 = vld [vmem:[%s4 + $0xc] sm:$0xf]
  %v60 = vld [vmem:[%s4 + $0x10] sm:$0xf]
  %v61 = vld [vmem:[%s4 + $0x14] sm:$0xf]
  %v62 = vld [vmem:[%s4 + $0x18] sm:$0xf]
  %v63 = vld [vmem:[%s4 + $0x1c] sm:$0xf]
  %v72 = vunpack.c.l.b16 %v56
  %v73 = vunpack.c.l.b16 %v57
  %v74 = vunpack.c.l.b16 %v58
  %v75 = vunpack.c.l.b16 %v59
  %v76 = vunpack.c.l.b16 %v60
  %v77 = vunpack.c.l.b16 %v61
  %v78 = vunpack.c.l.b16 %v62
  %v79 = vunpack.c.l.b16 %v63
  %v80 = vpack.c.b16 %v73, %v72
  %v81 = vpack.c.b16 %v75, %v74
  %v82 = vpack.c.b16 %v77, %v76
  %v83 = vpack.c.b16 %v79, %v78
  %vm88 = vcmask 523264
  %v90 = vsel %vm88, %v55, 0
  %92 = vmatpush.bf16.msra.mxu0 0
  %93 = vmatpush.bf16.msra.mxu0 0
  %94 = vmatpush.bf16.msra.mxu0 0
  %95 = vmatpush.bf16.msra.mxu0 0
  %96 = vmatpush.bf16.msra.mxu0 %v83
  %97 = vmatpush.bf16.msra.mxu0 %v82
  %98 = vmatpush.bf16.msra.mxu0 %v81
  %99 = vmatpush.bf16.msra.mxu0 %v80
  %100 = vmatmul.bf16.gmra.mxu0 %v90
  %v101 = vpop.f32.mrf.mxu0
  %v102 = vadd.f32 0.0, %v101
  %v103 = vpop.f32.mrf.mxu0
  %v104 = vadd.f32 0.0, %v103
  %105 = vdwg.mxu0
  %v106 = vadd.f32 %v53, %v102
  %v107 = vadd.f32 %v54, %v104
  %108 = vst.msk [vmem:[#allocation2] sm:$0xff] %vm88, %v106
  %109 = vst.msk [vmem:[#allocation2 + $0x8] sm:$0xff] %vm88, %v107
  // Predicated region
  $region26: #{_lambda_.18} parent=0 // pred_check
    %p110 = pneg %p24
  $region27: #{_lambda_.18} parent=0 // pred_check_branch
    %112 = sbr.rel (%p110) target = $region29
  $region28: #{_lambda_.18} parent=0 // pred_region
    %v113 = vld [vmem:[#allocation2] sm:$0xff]
    %v114 = vld [vmem:[#allocation2 + $0x8] sm:$0xff]
    %v115 = vpack.c.bf16 %v113, %v113
    %v116 = vpack.c.bf16 %v114, %v114
    %vm117 = vcmask 519168
    %118 = vst.msk [vmem:[%s5] sm:$0xf] %vm117, %v115
    %119 = vst.msk [vmem:[%s5 + $0x4] sm:$0xf] %vm117, %v116
  $region29: #{_lambda_.18} parent=0 // pred_fallthru
    _
  // Predicated region
  $region30: #{_lambda_.18} parent=0 // pred_check
    _
  $region31: #{_lambda_.18} parent=0 // pred_check_branch
    %121 = sbr.rel (0) target = $region33
  $region32: #{_lambda_.18} parent=0 // pred_region
    _
  $region33: #{_lambda_.18} parent=0 // pred_fallthru
    _
  // Predicated region
  $region34: #{_lambda_.18} parent=0 // pred_check
    _
  $region35: #{_lambda_.18} parent=0 // pred_check_branch
    %123 = sbr.rel (0) target = $region37
  $region36: #{_lambda_.18} parent=0 // pred_region
    _
  $region37: #{_lambda_.18} parent=0 // pred_fallthru
    _

// kernel: _lambda_.17
$region0: #{_lambda_.17}
  #allocation0 [shape = 'u32[]', space=smem, size = 0x4, offset = 0x4, fixed_abs, tag = 'smem constant byte address 0x4 - core index']
  #allocation1 [shape = 'u32[72,128]{1,0:T(1,128)}', space=vmem, size = 0x9000, scoped, tag = 'internal scratch']
  #allocation2 [shape = 'f32[16,64]{1,0:T(8,128)}', space=vmem, size = 0x2000, scoped, tag = 'scratch operand']
  %s0 = inlined_call_operand.vmem [shape: bf16[16,64], index: 0, kind: input, shape index: {}]
  %s1 = inlined_call_operand.vmem [shape: bf16[16,64], index: 1, kind: input, shape index: {}]
  %s2 = inlined_call_operand.vmem [shape: f32[1,64], index: 2, kind: input, shape index: {}]
  %s3 = inlined_call_operand.vmem [shape: bf16[5,16,64], index: 3, kind: input, shape index: {}]
  %s4 = inlined_call_operand.vmem [shape: bf16[64,64], index: 4, kind: input, shape index: {}]
  %s5 = inlined_call_operand.vmem [shape: bf16[16,64], index: 5, kind: output, shape index: {}]
  %s6 = sld [smem:[#allocation0]]
  $region38: #{_lambda_.17} parent=0
    _
  %s8 = ssub.s32 1, %s6
  %s9 = scalar_select 0, %s8, %s6
  // Predicated region
  $region2: #{_lambda_.17} parent=0 // pred_check
    _
  $region3: #{_lambda_.17} parent=0 // pred_check_branch
    %11 = sbr.rel (0) target = $region5
  $region4: #{_lambda_.17} parent=0 // pred_region
    _
  $region5: #{_lambda_.17} parent=0 // pred_fallthru
    _
  // Predicated region
  $region6: #{_lambda_.17} parent=0 // pred_check
    _
  $region7: #{_lambda_.17} parent=0 // pred_check_branch
    %13 = sbr.rel (0) target = $region9
  $region8: #{_lambda_.17} parent=0 // pred_region
    _
  $region9: #{_lambda_.17} parent=0 // pred_fallthru
    _
  // Predicated region
  $region10: #{_lambda_.17} parent=0 // pred_check
    _
  $region11: #{_lambda_.17} parent=0 // pred_check_branch
    %15 = sbr.rel (0) target = $region13
  $region12: #{_lambda_.17} parent=0 // pred_region
    _
  $region13: #{_lambda_.17} parent=0 // pred_fallthru
    _
  // Predicated region
  $region14: #{_lambda_.17} parent=0 // pred_check
    _
  $region15: #{_lambda_.17} parent=0 // pred_check_branch
    %17 = sbr.rel (0) target = $region17
  $region16: #{_lambda_.17} parent=0 // pred_region
    %s18 = scalar_lea.vmem %s3, 24
  $region17: #{_lambda_.17} parent=0 // pred_fallthru
    _
  // Predicated region
  $region18: #{_lambda_.17} parent=0 // pred_check
    _
  $region19: #{_lambda_.17} parent=0 // pred_check_branch
    %20 = sbr.rel (0) target = $region21
  $region20: #{_lambda_.17} parent=0 // pred_region
    _
  $region21: #{_lambda_.17} parent=0 // pred_fallthru
    _
  %s21 = scalar_lea.vmem %s3, 24
  %s22 = scalar_lea.vmem %s3, 24
  %p24 = scmp.eq.s32.totalorder 0, 0
  // Predicated region
  $region22: #{_lambda_.17} parent=0 // pred_check
    %p25 = pneg %p24
  $region23: #{_lambda_.17} parent=0 // pred_check_branch
    %27 = sbr.rel (%p25) target = $region25
  $region24: #{_lambda_.17} parent=0 // pred_region
    %vm28 = vcmask 523264
    %29 = vst.msk [vmem:[#allocation2] sm:$0xff] %vm28, 0.0
    %30 = vst.msk [vmem:[#allocation2 + $0x8] sm:$0xff] %vm28, 0.0
  $region25: #{_lambda_.17} parent=0 // pred_fallthru
    _
  %v31 = vld [vmem:[%s2] sm:$0x1]
  %v32 = vld [vmem:[%s22] sm:$0xf]
  %v33 = vld [vmem:[%s22 + $0x4] sm:$0xf]
  %v34 = vunpack.c.l.bf16 %v32
  %v35 = vunpack.c.l.bf16 %v33
  %v37 = vperm.slane %v31, 0
  %v39 = vadd.f32 %v37, %v34
  %v40 = vadd.f32 %v37, %v35
  %v41 = vld [vmem:[%s0] sm:$0xf]
  %v42 = vld [vmem:[%s0 + $0x4] sm:$0xf]
  %v43 = vunpack.c.l.bf16 %v41
  %v44 = vunpack.c.l.bf16 %v42
  %v45 = vld [vmem:[%s1] sm:$0xf]
  %v46 = vld [vmem:[%s1 + $0x4] sm:$0xf]
  %v47 = vunpack.c.l.bf16 %v45
  %v48 = vunpack.c.l.bf16 %v46
  %v49 = vmul.f32 %v47, %v39
  %v50 = vmul.f32 %v48, %v40
  %v51 = vadd.f32 %v43, %v49
  %v52 = vadd.f32 %v44, %v50
  %v53 = vld [vmem:[#allocation2] sm:$0xff]
  %v54 = vld [vmem:[#allocation2 + $0x8] sm:$0xff]
  %v55 = vpack.c.bf16 %v52, %v51
  %v56 = vld [vmem:[%s4] sm:$0xf]
  %v57 = vld [vmem:[%s4 + $0x4] sm:$0xf]
  %v58 = vld [vmem:[%s4 + $0x8] sm:$0xf]
  %v59 = vld [vmem:[%s4 + $0xc] sm:$0xf]
  %v60 = vld [vmem:[%s4 + $0x10] sm:$0xf]
  %v61 = vld [vmem:[%s4 + $0x14] sm:$0xf]
  %v62 = vld [vmem:[%s4 + $0x18] sm:$0xf]
  %v63 = vld [vmem:[%s4 + $0x1c] sm:$0xf]
  %v72 = vunpack.c.l.b16 %v56
  %v73 = vunpack.c.l.b16 %v57
  %v74 = vunpack.c.l.b16 %v58
  %v75 = vunpack.c.l.b16 %v59
  %v76 = vunpack.c.l.b16 %v60
  %v77 = vunpack.c.l.b16 %v61
  %v78 = vunpack.c.l.b16 %v62
  %v79 = vunpack.c.l.b16 %v63
  %v80 = vpack.c.b16 %v73, %v72
  %v81 = vpack.c.b16 %v75, %v74
  %v82 = vpack.c.b16 %v77, %v76
  %v83 = vpack.c.b16 %v79, %v78
  %vm88 = vcmask 523264
  %v90 = vsel %vm88, %v55, 0
  %92 = vmatpush.bf16.msra.mxu0 0
  %93 = vmatpush.bf16.msra.mxu0 0
  %94 = vmatpush.bf16.msra.mxu0 0
  %95 = vmatpush.bf16.msra.mxu0 0
  %96 = vmatpush.bf16.msra.mxu0 %v83
  %97 = vmatpush.bf16.msra.mxu0 %v82
  %98 = vmatpush.bf16.msra.mxu0 %v81
  %99 = vmatpush.bf16.msra.mxu0 %v80
  %100 = vmatmul.bf16.gmra.mxu0 %v90
  %v101 = vpop.f32.mrf.mxu0
  %v102 = vadd.f32 0.0, %v101
  %v103 = vpop.f32.mrf.mxu0
  %v104 = vadd.f32 0.0, %v103
  %105 = vdwg.mxu0
  %v106 = vadd.f32 %v53, %v102
  %v107 = vadd.f32 %v54, %v104
  %108 = vst.msk [vmem:[#allocation2] sm:$0xff] %vm88, %v106
  %109 = vst.msk [vmem:[#allocation2 + $0x8] sm:$0xff] %vm88, %v107
  // Predicated region
  $region26: #{_lambda_.17} parent=0 // pred_check
    %p110 = pneg %p24
  $region27: #{_lambda_.17} parent=0 // pred_check_branch
    %112 = sbr.rel (%p110) target = $region29
  $region28: #{_lambda_.17} parent=0 // pred_region
    %v113 = vld [vmem:[#allocation2] sm:$0xff]
    %v114 = vld [vmem:[#allocation2 + $0x8] sm:$0xff]
    %v115 = vpack.c.bf16 %v113, %v113
    %v116 = vpack.c.bf16 %v114, %v114
    %vm117 = vcmask 519168
    %118 = vst.msk [vmem:[%s5] sm:$0xf] %vm117, %v115
    %119 = vst.msk [vmem:[%s5 + $0x4] sm:$0xf] %vm117, %v116
  $region29: #{_lambda_.17} parent=0 // pred_fallthru
    _
  // Predicated region
  $region30: #{_lambda_.17} parent=0 // pred_check
    _
  $region31: #{_lambda_.17} parent=0 // pred_check_branch
    %121 = sbr.rel (0) target = $region33
  $region32: #{_lambda_.17} parent=0 // pred_region
    _
  $region33: #{_lambda_.17} parent=0 // pred_fallthru
    _
  // Predicated region
  $region34: #{_lambda_.17} parent=0 // pred_check
    _
  $region35: #{_lambda_.17} parent=0 // pred_check_branch
    %123 = sbr.rel (0) target = $region37
  $region36: #{_lambda_.17} parent=0 // pred_region
    _
  $region37: #{_lambda_.17} parent=0 // pred_fallthru
    _

// kernel: _lambda_.22
$region0: #{_lambda_.22}
  #allocation0 [shape = 'u32[]', space=smem, size = 0x4, offset = 0x4, fixed_abs, tag = 'smem constant byte address 0x4 - core index']
  #allocation1 [shape = 'u32[72,128]{1,0:T(1,128)}', space=vmem, size = 0x9000, scoped, tag = 'internal scratch']
  #allocation2 [shape = 'f32[1,64,64]{2,1,0:T(8,128)}', space=vmem, size = 0x8000, scoped, tag = 'scratch operand']
  %s0 = inlined_call_operand.vmem [shape: bf16[2,8,64], index: 0, kind: input, shape index: {}]
  %s1 = inlined_call_operand.vmem [shape: bf16[2,8,64], index: 1, kind: input, shape index: {}]
  %s2 = inlined_call_operand.vmem [shape: bf16[2,8,64], index: 2, kind: input, shape index: {}]
  %s3 = inlined_call_operand.vmem [shape: bf16[2,8,64], index: 3, kind: input, shape index: {}]
  %s4 = inlined_call_operand.vmem [shape: f32[1,64], index: 4, kind: input, shape index: {}]
  %s5 = inlined_call_operand.vmem [shape: bf16[2,8,64], index: 5, kind: output, shape index: {}]
  %s6 = sld [smem:[#allocation0]]
  $region57: #{_lambda_.22} parent=0
    _
  %s8 = ssub.s32 1, %s6
  %s9 = scalar_select 0, %s8, %s6
  loop: start=0, step=1, limit=4
  $region2: #{_lambda_.22} parent=0 // loop_pre_header
    _
  $region3: #{_lambda_.22} parent=0 // loop_header
    %s11 = sphi 0, %s15
    %p12 = scmp.ge.s32.totalorder %s11, 4
    %s18 = sphi 0, %s37
    %s19 = sphi 0, %s33
    %s20 = sphi 0, %s29
    %s21 = sphi 0, %s18
    %s22 = sphi 0, %s19
    %s23 = sphi 0, %s20
    %s24 = sphi 0, %s21
    %s25 = sphi 0, %s22
    %s26 = sphi 0, %s23
    %s44 = sphi 0, %s46
    %s47 = sphi 0, %s44
    %s48 = sphi 0, %s47
    %s64 = sphi 0, %s48
    %s74 = sphi 0, %s76
    %s77 = sphi 0, %s74
    %s78 = sphi 0, %s77
    %s94 = sphi 0, %s78
    %s104 = sphi 0, %s106
    %s107 = sphi 0, %s104
    %s108 = sphi 0, %s107
    %s124 = sphi 0, %s108
    %s134 = sphi 0, %s136
    %s137 = sphi 0, %s134
    %s138 = sphi 0, %s137
    %s154 = sphi 0, %s138
    %s160 = sphi 0, %s162
    %s163 = sphi 0, %s160
    %s164 = sphi 0, %s163
    %s180 = sphi 0, %s164
    %s190 = sphi 0, %s192
    %s193 = sphi 0, %s190
    %s194 = sphi 0, %s193
    %s210 = sphi 0, %s194
  $region4: #{_lambda_.22} parent=0 // loop_header_branch
    %14 = sbr.rel (%p12) target = $region8
  $region5: #{_lambda_.22} parent=0 // loop_body
    %s16 = ssub.s32 %s11, 1
    %s17 = ssub.s32 %s11, 2
    %s27 = sadd.s32 1, %s20
    %p28 = scmp.ge.s32.totalorder %s27, 1
    %s29 = scalar_select %p28, 0, %s27
    %s30 = sadd.s32 1, %s19
    %s31 = scalar_select %p28, %s30, %s19
    %p32 = scmp.ge.s32.totalorder %s31, 1
    %s33 = scalar_select %p32, 0, %s31
    %s34 = sadd.s32 1, %s18
    %s35 = scalar_select %p32, %s34, %s18
    %p36 = scmp.ge.s32.totalorder %s35, 2
    %s37 = scalar_select %p36, 0, %s35
    %s38 = ssub.s32 %s18, %s37
    %s39 = ssub.s32 %s20, %s29
    %s40 = sor.u32 %s38, %s39
    %s41 = ssub.s32 %s19, %s33
    %s42 = sor.u32 %s40, %s41
    %p43 = scmp.eq.s32.totalorder %s42, 0
    %s45 = sadd.s32 %s44, 1
    %s46 = scalar_select %p43, %s44, %s45
    %p49 = pneg %p43
    %p50 = scmp.eq.s32.totalorder %s11, 1
    %p51 = por %p49, %p50
    %p52 = scmp.ne.s32.totalorder %s44, %s47
    %p53 = scmp.eq.s32.totalorder %s11, 0
    %p54 = por %p52, %p53
    %p55 = scmp.ne.s32.totalorder %s44, %s47
    %p56 = scmp.eq.s32.totalorder %s16, 1
    %p57 = por %p55, %p56
    %p58 = scmp.ne.s32.totalorder %s47, %s48
    %p59 = scmp.eq.s32.totalorder %s16, 0
    %p60 = por %p58, %p59
    %p61 = scmp.ne.s32.totalorder %s47, %s48
    %p62 = scmp.eq.s32.totalorder %s17, 1
    %p63 = por %p61, %p62
    %p65 = scmp.ne.s32.totalorder %s48, %s64
    %p66 = scmp.eq.s32.totalorder %s17, 0
    %p67 = por %p65, %p66
    %s68 = ssub.s32 %s18, %s37
    %s69 = ssub.s32 %s20, %s29
    %s70 = sor.u32 %s68, %s69
    %s71 = ssub.s32 %s19, %s33
    %s72 = sor.u32 %s70, %s71
    %p73 = scmp.eq.s32.totalorder %s72, 0
    %s75 = sadd.s32 %s74, 1
    %s76 = scalar_select %p73, %s74, %s75
    %p79 = pneg %p73
    %p80 = scmp.eq.s32.totalorder %s11, 1
    %p81 = por %p79, %p80
    %p82 = scmp.ne.s32.totalorder %s74, %s77
    %p83 = scmp.eq.s32.totalorder %s11, 0
    %p84 = por %p82, %p83
    %p85 = scmp.ne.s32.totalorder %s74, %s77
    %p86 = scmp.eq.s32.totalorder %s16, 1
    %p87 = por %p85, %p86
    %p88 = scmp.ne.s32.totalorder %s77, %s78
    %p89 = scmp.eq.s32.totalorder %s16, 0
    %p90 = por %p88, %p89
    %p91 = scmp.ne.s32.totalorder %s77, %s78
    %p92 = scmp.eq.s32.totalorder %s17, 1
    %p93 = por %p91, %p92
    %p95 = scmp.ne.s32.totalorder %s78, %s94
    %p96 = scmp.eq.s32.totalorder %s17, 0
    %p97 = por %p95, %p96
    %s98 = ssub.s32 %s18, %s37
    %s99 = ssub.s32 %s20, %s29
    %s100 = sor.u32 %s98, %s99
    %s101 = ssub.s32 %s19, %s33
    %s102 = sor.u32 %s100, %s101
    %p103 = scmp.eq.s32.totalorder %s102, 0
    %s105 = sadd.s32 %s104, 1
    %s106 = scalar_select %p103, %s104, %s105
    %p109 = pneg %p103
    %p110 = scmp.eq.s32.totalorder %s11, 1
    %p111 = por %p109, %p110
    %p112 = scmp.ne.s32.totalorder %s104, %s107
    %p113 = scmp.eq.s32.totalorder %s11, 0
    %p114 = por %p112, %p113
    %p115 = scmp.ne.s32.totalorder %s104, %s107
    %p116 = scmp.eq.s32.totalorder %s16, 1
    %p117 = por %p115, %p116
    %p118 = scmp.ne.s32.totalorder %s107, %s108
    %p119 = scmp.eq.s32.totalorder %s16, 0
    %p120 = por %p118, %p119
    %p121 = scmp.ne.s32.totalorder %s107, %s108
    %p122 = scmp.eq.s32.totalorder %s17, 1
    %p123 = por %p121, %p122
    %p125 = scmp.ne.s32.totalorder %s108, %s124
    %p126 = scmp.eq.s32.totalorder %s17, 0
    %p127 = por %p125, %p126
    %s128 = ssub.s32 %s18, %s37
    %s129 = ssub.s32 %s20, %s29
    %s130 = sor.u32 %s128, %s129
    %s131 = ssub.s32 %s19, %s33
    %s132 = sor.u32 %s130, %s131
    %p133 = scmp.eq.s32.totalorder %s132, 0
    %s135 = sadd.s32 %s134, 1
    %s136 = scalar_select %p133, %s134, %s135
    %p139 = pneg %p133
    %p140 = scmp.eq.s32.totalorder %s11, 1
    %p141 = por %p139, %p140
    %p142 = scmp.ne.s32.totalorder %s134, %s137
    %p143 = scmp.eq.s32.totalorder %s11, 0
    %p144 = por %p142, %p143
    %p145 = scmp.ne.s32.totalorder %s134, %s137
    %p146 = scmp.eq.s32.totalorder %s16, 1
    %p147 = por %p145, %p146
    %p148 = scmp.ne.s32.totalorder %s137, %s138
    %p149 = scmp.eq.s32.totalorder %s16, 0
    %p150 = por %p148, %p149
    %p151 = scmp.ne.s32.totalorder %s137, %s138
    %p152 = scmp.eq.s32.totalorder %s17, 1
    %p153 = por %p151, %p152
    %p155 = scmp.ne.s32.totalorder %s138, %s154
    %p156 = scmp.eq.s32.totalorder %s17, 0
    %p157 = por %p155, %p156
    %s158 = ssub.s32 %s19, %s33
    %p159 = scmp.eq.s32.totalorder %s158, 0
    %s161 = sadd.s32 %s160, 1
    %s162 = scalar_select %p159, %s160, %s161
    %p165 = pneg %p159
    %p166 = scmp.eq.s32.totalorder %s11, 1
    %p167 = por %p165, %p166
    %p168 = scmp.ne.s32.totalorder %s160, %s163
    %p169 = scmp.eq.s32.totalorder %s11, 0
    %p170 = por %p168, %p169
    %p171 = scmp.ne.s32.totalorder %s160, %s163
    %p172 = scmp.eq.s32.totalorder %s16, 1
    %p173 = por %p171, %p172
    %p174 = scmp.ne.s32.totalorder %s163, %s164
    %p175 = scmp.eq.s32.totalorder %s16, 0
    %p176 = por %p174, %p175
    %p177 = scmp.ne.s32.totalorder %s163, %s164
    %p178 = scmp.eq.s32.totalorder %s17, 1
    %p179 = por %p177, %p178
    %p181 = scmp.ne.s32.totalorder %s164, %s180
    %p182 = scmp.eq.s32.totalorder %s17, 0
    %p183 = por %p181, %p182
    %s184 = ssub.s32 %s18, %s37
    %s185 = ssub.s32 %s20, %s29
    %s186 = sor.u32 %s184, %s185
    %s187 = ssub.s32 %s19, %s33
    %s188 = sor.u32 %s186, %s187
    %p189 = scmp.eq.s32.totalorder %s188, 0
    %s191 = sadd.s32 %s190, 1
    %s192 = scalar_select %p189, %s190, %s191
    %p195 = pneg %p189
    %p196 = scmp.eq.s32.totalorder %s11, 1
    %p197 = por %p195, %p196
    %p198 = scmp.ne.s32.totalorder %s190, %s193
    %p199 = scmp.eq.s32.totalorder %s11, 0
    %p200 = por %p198, %p199
    %p201 = scmp.ne.s32.totalorder %s190, %s193
    %p202 = scmp.eq.s32.totalorder %s16, 1
    %p203 = por %p201, %p202
    %p204 = scmp.ne.s32.totalorder %s193, %s194
    %p205 = scmp.eq.s32.totalorder %s16, 0
    %p206 = por %p204, %p205
    %p207 = scmp.ne.s32.totalorder %s193, %s194
    %p208 = scmp.eq.s32.totalorder %s17, 1
    %p209 = por %p207, %p208
    %p211 = scmp.ne.s32.totalorder %s194, %s210
    %p212 = scmp.eq.s32.totalorder %s17, 0
    %p213 = por %p211, %p212
    %p214 = scmp.le.s32.totalorder 1, %s11
    %p215 = scmp.lt.s32.totalorder %s11, 3
    %p216 = pnand %p214, %p215
    %p217 = pneg %p216
    // Predicated region
    $region9: #{_lambda_.22} parent=5 // pred_check
      _
    $region10: #{_lambda_.22} parent=5 // pred_check_branch
      %219 = sbr.rel (%p216) target = $region12
    $region11: #{_lambda_.22} parent=5 // pred_region
      %s220 = ssub.s32 %s11, 1
      // Predicated region
      $region13: #{_lambda_.22} parent=11 // pred_check
        %p221 = pneg %p176
      $region14: #{_lambda_.22} parent=11 // pred_check_branch
        %223 = sbr.rel (%p221) target = $region16
      $region15: #{_lambda_.22} parent=11 // pred_region
        %p224 = scmp.lt.s32.totalorder %s22, 0
        %s225 = scalar_select %p224, %s22, 0
        %s226 = scalar_lea.vmem %s4, %s225
      $region16: #{_lambda_.22} parent=11 // pred_fallthru
        _
    $region12: #{_lambda_.22} parent=5 // pred_fallthru
      _
    %p227 = scmp.lt.s32.totalorder %s11, 2
    // Predicated region
    $region17: #{_lambda_.22} parent=5 // pred_check
      %p228 = pneg %p227
    $region18: #{_lambda_.22} parent=5 // pred_check_branch
      %230 = sbr.rel (%p228) target = $region20
    $region19: #{_lambda_.22} parent=5 // pred_region
      // Predicated region
      $region21: #{_lambda_.22} parent=19 // pred_check
        %p231 = pneg %p54
      $region22: #{_lambda_.22} parent=19 // pred_check_branch
        %233 = sbr.rel (%p231) target = $region24
      $region23: #{_lambda_.22} parent=19 // pred_region
        %p234 = scmp.lt.s32.totalorder %s18, 1
        %s235 = scalar_select %p234, %s18, 1
        %p236 = scmp.lt.s32.totalorder %s20, 0
        %s237 = scalar_select %p236, %s20, 0
        %p238 = scmp.lt.s32.totalorder %s19, 0
        %s239 = scalar_select %p238, %s19, 0
        %s240 = sadd.s32 %s239, %s237
        %s241 = sadd.s32 %s240, %s235
        %s242 = smul.addr %s241, 4
        %s243 = scalar_lea.vmem %s0, %s242
      $region24: #{_lambda_.22} parent=19 // pred_fallthru
        _
      // Predicated region
      $region25: #{_lambda_.22} parent=19 // pred_check
        %p244 = pneg %p84
      $region26: #{_lambda_.22} parent=19 // pred_check_branch
        %246 = sbr.rel (%p244) target = $region28
      $region27: #{_lambda_.22} parent=19 // pred_region
        %p247 = scmp.lt.s32.totalorder %s18, 1
        %s248 = scalar_select %p247, %s18, 1
        %p249 = scmp.lt.s32.totalorder %s20, 0
        %s250 = scalar_select %p249, %s20, 0
        %p251 = scmp.lt.s32.totalorder %s19, 0
        %s252 = scalar_select %p251, %s19, 0
        %s253 = sadd.s32 %s252, %s250
        %s254 = sadd.s32 %s253, %s248
        %s255 = smul.addr %s254, 4
        %s256 = scalar_lea.vmem %s1, %s255
      $region28: #{_lambda_.22} parent=19 // pred_fallthru
        _
      // Predicated region
      $region29: #{_lambda_.22} parent=19 // pred_check
        %p257 = pneg %p114
      $region30: #{_lambda_.22} parent=19 // pred_check_branch
        %259 = sbr.rel (%p257) target = $region32
      $region31: #{_lambda_.22} parent=19 // pred_region
        %p260 = scmp.lt.s32.totalorder %s18, 1
        %s261 = scalar_select %p260, %s18, 1
        %p262 = scmp.lt.s32.totalorder %s20, 0
        %s263 = scalar_select %p262, %s20, 0
        %p264 = scmp.lt.s32.totalorder %s19, 0
        %s265 = scalar_select %p264, %s19, 0
        %s266 = sadd.s32 %s265, %s263
        %s267 = sadd.s32 %s266, %s261
        %s268 = smul.addr %s267, 4
        %s269 = scalar_lea.vmem %s2, %s268
      $region32: #{_lambda_.22} parent=19 // pred_fallthru
        _
      // Predicated region
      $region33: #{_lambda_.22} parent=19 // pred_check
        %p270 = pneg %p144
      $region34: #{_lambda_.22} parent=19 // pred_check_branch
        %272 = sbr.rel (%p270) target = $region36
      $region35: #{_lambda_.22} parent=19 // pred_region
        %p273 = scmp.lt.s32.totalorder %s18, 1
        %s274 = scalar_select %p273, %s18, 1
        %p275 = scmp.lt.s32.totalorder %s20, 0
        %s276 = scalar_select %p275, %s20, 0
        %p277 = scmp.lt.s32.totalorder %s19, 0
        %s278 = scalar_select %p277, %s19, 0
        %s279 = sadd.s32 %s278, %s276
        %s280 = sadd.s32 %s279, %s274
        %s281 = smul.addr %s280, 4
        %s282 = scalar_lea.vmem %s3, %s281
      $region36: #{_lambda_.22} parent=19 // pred_fallthru
        _
    $region20: #{_lambda_.22} parent=5 // pred_fallthru
      _
    %p283 = scmp.le.s32.totalorder 1, %s11
    %p284 = scmp.lt.s32.totalorder %s11, 3
    %p285 = pnand %p283, %p284
    %p286 = pneg %p285
    // Predicated region
    $region37: #{_lambda_.22} parent=5 // pred_check
      _
    $region38: #{_lambda_.22} parent=5 // pred_check_branch
      %288 = sbr.rel (%p285) target = $region40
    $region39: #{_lambda_.22} parent=5 // pred_region
      %s289 = ssub.s32 %s11, 1
      %p290 = scmp.lt.s32.totalorder %s21, 1
      %s291 = scalar_select %p290, %s21, 1
      %p292 = scmp.lt.s32.totalorder %s23, 0
      %s293 = scalar_select %p292, %s23, 0
      %p294 = scmp.lt.s32.totalorder %s22, 0
      %s295 = scalar_select %p294, %s22, 0
      %s296 = sadd.s32 %s295, %s293
      %s297 = sadd.s32 %s296, %s291
      %s298 = smul.addr %s297, 4
      %s299 = scalar_lea.vmem %s0, %s298
      %p300 = pneg %p60
      %p301 = pneg %p57
      %p302 = scmp.lt.s32.totalorder %s21, 1
      %s303 = scalar_select %p302, %s21, 1
      %p304 = scmp.lt.s32.totalorder %s23, 0
      %s305 = scalar_select %p304, %s23, 0
      %p306 = scmp.lt.s32.totalorder %s22, 0
      %s307 = scalar_select %p306, %s22, 0
      %s308 = sadd.s32 %s307, %s305
      %s309 = sadd.s32 %s308, %s303
      %s310 = smul.addr %s309, 4
      %s311 = scalar_lea.vmem %s1, %s310
      %p312 = pneg %p90
      %p313 = pneg %p87
      %p314 = scmp.lt.s32.totalorder %s21, 1
      %s315 = scalar_select %p314, %s21, 1
      %p316 = scmp.lt.s32.totalorder %s23, 0
      %s317 = scalar_select %p316, %s23, 0
      %p318 = scmp.lt.s32.totalorder %s22, 0
      %s319 = scalar_select %p318, %s22, 0
      %s320 = sadd.s32 %s319, %s317
      %s321 = sadd.s32 %s320, %s315
      %s322 = smul.addr %s321, 4
      %s323 = scalar_lea.vmem %s2, %s322
      %p324 = pneg %p120
      %p325 = pneg %p117
      %p326 = scmp.lt.s32.totalorder %s21, 1
      %s327 = scalar_select %p326, %s21, 1
      %p328 = scmp.lt.s32.totalorder %s23, 0
      %s329 = scalar_select %p328, %s23, 0
      %p330 = scmp.lt.s32.totalorder %s22, 0
      %s331 = scalar_select %p330, %s22, 0
      %s332 = sadd.s32 %s331, %s329
      %s333 = sadd.s32 %s332, %s327
      %s334 = smul.addr %s333, 4
      %s335 = scalar_lea.vmem %s3, %s334
      %p336 = pneg %p150
      %p337 = pneg %p147
      %p338 = scmp.lt.s32.totalorder %s22, 0
      %s339 = scalar_select %p338, %s22, 0
      %s340 = scalar_lea.vmem %s4, %s339
      %p341 = pneg %p176
      %p342 = pneg %p173
      %p343 = pneg %p206
      %p344 = pneg %p203
      %p345 = scmp.lt.s32.totalorder %s21, 1
      %s346 = scalar_select %p345, %s21, 1
      %p347 = scmp.lt.s32.totalorder %s23, 0
      %s348 = scalar_select %p347, %s23, 0
      %p349 = scmp.lt.s32.totalorder %s22, 0
      %s350 = scalar_select %p349, %s22, 0
      %s351 = sadd.s32 %s350, %s348
      %s352 = sadd.s32 %s351, %s346
      %s353 = smul.addr %s352, 4
      %s354 = scalar_lea.vmem %s5, %s353
      %p355 = scmp.lt.s32.totalorder %s21, 1
      %s356 = scalar_select %p355, %s21, 1
      %p357 = scmp.lt.s32.totalorder %s23, 0
      %s358 = scalar_select %p357, %s23, 0
      %p359 = scmp.lt.s32.totalorder %s22, 0
      %s360 = scalar_select %p359, %s22, 0
      %s361 = sadd.s32 %s360, %s358
      %s362 = sadd.s32 %s361, %s356
      %s363 = smul.addr %s362, 4
      %s364 = scalar_lea.vmem %s0, %s363
      %p365 = scmp.lt.s32.totalorder %s21, 1
      %s366 = scalar_select %p365, %s21, 1
      %p367 = scmp.lt.s32.totalorder %s23, 0
      %s368 = scalar_select %p367, %s23, 0
      %p369 = scmp.lt.s32.totalorder %s22, 0
      %s370 = scalar_select %p369, %s22, 0
      %s371 = sadd.s32 %s370, %s368
      %s372 = sadd.s32 %s371, %s366
      %s373 = smul.addr %s372, 4
      %s374 = scalar_lea.vmem %s1, %s373
      %p375 = scmp.lt.s32.totalorder %s21, 1
      %s376 = scalar_select %p375, %s21, 1
      %p377 = scmp.lt.s32.totalorder %s23, 0
      %s378 = scalar_select %p377, %s23, 0
      %p379 = scmp.lt.s32.totalorder %s22, 0
      %s380 = scalar_select %p379, %s22, 0
      %s381 = sadd.s32 %s380, %s378
      %s382 = sadd.s32 %s381, %s376
      %s383 = smul.addr %s382, 4
      %s384 = scalar_lea.vmem %s2, %s383
      %p385 = scmp.lt.s32.totalorder %s21, 1
      %s386 = scalar_select %p385, %s21, 1
      %p387 = scmp.lt.s32.totalorder %s23, 0
      %s388 = scalar_select %p387, %s23, 0
      %p389 = scmp.lt.s32.totalorder %s22, 0
      %s390 = scalar_select %p389, %s22, 0
      %s391 = sadd.s32 %s390, %s388
      %s392 = sadd.s32 %s391, %s386
      %s393 = smul.addr %s392, 4
      %s394 = scalar_lea.vmem %s3, %s393
      %p395 = scmp.lt.s32.totalorder %s22, 0
      %s396 = scalar_select %p395, %s22, 0
      %s397 = scalar_lea.vmem %s4, %s396
      %p398 = scmp.lt.s32.totalorder %s21, 1
      %s399 = scalar_select %p398, %s21, 1
      %p400 = scmp.lt.s32.totalorder %s23, 0
      %s401 = scalar_select %p400, %s23, 0
      %p402 = scmp.lt.s32.totalorder %s22, 0
      %s403 = scalar_select %p402, %s22, 0
      %s404 = sadd.s32 %s403, %s401
      %s405 = sadd.s32 %s404, %s399
      %s406 = smul.addr %s405, 4
      %s407 = scalar_lea.vmem %s5, %s406
      %p409 = scmp.eq.s32.totalorder %s23, 0
      // Predicated region
      $region41: #{_lambda_.22} parent=39 // pred_check
        %p410 = pneg %p409
      $region42: #{_lambda_.22} parent=39 // pred_check_branch
        %412 = sbr.rel (%p410) target = $region44
      $region43: #{_lambda_.22} parent=39 // pred_region
        %vm413 = vcmask 523264
        %414 = vst.msk [vmem:[#allocation2] sm:$0xff] %vm413, 0.0
        %415 = vst.msk [vmem:[#allocation2 + $0x8] sm:$0xff] %vm413, 0.0
        %416 = vst.msk [vmem:[#allocation2 + $0x10] sm:$0xff] %vm413, 0.0
        %417 = vst.msk [vmem:[#allocation2 + $0x18] sm:$0xff] %vm413, 0.0
        %418 = vst.msk [vmem:[#allocation2 + $0x20] sm:$0xff] %vm413, 0.0
        %419 = vst.msk [vmem:[#allocation2 + $0x28] sm:$0xff] %vm413, 0.0
        %420 = vst.msk [vmem:[#allocation2 + $0x30] sm:$0xff] %vm413, 0.0
        %421 = vst.msk [vmem:[#allocation2 + $0x38] sm:$0xff] %vm413, 0.0
      $region44: #{_lambda_.22} parent=39 // pred_fallthru
        _
      %v422 = vlaneseq
      %v423 = vshrl.u32 %v422, 7
      %v424 = vlaneseq
      %v425 = vand.u32 %v424, 127
      %vm426 = vcmp.lt.s32.totalorder %v425, %v423
      %vm427 = vcmp.eq.s32.totalorder %v425, %v423
      %vm428 = vcmp.le.s32.totalorder %v425, %v423
      %v429 = vsel %vm428, 1, 0
      %v430 = vcvt.s32.f32 %v429
      %v431 = vld [vmem:[%s364] sm:$0xf]
      %v432 = vld [vmem:[%s374] sm:$0xf]
      %v433 = vld [vmem:[%s384] sm:$0xf]
      %v434 = vld [vmem:[%s394] sm:$0xf]
      %v435 = vunpack.c.l.bf16 %v434
      %v436 = vmul.f32 %v435, 1.442695
      %v437 = vpow.pop %v436
      %v438 = vsub.f32 0.0, %v437
      %v439 = vld [vmem:[%s397] sm:$0x1]
      %v440 = vunpack.c.l.bf16 %v431
      %v441 = vunpack.c.l.bf16 %v432
      %vm442 = vcmask 64512
      %v444 = vsel %vm442, %v430, 0
      %446 = vmatpush.msra.mxu0 0.0
      %447 = vmatpush.msra.mxu0 0.0
      %448 = vmatpush.msra.mxu0 0.0
      %449 = vmatpush.msra.mxu0 0.0
      %450 = vmatpush.msra.mxu0 0.0
      %451 = vmatpush.msra.mxu0 0.0
      %452 = vmatpush.msra.mxu0 0.0
      %453 = vmatpush.msra.mxu0 0.0
      %454 = vmatpush.msra.mxu0 0.0
      %455 = vmatpush.msra.mxu0 0.0
      %456 = vmatpush.msra.mxu0 0.0
      %457 = vmatpush.msra.mxu0 0.0
      %458 = vmatpush.msra.mxu0 0.0
      %459 = vmatpush.msra.mxu0 0.0
      %460 = vmatpush.msra.mxu0 0.0
      %v461 = vand.u32 %v438, 4294901760
      %462 = vmatpush.msra.mxu0 %v461
      %v463 = vand.u32 %v444, 4294901760
      %v464 = vsub.f32 %v444, %v463
      %v465 = vand.u32 %v464, 4294901760
      %v466 = vsub.f32 %v464, %v465
      %v467 = vand.u32 %v466, 4294901760
      %468 = vmatmul.f32.gmra.mxu0 %v467
      %v469 = vpop.f32.mrf.mxu0
      %v470 = vadd.f32 0.0, %v469
      %471 = vdwg.mxu0
      %472 = vmatpush.msra.mxu0 0.0
      %473 = vmatpush.msra.mxu0 0.0
      %474 = vmatpush.msra.mxu0 0.0
      %475 = vmatpush.msra.mxu0 0.0
      %476 = vmatpush.msra.mxu0 0.0
      %477 = vmatpush.msra.mxu0 0.0
      %478 = vmatpush.msra.mxu0 0.0
      %479 = vmatpush.msra.mxu0 0.0
      %480 = vmatpush.msra.mxu0 0.0
      %481 = vmatpush.msra.mxu0 0.0
      %482 = vmatpush.msra.mxu0 0.0
      %483 = vmatpush.msra.mxu0 0.0
      %484 = vmatpush.msra.mxu0 0.0
      %485 = vmatpush.msra.mxu0 0.0
      %486 = vmatpush.msra.mxu0 0.0
      %v487 = vand.u32 %v438, 4294901760
      %v488 = vsub.f32 %v438, %v487
      %v489 = vand.u32 %v488, 4294901760
      %v490 = vsub.f32 %v488, %v489
      %v491 = vand.u32 %v490, 4294901760
      %492 = vmatpush.msra.mxu0 %v491
      %v493 = vand.u32 %v444, 4294901760
      %494 = vmatmul.f32.gmra.mxu0 %v493
      %v495 = vpop.f32.mrf.mxu0
      %v496 = vadd.f32 %v470, %v495
      %497 = vdwg.mxu0
      %498 = vmatpush.msra.mxu0 0.0
      %499 = vmatpush.msra.mxu0 0.0
      %500 = vmatpush.msra.mxu0 0.0
      %501 = vmatpush.msra.mxu0 0.0
      %502 = vmatpush.msra.mxu0 0.0
      %503 = vmatpush.msra.mxu0 0.0
      %504 = vmatpush.msra.mxu0 0.0
      %505 = vmatpush.msra.mxu0 0.0
      %506 = vmatpush.msra.mxu0 0.0
      %507 = vmatpush.msra.mxu0 0.0
      %508 = vmatpush.msra.mxu0 0.0
      %509 = vmatpush.msra.mxu0 0.0
      %510 = vmatpush.msra.mxu0 0.0
      %511 = vmatpush.msra.mxu0 0.0
      %512 = vmatpush.msra.mxu0 0.0
      %v513 = vand.u32 %v438, 4294901760
      %v514 = vsub.f32 %v438, %v513
      %515 = vmatpush.msra.mxu0 %v514
      %v516 = vand.u32 %v444, 4294901760
      %v517 = vsub.f32 %v444, %v516
      %518 = vmatmul.f32.gmra.mxu0 %v517
      %v519 = vpop.f32.mrf.mxu0
      %v520 = vadd.f32 %v496, %v519
      %521 = vdwg.mxu0
      %522 = vmatpush.msra.mxu0 0.0
      %523 = vmatpush.msra.mxu0 0.0
      %524 = vmatpush.msra.mxu0 0.0
      %525 = vmatpush.msra.mxu0 0.0
      %526 = vmatpush.msra.mxu0 0.0
      %527 = vmatpush.msra.mxu0 0.0
      %528 = vmatpush.msra.mxu0 0.0
      %529 = vmatpush.msra.mxu0 0.0
      %530 = vmatpush.msra.mxu0 0.0
      %531 = vmatpush.msra.mxu0 0.0
      %532 = vmatpush.msra.mxu0 0.0
      %533 = vmatpush.msra.mxu0 0.0
      %534 = vmatpush.msra.mxu0 0.0
      %535 = vmatpush.msra.mxu0 0.0
      %536 = vmatpush.msra.mxu0 0.0
      %v537 = vand.u32 %v438, 4294901760
      %538 = vmatpush.msra.mxu0 %v537
      %v539 = vand.u32 %v444, 4294901760
      %v540 = vsub.f32 %v444, %v539
      %v541 = vand.u32 %v540, 4294901760
      %542 = vmatmul.f32.gmra.mxu0 %v541
      %v543 = vpop.f32.mrf.mxu0
      %v544 = vadd.f32 %v520, %v543
      %545 = vdwg.mxu0
      %546 = vmatpush.msra.mxu0 0.0
      %547 = vmatpush.msra.mxu0 0.0
      %548 = vmatpush.msra.mxu0 0.0
      %549 = vmatpush.msra.mxu0 0.0
      %550 = vmatpush.msra.mxu0 0.0
      %551 = vmatpush.msra.mxu0 0.0
      %552 = vmatpush.msra.mxu0 0.0
      %553 = vmatpush.msra.mxu0 0.0
      %554 = vmatpush.msra.mxu0 0.0
      %555 = vmatpush.msra.mxu0 0.0
      %556 = vmatpush.msra.mxu0 0.0
      %557 = vmatpush.msra.mxu0 0.0
      %558 = vmatpush.msra.mxu0 0.0
      %559 = vmatpush.msra.mxu0 0.0
      %560 = vmatpush.msra.mxu0 0.0
      %v561 = vand.u32 %v438, 4294901760
      %v562 = vsub.f32 %v438, %v561
      %v563 = vand.u32 %v562, 4294901760
      %564 = vmatpush.msra.mxu0 %v563
      %v565 = vand.u32 %v444, 4294901760
      %566 = vmatmul.f32.gmra.mxu0 %v565
      %v567 = vpop.f32.mrf.mxu0
      %v568 = vadd.f32 %v544, %v567
      %569 = vdwg.mxu0
      %570 = vmatpush.msra.mxu0 0.0
      %571 = vmatpush.msra.mxu0 0.0
      %572 = vmatpush.msra.mxu0 0.0
      %573 = vmatpush.msra.mxu0 0.0
      %574 = vmatpush.msra.mxu0 0.0
      %575 = vmatpush.msra.mxu0 0.0
      %576 = vmatpush.msra.mxu0 0.0
      %577 = vmatpush.msra.mxu0 0.0
      %578 = vmatpush.msra.mxu0 0.0
      %579 = vmatpush.msra.mxu0 0.0
      %580 = vmatpush.msra.mxu0 0.0
      %581 = vmatpush.msra.mxu0 0.0
      %582 = vmatpush.msra.mxu0 0.0
      %583 = vmatpush.msra.mxu0 0.0
      %584 = vmatpush.msra.mxu0 0.0
      %v585 = vand.u32 %v438, 4294901760
      %586 = vmatpush.msra.mxu0 %v585
      %v587 = vand.u32 %v444, 4294901760
      %588 = vmatmul.f32.gmra.mxu0 %v587
      %v589 = vpop.f32.mrf.mxu0
      %v590 = vadd.f32 %v568, %v589
      %591 = vdwg.mxu0
      %v592 = vsub.f32 %v590, %v438
      %593 = vxpose.xlu0.b32.start [1/16] %v438, 128
      %594 = vxpose.xlu0.b32.cont [2/16] 0.0, 128
      %595 = vxpose.xlu0.b32.cont [3/16] 0.0, 128
      %596 = vxpose.xlu0.b32.cont [4/16] 0.0, 128
      %597 = vxpose.xlu0.b32.cont [5/16] 0.0, 128
      %598 = vxpose.xlu0.b32.cont [6/16] 0.0, 128
      %599 = vxpose.xlu0.b32.cont [7/16] 0.0, 128
      %600 = vxpose.xlu0.b32.cont [8/16] 0.0, 128
      %601 = vxpose.xlu0.b32.cont [9/16] 0.0, 128
      %602 = vxpose.xlu0.b32.cont [10/16] 0.0, 128
      %603 = vxpose.xlu0.b32.cont [11/16] 0.0, 128
      %604 = vxpose.xlu0.b32.cont [12/16] 0.0, 128
      %605 = vxpose.xlu0.b32.cont [13/16] 0.0, 128
      %606 = vxpose.xlu0.b32.cont [14/16] 0.0, 128
      %607 = vxpose.xlu0.b32.cont [15/16] 0.0, 128
      %608 = vxpose.xlu0.b32.end [16/16] 0.0, 128
      %v609 = vpop.trf.xlu0
      %v610 = vpop.trf.xlu0
      %v611 = vpop.trf.xlu0
      %v612 = vpop.trf.xlu0
      %v613 = vpop.trf.xlu0
      %v614 = vpop.trf.xlu0
      %v615 = vpop.trf.xlu0
      %v616 = vpop.trf.xlu0
      %v617 = vpop.trf.xlu0
      %v618 = vpop.trf.xlu0
      %v619 = vpop.trf.xlu0
      %v620 = vpop.trf.xlu0
      %v621 = vpop.trf.xlu0
      %v622 = vpop.trf.xlu0
      %v623 = vpop.trf.xlu0
      %v624 = vpop.trf.xlu0
      %v626 = vsel %vm442, %v609, 0
      %v629 = vsel %vm442, %v610, 0
      %v632 = vsel %vm442, %v611, 0
      %v635 = vsel %vm442, %v612, 0
      %v638 = vsel %vm442, %v613, 0
      %v641 = vsel %vm442, %v614, 0
      %v644 = vsel %vm442, %v615, 0
      %v647 = vsel %vm442, %v616, 0
      %649 = vmatpush.msra.mxu0 0.0
      %650 = vmatpush.msra.mxu0 0.0
      %651 = vmatpush.msra.mxu0 0.0
      %652 = vmatpush.msra.mxu0 0.0
      %653 = vmatpush.msra.mxu0 0.0
      %654 = vmatpush.msra.mxu0 0.0
      %655 = vmatpush.msra.mxu0 0.0
      %656 = vmatpush.msra.mxu0 0.0
      %657 = vmatpush.msra.mxu0 0.0
      %658 = vmatpush.msra.mxu0 0.0
      %659 = vmatpush.msra.mxu0 0.0
      %660 = vmatpush.msra.mxu0 0.0
      %661 = vmatpush.msra.mxu0 0.0
      %662 = vmatpush.msra.mxu0 0.0
      %663 = vmatpush.msra.mxu0 0.0
      %664 = vmatpush.msra.mxu0 1.0
      %v665 = vand.u32 %v626, 4294901760
      %v666 = vsub.f32 %v626, %v665
      %v667 = vand.u32 %v666, 4294901760
      %v668 = vsub.f32 %v666, %v667
      %v669 = vand.u32 %v668, 4294901760
      %670 = vmatmul.f32.gmra.mxu0 %v669
      %v671 = vpop.f32.mrf.mxu0
      %v672 = vadd.f32 0.0, %v671
      %v673 = vand.u32 %v629, 4294901760
      %v674 = vsub.f32 %v629, %v673
      %v675 = vand.u32 %v674, 4294901760
      %v676 = vsub.f32 %v674, %v675
      %v677 = vand.u32 %v676, 4294901760
      %678 = vmatmul.f32.gmra.mxu0 %v677
      %v679 = vpop.f32.mrf.mxu0
      %v680 = vadd.f32 0.0, %v679
      %v681 = vand.u32 %v632, 4294901760
      %v682 = vsub.f32 %v632, %v681
      %v683 = vand.u32 %v682, 4294901760
      %v684 = vsub.f32 %v682, %v683
      %v685 = vand.u32 %v684, 4294901760
      %686 = vmatmul.f32.gmra.mxu0 %v685
      %v687 = vpop.f32.mrf.mxu0
      %v688 = vadd.f32 0.0, %v687
      %v689 = vand.u32 %v635, 4294901760
      %v690 = vsub.f32 %v635, %v689
      %v691 = vand.u32 %v690, 4294901760
      %v692 = vsub.f32 %v690, %v691
      %v693 = vand.u32 %v692, 4294901760
      %694 = vmatmul.f32.gmra.mxu0 %v693
      %v695 = vpop.f32.mrf.mxu0
      %v696 = vadd.f32 0.0, %v695
      %v697 = vand.u32 %v638, 4294901760
      %v698 = vsub.f32 %v638, %v697
      %v699 = vand.u32 %v698, 4294901760
      %v700 = vsub.f32 %v698, %v699
      %v701 = vand.u32 %v700, 4294901760
      %702 = vmatmul.f32.gmra.mxu0 %v701
      %v703 = vpop.f32.mrf.mxu0
      %v704 = vadd.f32 0.0, %v703
      %v705 = vand.u32 %v641, 4294901760
      %v706 = vsub.f32 %v641, %v705
      %v707 = vand.u32 %v706, 4294901760
      %v708 = vsub.f32 %v706, %v707
      %v709 = vand.u32 %v708, 4294901760
      %710 = vmatmul.f32.gmra.mxu0 %v709
      %v711 = vpop.f32.mrf.mxu0
      %v712 = vadd.f32 0.0, %v711
      %v713 = vand.u32 %v644, 4294901760
      %v714 = vsub.f32 %v644, %v713
      %v715 = vand.u32 %v714, 4294901760
      %v716 = vsub.f32 %v714, %v715
      %v717 = vand.u32 %v716, 4294901760
      %718 = vmatmul.f32.gmra.mxu0 %v717
      %v719 = vpop.f32.mrf.mxu0
      %v720 = vadd.f32 0.0, %v719
      %v721 = vand.u32 %v647, 4294901760
      %v722 = vsub.f32 %v647, %v721
      %v723 = vand.u32 %v722, 4294901760
      %v724 = vsub.f32 %v722, %v723
      %v725 = vand.u32 %v724, 4294901760
      %726 = vmatmul.f32.gmra.mxu0 %v725
      %v727 = vpop.f32.mrf.mxu0
      %v728 = vadd.f32 0.0, %v727
      %729 = vdwg.mxu0
      %730 = vmatpush.msra.mxu0 0.0
      %731 = vmatpush.msra.mxu0 0.0
      %732 = vmatpush.msra.mxu0 0.0
      %733 = vmatpush.msra.mxu0 0.0
      %734 = vmatpush.msra.mxu0 0.0
      %735 = vmatpush.msra.mxu0 0.0
      %736 = vmatpush.msra.mxu0 0.0
      %737 = vmatpush.msra.mxu0 0.0
      %738 = vmatpush.msra.mxu0 0.0
      %739 = vmatpush.msra.mxu0 0.0
      %740 = vmatpush.msra.mxu0 0.0
      %741 = vmatpush.msra.mxu0 0.0
      %742 = vmatpush.msra.mxu0 0.0
      %743 = vmatpush.msra.mxu0 0.0
      %744 = vmatpush.msra.mxu0 0.0
      %745 = vmatpush.msra.mxu0 0.0
      %v746 = vand.u32 %v626, 4294901760
      %747 = vmatmul.f32.gmra.mxu0 %v746
      %v748 = vpop.f32.mrf.mxu0
      %v749 = vadd.f32 %v672, %v748
      %v750 = vand.u32 %v629, 4294901760
      %751 = vmatmul.f32.gmra.mxu0 %v750
      %v752 = vpop.f32.mrf.mxu0
      %v753 = vadd.f32 %v680, %v752
      %v754 = vand.u32 %v632, 4294901760
      %755 = vmatmul.f32.gmra.mxu0 %v754
      %v756 = vpop.f32.mrf.mxu0
      %v757 = vadd.f32 %v688, %v756
      %v758 = vand.u32 %v635, 4294901760
      %759 = vmatmul.f32.gmra.mxu0 %v758
      %v760 = vpop.f32.mrf.mxu0
      %v761 = vadd.f32 %v696, %v760
      %v762 = vand.u32 %v638, 4294901760
      %763 = vmatmul.f32.gmra.mxu0 %v762
      %v764 = vpop.f32.mrf.mxu0
      %v765 = vadd.f32 %v704, %v764
      %v766 = vand.u32 %v641, 4294901760
      %767 = vmatmul.f32.gmra.mxu0 %v766
      %v768 = vpop.f32.mrf.mxu0
      %v769 = vadd.f32 %v712, %v768
      %v770 = vand.u32 %v644, 4294901760
      %771 = vmatmul.f32.gmra.mxu0 %v770
      %v772 = vpop.f32.mrf.mxu0
      %v773 = vadd.f32 %v720, %v772
      %v774 = vand.u32 %v647, 4294901760
      %775 = vmatmul.f32.gmra.mxu0 %v774
      %v776 = vpop.f32.mrf.mxu0
      %v777 = vadd.f32 %v728, %v776
      %778 = vdwg.mxu0
      %779 = vmatpush.msra.mxu0 0.0
      %780 = vmatpush.msra.mxu0 0.0
      %781 = vmatpush.msra.mxu0 0.0
      %782 = vmatpush.msra.mxu0 0.0
      %783 = vmatpush.msra.mxu0 0.0
      %784 = vmatpush.msra.mxu0 0.0
      %785 = vmatpush.msra.mxu0 0.0
      %786 = vmatpush.msra.mxu0 0.0
      %787 = vmatpush.msra.mxu0 0.0
      %788 = vmatpush.msra.mxu0 0.0
      %789 = vmatpush.msra.mxu0 0.0
      %790 = vmatpush.msra.mxu0 0.0
      %791 = vmatpush.msra.mxu0 0.0
      %792 = vmatpush.msra.mxu0 0.0
      %793 = vmatpush.msra.mxu0 0.0
      %794 = vmatpush.msra.mxu0 0.0
      %v795 = vand.u32 %v626, 4294901760
      %v796 = vsub.f32 %v626, %v795
      %797 = vmatmul.f32.gmra.mxu0 %v796
      %v798 = vpop.f32.mrf.mxu0
      %v799 = vadd.f32 %v749, %v798
      %v800 = vand.u32 %v629, 4294901760
      %v801 = vsub.f32 %v629, %v800
      %802 = vmatmul.f32.gmra.mxu0 %v801
      %v803 = vpop.f32.mrf.mxu0
      %v804 = vadd.f32 %v753, %v803
      %v805 = vand.u32 %v632, 4294901760
      %v806 = vsub.f32 %v632, %v805
      %807 = vmatmul.f32.gmra.mxu0 %v806
      %v808 = vpop.f32.mrf.mxu0
      %v809 = vadd.f32 %v757, %v808
      %v810 = vand.u32 %v635, 4294901760
      %v811 = vsub.f32 %v635, %v810
      %812 = vmatmul.f32.gmra.mxu0 %v811
      %v813 = vpop.f32.mrf.mxu0
      %v814 = vadd.f32 %v761, %v813
      %v815 = vand.u32 %v638, 4294901760
      %v816 = vsub.f32 %v638, %v815
      %817 = vmatmul.f32.gmra.mxu0 %v816
      %v818 = vpop.f32.mrf.mxu0
      %v819 = vadd.f32 %v765, %v818
      %v820 = vand.u32 %v641, 4294901760
      %v821 = vsub.f32 %v641, %v820
      %822 = vmatmul.f32.gmra.mxu0 %v821
      %v823 = vpop.f32.mrf.mxu0
      %v824 = vadd.f32 %v769, %v823
      %v825 = vand.u32 %v644, 4294901760
      %v826 = vsub.f32 %v644, %v825
      %827 = vmatmul.f32.gmra.mxu0 %v826
      %v828 = vpop.f32.mrf.mxu0
      %v829 = vadd.f32 %v773, %v828
      %v830 = vand.u32 %v647, 4294901760
      %v831 = vsub.f32 %v647, %v830
      %832 = vmatmul.f32.gmra.mxu0 %v831
      %v833 = vpop.f32.mrf.mxu0
      %v834 = vadd.f32 %v777, %v833
      %835 = vdwg.mxu0
      %836 = vmatpush.msra.mxu0 0.0
      %837 = vmatpush.msra.mxu0 0.0
      %838 = vmatpush.msra.mxu0 0.0
      %839 = vmatpush.msra.mxu0 0.0
      %840 = vmatpush.msra.mxu0 0.0
      %841 = vmatpush.msra.mxu0 0.0
      %842 = vmatpush.msra.mxu0 0.0
      %843 = vmatpush.msra.mxu0 0.0
      %844 = vmatpush.msra.mxu0 0.0
      %845 = vmatpush.msra.mxu0 0.0
      %846 = vmatpush.msra.mxu0 0.0
      %847 = vmatpush.msra.mxu0 0.0
      %848 = vmatpush.msra.mxu0 0.0
      %849 = vmatpush.msra.mxu0 0.0
      %850 = vmatpush.msra.mxu0 0.0
      %851 = vmatpush.msra.mxu0 1.0
      %v852 = vand.u32 %v626, 4294901760
      %v853 = vsub.f32 %v626, %v852
      %v854 = vand.u32 %v853, 4294901760
      %855 = vmatmul.f32.gmra.mxu0 %v854
      %v856 = vpop.f32.mrf.mxu0
      %v857 = vadd.f32 %v799, %v856
      %v858 = vand.u32 %v629, 4294901760
      %v859 = vsub.f32 %v629, %v858
      %v860 = vand.u32 %v859, 4294901760
      %861 = vmatmul.f32.gmra.mxu0 %v860
      %v862 = vpop.f32.mrf.mxu0
      %v863 = vadd.f32 %v804, %v862
      %v864 = vand.u32 %v632, 4294901760
      %v865 = vsub.f32 %v632, %v864
      %v866 = vand.u32 %v865, 4294901760
      %867 = vmatmul.f32.gmra.mxu0 %v866
      %v868 = vpop.f32.mrf.mxu0
      %v869 = vadd.f32 %v809, %v868
      %v870 = vand.u32 %v635, 4294901760
      %v871 = vsub.f32 %v635, %v870
      %v872 = vand.u32 %v871, 4294901760
      %873 = vmatmul.f32.gmra.mxu0 %v872
      %v874 = vpop.f32.mrf.mxu0
      %v875 = vadd.f32 %v814, %v874
      %v876 = vand.u32 %v638, 4294901760
      %v877 = vsub.f32 %v638, %v876
      %v878 = vand.u32 %v877, 4294901760
      %879 = vmatmul.f32.gmra.mxu0 %v878
      %v880 = vpop.f32.mrf.mxu0
      %v881 = vadd.f32 %v819, %v880
      %v882 = vand.u32 %v641, 4294901760
      %v883 = vsub.f32 %v641, %v882
      %v884 = vand.u32 %v883, 4294901760
      %885 = vmatmul.f32.gmra.mxu0 %v884
      %v886 = vpop.f32.mrf.mxu0
      %v887 = vadd.f32 %v824, %v886
      %v888 = vand.u32 %v644, 4294901760
      %v889 = vsub.f32 %v644, %v888
      %v890 = vand.u32 %v889, 4294901760
      %891 = vmatmul.f32.gmra.mxu0 %v890
      %v892 = vpop.f32.mrf.mxu0
      %v893 = vadd.f32 %v829, %v892
      %v894 = vand.u32 %v647, 4294901760
      %v895 = vsub.f32 %v647, %v894
      %v896 = vand.u32 %v895, 4294901760
      %897 = vmatmul.f32.gmra.mxu0 %v896
      %v898 = vpop.f32.mrf.mxu0
      %v899 = vadd.f32 %v834, %v898
      %900 = vdwg.mxu0
      %901 = vmatpush.msra.mxu0 0.0
      %902 = vmatpush.msra.mxu0 0.0
      %903 = vmatpush.msra.mxu0 0.0
      %904 = vmatpush.msra.mxu0 0.0
      %905 = vmatpush.msra.mxu0 0.0
      %906 = vmatpush.msra.mxu0 0.0
      %907 = vmatpush.msra.mxu0 0.0
      %908 = vmatpush.msra.mxu0 0.0
      %909 = vmatpush.msra.mxu0 0.0
      %910 = vmatpush.msra.mxu0 0.0
      %911 = vmatpush.msra.mxu0 0.0
      %912 = vmatpush.msra.mxu0 0.0
      %913 = vmatpush.msra.mxu0 0.0
      %914 = vmatpush.msra.mxu0 0.0
      %915 = vmatpush.msra.mxu0 0.0
      %916 = vmatpush.msra.mxu0 0.0
      %v917 = vand.u32 %v626, 4294901760
      %918 = vmatmul.f32.gmra.mxu0 %v917
      %v919 = vpop.f32.mrf.mxu0
      %v920 = vadd.f32 %v857, %v919
      %v921 = vand.u32 %v629, 4294901760
      %922 = vmatmul.f32.gmra.mxu0 %v921
      %v923 = vpop.f32.mrf.mxu0
      %v924 = vadd.f32 %v863, %v923
      %v925 = vand.u32 %v632, 4294901760
      %926 = vmatmul.f32.gmra.mxu0 %v925
      %v927 = vpop.f32.mrf.mxu0
      %v928 = vadd.f32 %v869, %v927
      %v929 = vand.u32 %v635, 4294901760
      %930 = vmatmul.f32.gmra.mxu0 %v929
      %v931 = vpop.f32.mrf.mxu0
      %v932 = vadd.f32 %v875, %v931
      %v933 = vand.u32 %v638, 4294901760
      %934 = vmatmul.f32.gmra.mxu0 %v933
      %v935 = vpop.f32.mrf.mxu0
      %v936 = vadd.f32 %v881, %v935
      %v937 = vand.u32 %v641, 4294901760
      %938 = vmatmul.f32.gmra.mxu0 %v937
      %v939 = vpop.f32.mrf.mxu0
      %v940 = vadd.f32 %v887, %v939
      %v941 = vand.u32 %v644, 4294901760
      %942 = vmatmul.f32.gmra.mxu0 %v941
      %v943 = vpop.f32.mrf.mxu0
      %v944 = vadd.f32 %v893, %v943
      %v945 = vand.u32 %v647, 4294901760
      %946 = vmatmul.f32.gmra.mxu0 %v945
      %v947 = vpop.f32.mrf.mxu0
      %v948 = vadd.f32 %v899, %v947
      %949 = vdwg.mxu0
      %950 = vmatpush.msra.mxu0 0.0
      %951 = vmatpush.msra.mxu0 0.0
      %952 = vmatpush.msra.mxu0 0.0
      %953 = vmatpush.msra.mxu0 0.0
      %954 = vmatpush.msra.mxu0 0.0
      %955 = vmatpush.msra.mxu0 0.0
      %956 = vmatpush.msra.mxu0 0.0
      %957 = vmatpush.msra.mxu0 0.0
      %958 = vmatpush.msra.mxu0 0.0
      %959 = vmatpush.msra.mxu0 0.0
      %960 = vmatpush.msra.mxu0 0.0
      %961 = vmatpush.msra.mxu0 0.0
      %962 = vmatpush.msra.mxu0 0.0
      %963 = vmatpush.msra.mxu0 0.0
      %964 = vmatpush.msra.mxu0 0.0
      %965 = vmatpush.msra.mxu0 1.0
      %v966 = vand.u32 %v626, 4294901760
      %967 = vmatmul.f32.gmra.mxu0 %v966
      %v968 = vpop.f32.mrf.mxu0
      %v969 = vadd.f32 %v920, %v968
      %v970 = vand.u32 %v629, 4294901760
      %971 = vmatmul.f32.gmra.mxu0 %v970
      %v972 = vpop.f32.mrf.mxu0
      %v973 = vadd.f32 %v924, %v972
      %v974 = vand.u32 %v632, 4294901760
      %975 = vmatmul.f32.gmra.mxu0 %v974
      %v976 = vpop.f32.mrf.mxu0
      %v977 = vadd.f32 %v928, %v976
      %v978 = vand.u32 %v635, 4294901760
      %979 = vmatmul.f32.gmra.mxu0 %v978
      %v980 = vpop.f32.mrf.mxu0
      %v981 = vadd.f32 %v932, %v980
      %v982 = vand.u32 %v638, 4294901760
      %983 = vmatmul.f32.gmra.mxu0 %v982
      %v984 = vpop.f32.mrf.mxu0
      %v985 = vadd.f32 %v936, %v984
      %v986 = vand.u32 %v641, 4294901760
      %987 = vmatmul.f32.gmra.mxu0 %v986
      %v988 = vpop.f32.mrf.mxu0
      %v989 = vadd.f32 %v940, %v988
      %v990 = vand.u32 %v644, 4294901760
      %991 = vmatmul.f32.gmra.mxu0 %v990
      %v992 = vpop.f32.mrf.mxu0
      %v993 = vadd.f32 %v944, %v992
      %v994 = vand.u32 %v647, 4294901760
      %995 = vmatmul.f32.gmra.mxu0 %v994
      %v996 = vpop.f32.mrf.mxu0
      %v997 = vadd.f32 %v948, %v996
      %998 = vdwg.mxu0
      %v999 = vperm.slane %v590, 3
      %v1000 = vsub.f32 %v592, %v999
      %v1001 = vmul.f32 %v1000, 1.442695
      %v1002 = vpow.pop %v1001
      %v1003 = vmul.f32 %v440, %v1002
      %v1004 = vpack.c.bf16 %v1003, %v1003
      %v1005 = vsub.f32 %v999, %v590
      %v1006 = vmul.f32 %v1005, 1.442695
      %v1007 = vpow.pop %v1006
      %v1008 = vmul.f32 %v441, %v1007
      %v1009 = vpack.c.bf16 %v1008, %v1008
      %v1010 = vmul.f32 %v592, 1.442695
      %v1011 = vpow.pop %v1010
      %v1012 = vmul.f32 %v440, %v1011
      %v1013 = vpack.c.bf16 %v1012, %v1012
      %v1014 = vperm.slane %v590, 7
      %v1015 = vsub.f32 %v1014, %v590
      %v1016 = vmul.f32 %v1015, 1.442695
      %v1017 = vpow.pop %v1016
      %v1018 = vmul.f32 %v441, %v1017
      %v1019 = vpack.c.bf16 %v1018, %v1018
      %v1020 = vld [vmem:[#allocation2] sm:$0xff]
      %v1021 = vld [vmem:[#allocation2 + $0x8] sm:$0xff]
      %v1022 = vld [vmem:[#allocation2 + $0x10] sm:$0xff]
      %v1023 = vld [vmem:[#allocation2 + $0x18] sm:$0xff]
      %v1024 = vld [vmem:[#allocation2 + $0x20] sm:$0xff]
      %v1025 = vld [vmem:[#allocation2 + $0x28] sm:$0xff]
      %v1026 = vld [vmem:[#allocation2 + $0x30] sm:$0xff]
      %v1027 = vld [vmem:[#allocation2 + $0x38] sm:$0xff]
      %vm1028 = vcmask 523264
      %v1030 = vsel %vm1028, %v1004, 0
      %v1033 = vsel %vm1028, %v1009, 0
      %1035 = vmatpush.bf16.xpose.msra.mxu0 0
      %1036 = vmatpush.bf16.xpose.msra.mxu0 0
      %1037 = vmatpush.bf16.xpose.msra.mxu0 0
      %1038 = vmatpush.bf16.xpose.msra.mxu0 0
      %1039 = vmatpush.bf16.xpose.msra.mxu0 0
      %1040 = vmatpush.bf16.xpose.msra.mxu0 0
      %1041 = vmatpush.bf16.xpose.msra.mxu0 0
      %1042 = vmatpush.bf16.xpose.msra.mxu0 %v1033
      %1043 = vmatmul.bf16.gmra.mxu0 %v1030
      %v1044 = vpop.f32.mrf.mxu0
      %v1045 = vadd.f32 0.0, %v1044
      %v1046 = vpop.f32.mrf.mxu0
      %1047 = vdwg.mxu0
      %v1049 = vperm.slane %v439, 0
      %v1051 = vmul.f32 %v440, %v1049
      %v1052 = vmul.f32 %v1051, %v441
      %v1053 = vsel %vm1028, %v1052, 0.0
      %1054 = vadd.xlane.f32.xlu0 %v1053
      %v1055 = vpop.xlane.xlu0 %1054
      %v1056 = vsel %vm426, %v1045, 0.0
      %v1057 = vsel %vm427, %v1055, %v1056
      %v1058 = vpack.c.bf16 %v1057, %v1057
      %v1059 = vpack.c.bf16 %v1021, %v1020
      %v1060 = vpack.c.bf16 %v1023, %v1022
      %v1061 = vpack.c.bf16 %v1025, %v1024
      %v1062 = vpack.c.bf16 %v1027, %v1026
      %v1064 = vsel %vm1028, %v1013, 0
      %1066 = vmatpush.bf16.msra.mxu0 0
      %1067 = vmatpush.bf16.msra.mxu0 0
      %1068 = vmatpush.bf16.msra.mxu0 0
      %1069 = vmatpush.bf16.msra.mxu0 0
      %1070 = vmatpush.bf16.msra.mxu0 %v1062
      %1071 = vmatpush.bf16.msra.mxu0 %v1061
      %1072 = vmatpush.bf16.msra.mxu0 %v1060
      %1073 = vmatpush.bf16.msra.mxu0 %v1059
      %1074 = vmatmul.bf16.gmra.mxu0 %v1064
      %v1075 = vpop.f32.mrf.mxu0
      %v1076 = vadd.f32 0.0, %v1075
      %v1077 = vpop.f32.mrf.mxu0
      %1078 = vdwg.mxu0
      %v1080 = vsel %vm442, %v1058, 0
      %vm1082 = vcmask 1043456
      %v1084 = vsel %vm1082, %v433, 0
      %1086 = vmatpush.bf16.msra.mxu0 0
      %1087 = vmatpush.bf16.msra.mxu0 0
      %1088 = vmatpush.bf16.msra.mxu0 0
      %1089 = vmatpush.bf16.msra.mxu0 0
      %1090 = vmatpush.bf16.msra.mxu0 0
      %1091 = vmatpush.bf16.msra.mxu0 0
      %1092 = vmatpush.bf16.msra.mxu0 0
      %1093 = vmatpush.bf16.msra.mxu0 %v1084
      %1094 = vmatmul.bf16.gmra.mxu0 %v1080
      %v1095 = vpop.f32.mrf.mxu0
      %v1096 = vadd.f32 %v1076, %v1095
      %v1097 = vpop.f32.mrf.mxu0
      %1098 = vdwg.mxu0
      %v1099 = vmul.f32 %v969, 1.442695
      %v1100 = vpow.pop %v1099
      %v1101 = vmul.f32 %v973, 1.442695
      %v1102 = vpow.pop %v1101
      %v1103 = vmul.f32 %v977, 1.442695
      %v1104 = vpow.pop %v1103
      %v1105 = vmul.f32 %v981, 1.442695
      %v1106 = vpow.pop %v1105
      %v1107 = vmul.f32 %v985, 1.442695
      %v1108 = vpow.pop %v1107
      %v1109 = vmul.f32 %v989, 1.442695
      %v1110 = vpow.pop %v1109
      %v1111 = vmul.f32 %v993, 1.442695
      %v1112 = vpow.pop %v1111
      %v1113 = vmul.f32 %v997, 1.442695
      %v1114 = vpow.pop %v1113
      %1116 = vset.pattern.permute.xlu0 0
      %1117 = vperm.xlu0 %1116, %v1100
      %v1118 = vpop.permute.xlu0 %1117
      %1121 = vset.pattern.permute.xlu0 0
      %1122 = vperm.xlu0 %1121, %v1102
      %v1123 = vpop.permute.xlu0 %1122
      %1126 = vset.pattern.permute.xlu0 0
      %1127 = vperm.xlu0 %1126, %v1104
      %v1128 = vpop.permute.xlu0 %1127
      %1131 = vset.pattern.permute.xlu0 0
      %1132 = vperm.xlu0 %1131, %v1106
      %v1133 = vpop.permute.xlu0 %1132
      %1136 = vset.pattern.permute.xlu0 0
      %1137 = vperm.xlu0 %1136, %v1108
      %v1138 = vpop.permute.xlu0 %1137
      %1141 = vset.pattern.permute.xlu0 0
      %1142 = vperm.xlu0 %1141, %v1110
      %v1143 = vpop.permute.xlu0 %1142
      %1146 = vset.pattern.permute.xlu0 0
      %1147 = vperm.xlu0 %1146, %v1112
      %v1148 = vpop.permute.xlu0 %1147
      %1151 = vset.pattern.permute.xlu0 0
      %1152 = vperm.xlu0 %1151, %v1114
      %v1153 = vpop.permute.xlu0 %1152
      %v1155 = vmul.f32 %v1118, %v1020
      %v1156 = vmul.f32 %v1123, %v1021
      %v1157 = vmul.f32 %v1128, %v1022
      %v1158 = vmul.f32 %v1133, %v1023
      %v1159 = vmul.f32 %v1138, %v1024
      %v1160 = vmul.f32 %v1143, %v1025
      %v1161 = vmul.f32 %v1148, %v1026
      %v1162 = vmul.f32 %v1153, %v1027
      %1163 = vxpose.xlu0.c.b16.start [1/8] %v1019, 128
      %1164 = vxpose.xlu0.c.b16.cont [2/8] 0, 128
      %1165 = vxpose.xlu0.c.b16.cont [3/8] 0, 128
      %1166 = vxpose.xlu0.c.b16.cont [4/8] 0, 128
      %1167 = vxpose.xlu0.c.b16.cont [5/8] 0, 128
      %1168 = vxpose.xlu0.c.b16.cont [6/8] 0, 128
      %1169 = vxpose.xlu0.c.b16.cont [7/8] 0, 128
      %1170 = vxpose.xlu0.c.b16.end [8/8] 0, 128
      %v1171 = vpop.trf.xlu0
      %v1172 = vpop.trf.xlu0
      %v1173 = vpop.trf.xlu0
      %v1174 = vpop.trf.xlu0
      %v1175 = vpop.trf.xlu0
      %v1176 = vpop.trf.xlu0
      %v1177 = vpop.trf.xlu0
      %v1178 = vpop.trf.xlu0
      %v1180 = vsel %vm442, %v1171, 0
      %v1183 = vsel %vm442, %v1172, 0
      %v1186 = vsel %vm442, %v1173, 0
      %v1189 = vsel %vm442, %v1174, 0
      %1191 = vmatpush.bf16.msra.mxu0 0
      %1192 = vmatpush.bf16.msra.mxu0 0
      %1193 = vmatpush.bf16.msra.mxu0 0
      %1194 = vmatpush.bf16.msra.mxu0 0
      %1195 = vmatpush.bf16.msra.mxu0 0
      %1196 = vmatpush.bf16.msra.mxu0 0
      %1197 = vmatpush.bf16.msra.mxu0 0
      %1198 = vmatpush.bf16.msra.mxu0 %v1084
      %1199 = vmatmul.bf16.gmra.mxu0 %v1180
      %v1200 = vpop.f32.mrf.mxu0
      %v1201 = vadd.f32 0.0, %v1200
      %v1202 = vpop.f32.mrf.mxu0
      %v1203 = vadd.f32 0.0, %v1202
      %1204 = vmatmul.bf16.gmra.mxu0 %v1183
      %v1205 = vpop.f32.mrf.mxu0
      %v1206 = vadd.f32 0.0, %v1205
      %v1207 = vpop.f32.mrf.mxu0
      %v1208 = vadd.f32 0.0, %v1207
      %1209 = vmatmul.bf16.gmra.mxu0 %v1186
      %v1210 = vpop.f32.mrf.mxu0
      %v1211 = vadd.f32 0.0, %v1210
      %v1212 = vpop.f32.mrf.mxu0
      %v1213 = vadd.f32 0.0, %v1212
      %1214 = vmatmul.bf16.gmra.mxu0 %v1189
      %v1215 = vpop.f32.mrf.mxu0
      %v1216 = vadd.f32 0.0, %v1215
      %v1217 = vpop.f32.mrf.mxu0
      %v1218 = vadd.f32 0.0, %v1217
      %1219 = vdwg.mxu0
      %v1220 = vadd.f32 %v1155, %v1201
      %v1221 = vadd.f32 %v1156, %v1203
      %v1222 = vadd.f32 %v1157, %v1206
      %v1223 = vadd.f32 %v1158, %v1208
      %v1224 = vadd.f32 %v1159, %v1211
      %v1225 = vadd.f32 %v1160, %v1213
      %v1226 = vadd.f32 %v1161, %v1216
      %v1227 = vadd.f32 %v1162, %v1218
      %1228 = vst.msk [vmem:[#allocation2] sm:$0xff] %vm1028, %v1220
      %1229 = vst.msk [vmem:[#allocation2 + $0x8] sm:$0xff] %vm1028, %v1221
      %1230 = vst.msk [vmem:[#allocation2 + $0x10] sm:$0xff] %vm1028, %v1222
      %1231 = vst.msk [vmem:[#allocation2 + $0x18] sm:$0xff] %vm1028, %v1223
      %1232 = vst.msk [vmem:[#allocation2 + $0x20] sm:$0xff] %vm1028, %v1224
      %1233 = vst.msk [vmem:[#allocation2 + $0x28] sm:$0xff] %vm1028, %v1225
      %1234 = vst.msk [vmem:[#allocation2 + $0x30] sm:$0xff] %vm1028, %v1226
      %1235 = vst.msk [vmem:[#allocation2 + $0x38] sm:$0xff] %vm1028, %v1227
      %v1236 = vpack.c.bf16 %v1096, %v1096
      %vm1237 = vcmask 519168
      %1238 = vst.msk [vmem:[%s407] sm:$0xf] %vm1237, %v1236
      %p1239 = scmp.lt.s32.totalorder %s21, 1
      %s1240 = scalar_select %p1239, %s21, 1
      %p1241 = scmp.lt.s32.totalorder %s23, 0
      %s1242 = scalar_select %p1241, %s23, 0
      %p1243 = scmp.lt.s32.totalorder %s22, 0
      %s1244 = scalar_select %p1243, %s22, 0
      %s1245 = sadd.s32 %s1244, %s1242
      %s1246 = sadd.s32 %s1245, %s1240
      %s1247 = smul.addr %s1246, 4
      %s1248 = scalar_lea.vmem %s5, %s1247
      // Predicated region
      $region45: #{_lambda_.22} parent=39 // pred_check
        %p1249 = pneg %p203
      $region46: #{_lambda_.22} parent=39 // pred_check_branch
        %1251 = sbr.rel (%p1249) target = $region48
      $region47: #{_lambda_.22} parent=39 // pred_region
        _
      $region48: #{_lambda_.22} parent=39 // pred_fallthru
        _
    $region40: #{_lambda_.22} parent=5 // pred_fallthru
      _
    %p1252 = scmp.le.s32.totalorder 2, %s11
    // Predicated region
    $region49: #{_lambda_.22} parent=5 // pred_check
      %p1253 = pneg %p1252
    $region50: #{_lambda_.22} parent=5 // pred_check_branch
      %1255 = sbr.rel (%p1253) target = $region52
    $region51: #{_lambda_.22} parent=5 // pred_region
      %s1256 = ssub.s32 %s11, 2
      // Predicated region
      $region53: #{_lambda_.22} parent=51 // pred_check
        %p1257 = pneg %p209
      $region54: #{_lambda_.22} parent=51 // pred_check_branch
        %1259 = sbr.rel (%p1257) target = $region56
      $region55: #{_lambda_.22} parent=51 // pred_region
        %p1260 = scmp.lt.s32.totalorder %s24, 1
        %s1261 = scalar_select %p1260, %s24, 1
        %p1262 = scmp.lt.s32.totalorder %s26, 0
        %s1263 = scalar_select %p1262, %s26, 0
        %p1264 = scmp.lt.s32.totalorder %s25, 0
        %s1265 = scalar_select %p1264, %s25, 0
        %s1266 = sadd.s32 %s1265, %s1263
        %s1267 = sadd.s32 %s1266, %s1261
        %s1268 = smul.addr %s1267, 4
        %s1269 = scalar_lea.vmem %s5, %s1268
      $region56: #{_lambda_.22} parent=51 // pred_fallthru
        _
    $region52: #{_lambda_.22} parent=5 // pred_fallthru
      _
  $region6: #{_lambda_.22} parent=0 // loop_footer
    %s15 = sadd.s32 1, %s11
  $region7: #{_lambda_.22} parent=0 // loop_footer_branch
    %10 = sbr.rel target = $region3
  $region8: #{_lambda_.22} parent=0 // loop_exit
    _

// kernel: _lambda_.20
$region0: #{_lambda_.20}
  #allocation0 [shape = 'u32[]', space=smem, size = 0x4, offset = 0x4, fixed_abs, tag = 'smem constant byte address 0x4 - core index']
  #allocation1 [shape = 'u32[72,128]{1,0:T(1,128)}', space=vmem, size = 0x9000, scoped, tag = 'internal scratch']
  #allocation2 [shape = 'f32[16,64]{1,0:T(8,128)}', space=vmem, size = 0x2000, scoped, tag = 'scratch operand']
  %s0 = inlined_call_operand.vmem [shape: bf16[16,64], index: 0, kind: input, shape index: {}]
  %s1 = inlined_call_operand.vmem [shape: bf16[16,64], index: 1, kind: input, shape index: {}]
  %s2 = inlined_call_operand.vmem [shape: f32[1,64], index: 2, kind: input, shape index: {}]
  %s3 = inlined_call_operand.vmem [shape: bf16[5,16,64], index: 3, kind: input, shape index: {}]
  %s4 = inlined_call_operand.vmem [shape: bf16[64,64], index: 4, kind: input, shape index: {}]
  %s5 = inlined_call_operand.vmem [shape: bf16[16,64], index: 5, kind: output, shape index: {}]
  %s6 = sld [smem:[#allocation0]]
  $region38: #{_lambda_.20} parent=0
    _
  %s8 = ssub.s32 1, %s6
  %s9 = scalar_select 0, %s8, %s6
  // Predicated region
  $region2: #{_lambda_.20} parent=0 // pred_check
    _
  $region3: #{_lambda_.20} parent=0 // pred_check_branch
    %11 = sbr.rel (0) target = $region5
  $region4: #{_lambda_.20} parent=0 // pred_region
    _
  $region5: #{_lambda_.20} parent=0 // pred_fallthru
    _
  // Predicated region
  $region6: #{_lambda_.20} parent=0 // pred_check
    _
  $region7: #{_lambda_.20} parent=0 // pred_check_branch
    %13 = sbr.rel (0) target = $region9
  $region8: #{_lambda_.20} parent=0 // pred_region
    _
  $region9: #{_lambda_.20} parent=0 // pred_fallthru
    _
  // Predicated region
  $region10: #{_lambda_.20} parent=0 // pred_check
    _
  $region11: #{_lambda_.20} parent=0 // pred_check_branch
    %15 = sbr.rel (0) target = $region13
  $region12: #{_lambda_.20} parent=0 // pred_region
    _
  $region13: #{_lambda_.20} parent=0 // pred_fallthru
    _
  // Predicated region
  $region14: #{_lambda_.20} parent=0 // pred_check
    _
  $region15: #{_lambda_.20} parent=0 // pred_check_branch
    %17 = sbr.rel (0) target = $region17
  $region16: #{_lambda_.20} parent=0 // pred_region
    %s18 = scalar_lea.vmem %s3, 32
  $region17: #{_lambda_.20} parent=0 // pred_fallthru
    _
  // Predicated region
  $region18: #{_lambda_.20} parent=0 // pred_check
    _
  $region19: #{_lambda_.20} parent=0 // pred_check_branch
    %20 = sbr.rel (0) target = $region21
  $region20: #{_lambda_.20} parent=0 // pred_region
    _
  $region21: #{_lambda_.20} parent=0 // pred_fallthru
    _
  %s21 = scalar_lea.vmem %s3, 32
  %s22 = scalar_lea.vmem %s3, 32
  %p24 = scmp.eq.s32.totalorder 0, 0
  // Predicated region
  $region22: #{_lambda_.20} parent=0 // pred_check
    %p25 = pneg %p24
  $region23: #{_lambda_.20} parent=0 // pred_check_branch
    %27 = sbr.rel (%p25) target = $region25
  $region24: #{_lambda_.20} parent=0 // pred_region
    %vm28 = vcmask 523264
    %29 = vst.msk [vmem:[#allocation2] sm:$0xff] %vm28, 0.0
    %30 = vst.msk [vmem:[#allocation2 + $0x8] sm:$0xff] %vm28, 0.0
  $region25: #{_lambda_.20} parent=0 // pred_fallthru
    _
  %v31 = vld [vmem:[%s2] sm:$0x1]
  %v32 = vld [vmem:[%s22] sm:$0xf]
  %v33 = vld [vmem:[%s22 + $0x4] sm:$0xf]
  %v34 = vunpack.c.l.bf16 %v32
  %v35 = vunpack.c.l.bf16 %v33
  %v37 = vperm.slane %v31, 0
  %v39 = vadd.f32 %v37, %v34
  %v40 = vadd.f32 %v37, %v35
  %v41 = vld [vmem:[%s0] sm:$0xf]
  %v42 = vld [vmem:[%s0 + $0x4] sm:$0xf]
  %v43 = vunpack.c.l.bf16 %v41
  %v44 = vunpack.c.l.bf16 %v42
  %v45 = vld [vmem:[%s1] sm:$0xf]
  %v46 = vld [vmem:[%s1 + $0x4] sm:$0xf]
  %v47 = vunpack.c.l.bf16 %v45
  %v48 = vunpack.c.l.bf16 %v46
  %v49 = vmul.f32 %v47, %v39
  %v50 = vmul.f32 %v48, %v40
  %v51 = vadd.f32 %v43, %v49
  %v52 = vadd.f32 %v44, %v50
  %v53 = vld [vmem:[#allocation2] sm:$0xff]
  %v54 = vld [vmem:[#allocation2 + $0x8] sm:$0xff]
  %v55 = vpack.c.bf16 %v52, %v51
  %v56 = vld [vmem:[%s4] sm:$0xf]
  %v57 = vld [vmem:[%s4 + $0x4] sm:$0xf]
  %v58 = vld [vmem:[%s4 + $0x8] sm:$0xf]
  %v59 = vld [vmem:[%s4 + $0xc] sm:$0xf]
  %v60 = vld [vmem:[%s4 + $0x10] sm:$0xf]
  %v61 = vld [vmem:[%s4 + $0x14] sm:$0xf]
  %v62 = vld [vmem:[%s4 + $0x18] sm:$0xf]
  %v63 = vld [vmem:[%s4 + $0x1c] sm:$0xf]
  %v72 = vunpack.c.l.b16 %v56
  %v73 = vunpack.c.l.b16 %v57
  %v74 = vunpack.c.l.b16 %v58
  %v75 = vunpack.c.l.b16 %v59
  %v76 = vunpack.c.l.b16 %v60
  %v77 = vunpack.c.l.b16 %v61
  %v78 = vunpack.c.l.b16 %v62
  %v79 = vunpack.c.l.b16 %v63
  %v80 = vpack.c.b16 %v73, %v72
  %v81 = vpack.c.b16 %v75, %v74
  %v82 = vpack.c.b16 %v77, %v76
  %v83 = vpack.c.b16 %v79, %v78
  %vm88 = vcmask 523264
  %v90 = vsel %vm88, %v55, 0
  %92 = vmatpush.bf16.msra.mxu0 0
  %93 = vmatpush.bf16.msra.mxu0 0
  %94 = vmatpush.bf16.msra.mxu0 0
  %95 = vmatpush.bf16.msra.mxu0 0
  %96 = vmatpush.bf16.msra.mxu0 %v83
  %97 = vmatpush.bf16.msra.mxu0 %v82
  %98 = vmatpush.bf16.msra.mxu0 %v81
  %99 = vmatpush.bf16.msra.mxu0 %v80
  %100 = vmatmul.bf16.gmra.mxu0 %v90
  %v101 = vpop.f32.mrf.mxu0
  %v102 = vadd.f32 0.0, %v101
  %v103 = vpop.f32.mrf.mxu0
  %v104 = vadd.f32 0.0, %v103
  %105 = vdwg.mxu0
  %v106 = vadd.f32 %v53, %v102
  %v107 = vadd.f32 %v54, %v104
  %108 = vst.msk [vmem:[#allocation2] sm:$0xff] %vm88, %v106
  %109 = vst.msk [vmem:[#allocation2 + $0x8] sm:$0xff] %vm88, %v107
  // Predicated region
  $region26: #{_lambda_.20} parent=0 // pred_check
    %p110 = pneg %p24
  $region27: #{_lambda_.20} parent=0 // pred_check_branch
    %112 = sbr.rel (%p110) target = $region29
  $region28: #{_lambda_.20} parent=0 // pred_region
    %v113 = vld [vmem:[#allocation2] sm:$0xff]
    %v114 = vld [vmem:[#allocation2 + $0x8] sm:$0xff]
    %v115 = vxor.u32 %v113, 2147483648
    %v116 = vxor.u32 %v114, 2147483648
    %v117 = vmul.f32 %v115, 1.442695
    %v118 = vpow.pop %v117
    %v119 = vmul.f32 %v116, 1.442695
    %v120 = vpow.pop %v119
    %v121 = vadd.f32 %v118, 1.0
    %v122 = vadd.f32 %v120, 1.0
    %v123 = vrcp.pop %v121
    %v124 = vmul.f32 %v121, %v123
    %v125 = vsub.f32 1.0, %v124
    %v126 = vmul.f32 %v123, %v125
    %v127 = vadd.f32 %v123, %v126
    %vm128 = vweird.f32 %v121
    %vm129 = vweird.f32 %v123
    %vm130 = vmor %vm128, %vm129
    %v131 = vsel %vm130, %v123, %v127
    %v132 = vand.u32 2147483647, %v121
    %vm133 = vcmp.eq.f32.partialorder %v132, 8.507059e+37
    %v134 = vand.u32 %v121, 2147483648
    %v135 = vor.u32 1.1754944e-38, %v134
    %v136 = vsel %vm133, %v135, %v131
    %v137 = vmul.f32 1.0, %v136
    %v138 = vrcp.pop %v122
    %v139 = vmul.f32 %v122, %v138
    %v140 = vsub.f32 1.0, %v139
    %v141 = vmul.f32 %v138, %v140
    %v142 = vadd.f32 %v138, %v141
    %vm143 = vweird.f32 %v122
    %vm144 = vweird.f32 %v138
    %vm145 = vmor %vm143, %vm144
    %v146 = vsel %vm145, %v138, %v142
    %v147 = vand.u32 2147483647, %v122
    %vm148 = vcmp.eq.f32.partialorder %v147, 8.507059e+37
    %v149 = vand.u32 %v122, 2147483648
    %v150 = vor.u32 1.1754944e-38, %v149
    %v151 = vsel %vm148, %v150, %v146
    %v152 = vmul.f32 1.0, %v151
    %v153 = vmul.f32 %v113, %v137
    %v154 = vmul.f32 %v114, %v152
    %v155 = vpack.c.bf16 %v153, %v153
    %v156 = vpack.c.bf16 %v154, %v154
    %vm157 = vcmask 519168
    %158 = vst.msk [vmem:[%s5] sm:$0xf] %vm157, %v155
    %159 = vst.msk [vmem:[%s5 + $0x4] sm:$0xf] %vm157, %v156
  $region29: #{_lambda_.20} parent=0 // pred_fallthru
    _
  // Predicated region
  $region30: #{_lambda_.20} parent=0 // pred_check
    _
  $region31: #{_lambda_.20} parent=0 // pred_check_branch
    %161 = sbr.rel (0) target = $region33
  $region32: #{_lambda_.20} parent=0 // pred_region
    _
  $region33: #{_lambda_.20} parent=0 // pred_fallthru
    _
  // Predicated region
  $region34: #{_lambda_.20} parent=0 // pred_check
    _
  $region35: #{_lambda_.20} parent=0 // pred_check_branch
    %163 = sbr.rel (0) target = $region37
  $region36: #{_lambda_.20} parent=0 // pred_region
    _
  $region37: #{_lambda_.20} parent=0 // pred_fallthru
    _

// kernel: _lambda_.23
$region0: #{_lambda_.23}
  #allocation0 [shape = 'u32[]', space=smem, size = 0x4, offset = 0x4, fixed_abs, tag = 'smem constant byte address 0x4 - core index']
  #allocation1 [shape = 'u32[72,128]{1,0:T(1,128)}', space=vmem, size = 0x9000, scoped, tag = 'internal scratch']
  #allocation2 [shape = 'bf16[16,64]{1,0:T(8,128)(2,1)}', space=vmem, size = 0x1000, scoped, tag = 'scratch operand']
  %s0 = inlined_call_operand.vmem [shape: bf16[16,64], index: 0, kind: input, shape index: {}]
  %s1 = inlined_call_operand.vmem [shape: bf16[16,64], index: 1, kind: input, shape index: {}]
  %s2 = inlined_call_operand.vmem [shape: f32[1,64], index: 2, kind: input, shape index: {}]
  %s3 = inlined_call_operand.vmem [shape: f32[1,64], index: 3, kind: input, shape index: {}]
  %s4 = inlined_call_operand.hbm [shape: bf16[64,64], index: 4, kind: input, shape index: {}]
  %s5 = inlined_call_operand.vmem [shape: f32[16,64], index: 5, kind: output, shape index: {}]
  %s6 = sld [smem:[#allocation0]]
  $region38: #{_lambda_.23} parent=0
    _
  %s8 = ssub.s32 1, %s6
  %s9 = scalar_select 0, %s8, %s6
  $region1: #{_lambda_.23} parent=0
    #allocation3 [shape = 'u8[16384]{0}', space=vmem, size = 0x4000, scoped, tag = 'input window, operand 4, single buffered']
    #allocation4 [shape = 's32[1]{0}', space=sflag, size = 0x4, scoped, tag = 'scoped memory for _lambda_.23']
    %10 = vsyncpa [#allocation4], 0
    // Predicated region
    $region2: #{_lambda_.23} parent=1 // pred_check
      _
    $region3: #{_lambda_.23} parent=1 // pred_check_branch
      %12 = sbr.rel (0) target = $region5
    $region4: #{_lambda_.23} parent=1 // pred_region
      _
    $region5: #{_lambda_.23} parent=1 // pred_fallthru
      _
    // Predicated region
    $region6: #{_lambda_.23} parent=1 // pred_check
      _
    $region7: #{_lambda_.23} parent=1 // pred_check_branch
      %14 = sbr.rel (0) target = $region9
    $region8: #{_lambda_.23} parent=1 // pred_region
      _
    $region9: #{_lambda_.23} parent=1 // pred_fallthru
      _
    // Predicated region
    $region10: #{_lambda_.23} parent=1 // pred_check
      _
    $region11: #{_lambda_.23} parent=1 // pred_check_branch
      %16 = sbr.rel (0) target = $region13
    $region12: #{_lambda_.23} parent=1 // pred_region
      _
    $region13: #{_lambda_.23} parent=1 // pred_fallthru
      _
    // Predicated region
    $region14: #{_lambda_.23} parent=1 // pred_check
      _
    $region15: #{_lambda_.23} parent=1 // pred_check_branch
      %18 = sbr.rel (0) target = $region17
    $region16: #{_lambda_.23} parent=1 // pred_region
      _
    $region17: #{_lambda_.23} parent=1 // pred_fallthru
      _
    // Predicated region
    $region18: #{_lambda_.23} parent=1 // pred_check
      _
    $region19: #{_lambda_.23} parent=1 // pred_check_branch
      %20 = sbr.rel (0) target = $region21
    $region20: #{_lambda_.23} parent=1 // pred_region
      %22 = vsyncadd [#allocation4], 0
      %s23 = sshll.u32 %s4, 4
      %s24 = int_to_ptr.hbm [resolvable:$true] %s23
      %s25 = sshll.u32 [#allocation3], 4
      %s26 = int_to_ptr.vmem [resolvable:$true] %s25
      %31 = dma.hbm_to_vmem [thread:$0]  %s24, 512, %s26, [#allocation4], 64, 64, 4
    $region21: #{_lambda_.23} parent=1 // pred_fallthru
      _
    // Predicated region
    $region22: #{_lambda_.23} parent=1 // pred_check
      _
    $region23: #{_lambda_.23} parent=1 // pred_check_branch
      %33 = sbr.rel (0) target = $region25
    $region24: #{_lambda_.23} parent=1 // pred_region
      %35 = dma.done [#allocation4], 512
    $region25: #{_lambda_.23} parent=1 // pred_fallthru
      _
    %p37 = scmp.eq.s32.totalorder 0, 0
    // Predicated region
    $region26: #{_lambda_.23} parent=1 // pred_check
      %p38 = pneg %p37
    $region27: #{_lambda_.23} parent=1 // pred_check_branch
      %40 = sbr.rel (%p38) target = $region29
    $region28: #{_lambda_.23} parent=1 // pred_region
      %v41 = vld [vmem:[%s0] sm:$0xf]
      %v42 = vld [vmem:[%s0 + $0x4] sm:$0xf]
      %v43 = vunpack.c.l.bf16 %v41
      %v44 = vunpack.c.l.bf16 %v42
      %v47 = vrot.slane %v43, 1
      %v48 = vrot.slane %v43, 2
      %v49 = vrot.slane %v43, 3
      %v50 = vrot.slane %v43, 4
      %v51 = vrot.slane %v43, 5
      %v52 = vrot.slane %v43, 6
      %v53 = vrot.slane %v43, 7
      %v54 = vrot.slane %v44, 1
      %v55 = vrot.slane %v44, 2
      %v56 = vrot.slane %v44, 3
      %v57 = vrot.slane %v44, 4
      %v58 = vrot.slane %v44, 5
      %v59 = vrot.slane %v44, 6
      %v60 = vrot.slane %v44, 7
      %vm75 = vcmask 516096
      %v76 = vsel %vm75, %v43, 0.0
      %77 = vadd.xlane.f32.xlu0 %v76
      %v78 = vpop.xlane.xlu0 %77
      %v79 = vsel %vm75, %v47, 0.0
      %80 = vadd.xlane.f32.xlu0 %v79
      %v81 = vpop.xlane.xlu0 %80
      %v82 = vsel %vm75, %v48, 0.0
      %83 = vadd.xlane.f32.xlu0 %v82
      %v84 = vpop.xlane.xlu0 %83
      %v85 = vsel %vm75, %v49, 0.0
      %86 = vadd.xlane.f32.xlu0 %v85
      %v87 = vpop.xlane.xlu0 %86
      %v88 = vsel %vm75, %v50, 0.0
      %89 = vadd.xlane.f32.xlu0 %v88
      %v90 = vpop.xlane.xlu0 %89
      %v91 = vsel %vm75, %v51, 0.0
      %92 = vadd.xlane.f32.xlu0 %v91
      %v93 = vpop.xlane.xlu0 %92
      %v94 = vsel %vm75, %v52, 0.0
      %95 = vadd.xlane.f32.xlu0 %v94
      %v96 = vpop.xlane.xlu0 %95
      %v97 = vsel %vm75, %v53, 0.0
      %98 = vadd.xlane.f32.xlu0 %v97
      %v99 = vpop.xlane.xlu0 %98
      %v100 = vsel %vm75, %v44, 0.0
      %101 = vadd.xlane.f32.xlu0 %v100
      %v102 = vpop.xlane.xlu0 %101
      %v103 = vsel %vm75, %v54, 0.0
      %104 = vadd.xlane.f32.xlu0 %v103
      %v105 = vpop.xlane.xlu0 %104
      %v106 = vsel %vm75, %v55, 0.0
      %107 = vadd.xlane.f32.xlu0 %v106
      %v108 = vpop.xlane.xlu0 %107
      %v109 = vsel %vm75, %v56, 0.0
      %110 = vadd.xlane.f32.xlu0 %v109
      %v111 = vpop.xlane.xlu0 %110
      %v112 = vsel %vm75, %v57, 0.0
      %113 = vadd.xlane.f32.xlu0 %v112
      %v114 = vpop.xlane.xlu0 %113
      %v115 = vsel %vm75, %v58, 0.0
      %116 = vadd.xlane.f32.xlu0 %v115
      %v117 = vpop.xlane.xlu0 %116
      %v118 = vsel %vm75, %v59, 0.0
      %119 = vadd.xlane.f32.xlu0 %v118
      %v120 = vpop.xlane.xlu0 %119
      %v121 = vsel %vm75, %v60, 0.0
      %122 = vadd.xlane.f32.xlu0 %v121
      %v123 = vpop.xlane.xlu0 %122
      %v124 = vrcp.pop 64.0
      %v125 = vmul.f32 64.0, %v124
      %v126 = vsub.f32 1.0, %v125
      %v127 = vmul.f32 %v124, %v126
      %v128 = vadd.f32 %v124, %v127
      %vm129 = vweird.f32 %v124
      %v130 = vsel %vm129, %v124, %v128
      %v131 = vmul.f32 %v78, %v130
      %v132 = vmul.f32 %v81, %v130
      %v133 = vmul.f32 %v84, %v130
      %v134 = vmul.f32 %v87, %v130
      %v135 = vmul.f32 %v90, %v130
      %v136 = vmul.f32 %v93, %v130
      %v137 = vmul.f32 %v96, %v130
      %v138 = vmul.f32 %v99, %v130
      %v139 = vmul.f32 %v102, %v130
      %v140 = vmul.f32 %v105, %v130
      %v141 = vmul.f32 %v108, %v130
      %v142 = vmul.f32 %v111, %v130
      %v143 = vmul.f32 %v114, %v130
      %v144 = vmul.f32 %v117, %v130
      %v145 = vmul.f32 %v120, %v130
      %v146 = vmul.f32 %v123, %v130
      %v147 = vsub.f32 %v43, %v131
      %v148 = vsub.f32 %v47, %v132
      %v149 = vsub.f32 %v48, %v133
      %v150 = vsub.f32 %v49, %v134
      %v151 = vsub.f32 %v50, %v135
      %v152 = vsub.f32 %v51, %v136
      %v153 = vsub.f32 %v52, %v137
      %v154 = vsub.f32 %v53, %v138
      %v155 = vsub.f32 %v44, %v139
      %v156 = vsub.f32 %v54, %v140
      %v157 = vsub.f32 %v55, %v141
      %v158 = vsub.f32 %v56, %v142
      %v159 = vsub.f32 %v57, %v143
      %v160 = vsub.f32 %v58, %v144
      %v161 = vsub.f32 %v59, %v145
      %v162 = vsub.f32 %v60, %v146
      %v163 = vmul.f32 %v147, %v147
      %v164 = vmul.f32 %v148, %v148
      %v165 = vmul.f32 %v149, %v149
      %v166 = vmul.f32 %v150, %v150
      %v167 = vmul.f32 %v151, %v151
      %v168 = vmul.f32 %v152, %v152
      %v169 = vmul.f32 %v153, %v153
      %v170 = vmul.f32 %v154, %v154
      %v171 = vmul.f32 %v155, %v155
      %v172 = vmul.f32 %v156, %v156
      %v173 = vmul.f32 %v157, %v157
      %v174 = vmul.f32 %v158, %v158
      %v175 = vmul.f32 %v159, %v159
      %v176 = vmul.f32 %v160, %v160
      %v177 = vmul.f32 %v161, %v161
      %v178 = vmul.f32 %v162, %v162
      %v179 = vsel %vm75, %v163, 0.0
      %180 = vadd.xlane.f32.xlu0 %v179
      %v181 = vpop.xlane.xlu0 %180
      %v182 = vsel %vm75, %v164, 0.0
      %183 = vadd.xlane.f32.xlu0 %v182
      %v184 = vpop.xlane.xlu0 %183
      %v185 = vsel %vm75, %v165, 0.0
      %186 = vadd.xlane.f32.xlu0 %v185
      %v187 = vpop.xlane.xlu0 %186
      %v188 = vsel %vm75, %v166, 0.0
      %189 = vadd.xlane.f32.xlu0 %v188
      %v190 = vpop.xlane.xlu0 %189
      %v191 = vsel %vm75, %v167, 0.0
      %192 = vadd.xlane.f32.xlu0 %v191
      %v193 = vpop.xlane.xlu0 %192
      %v194 = vsel %vm75, %v168, 0.0
      %195 = vadd.xlane.f32.xlu0 %v194
      %v196 = vpop.xlane.xlu0 %195
      %v197 = vsel %vm75, %v169, 0.0
      %198 = vadd.xlane.f32.xlu0 %v197
      %v199 = vpop.xlane.xlu0 %198
      %v200 = vsel %vm75, %v170, 0.0
      %201 = vadd.xlane.f32.xlu0 %v200
      %v202 = vpop.xlane.xlu0 %201
      %v203 = vsel %vm75, %v171, 0.0
      %204 = vadd.xlane.f32.xlu0 %v203
      %v205 = vpop.xlane.xlu0 %204
      %v206 = vsel %vm75, %v172, 0.0
      %207 = vadd.xlane.f32.xlu0 %v206
      %v208 = vpop.xlane.xlu0 %207
      %v209 = vsel %vm75, %v173, 0.0
      %210 = vadd.xlane.f32.xlu0 %v209
      %v211 = vpop.xlane.xlu0 %210
      %v212 = vsel %vm75, %v174, 0.0
      %213 = vadd.xlane.f32.xlu0 %v212
      %v214 = vpop.xlane.xlu0 %213
      %v215 = vsel %vm75, %v175, 0.0
      %216 = vadd.xlane.f32.xlu0 %v215
      %v217 = vpop.xlane.xlu0 %216
      %v218 = vsel %vm75, %v176, 0.0
      %219 = vadd.xlane.f32.xlu0 %v218
      %v220 = vpop.xlane.xlu0 %219
      %v221 = vsel %vm75, %v177, 0.0
      %222 = vadd.xlane.f32.xlu0 %v221
      %v223 = vpop.xlane.xlu0 %222
      %v224 = vsel %vm75, %v178, 0.0
      %225 = vadd.xlane.f32.xlu0 %v224
      %v226 = vpop.xlane.xlu0 %225
      %v227 = vmul.f32 %v181, %v130
      %v228 = vmul.f32 %v184, %v130
      %v229 = vmul.f32 %v187, %v130
      %v230 = vmul.f32 %v190, %v130
      %v231 = vmul.f32 %v193, %v130
      %v232 = vmul.f32 %v196, %v130
      %v233 = vmul.f32 %v199, %v130
      %v234 = vmul.f32 %v202, %v130
      %v235 = vmul.f32 %v205, %v130
      %v236 = vmul.f32 %v208, %v130
      %v237 = vmul.f32 %v211, %v130
      %v238 = vmul.f32 %v214, %v130
      %v239 = vmul.f32 %v217, %v130
      %v240 = vmul.f32 %v220, %v130
      %v241 = vmul.f32 %v223, %v130
      %v242 = vmul.f32 %v226, %v130
      %v243 = vadd.f32 %v227, 0.00064
      %v244 = vadd.f32 %v228, 0.00064
      %v245 = vadd.f32 %v229, 0.00064
      %v246 = vadd.f32 %v230, 0.00064
      %v247 = vadd.f32 %v231, 0.00064
      %v248 = vadd.f32 %v232, 0.00064
      %v249 = vadd.f32 %v233, 0.00064
      %v250 = vadd.f32 %v234, 0.00064
      %v251 = vadd.f32 %v235, 0.00064
      %v252 = vadd.f32 %v236, 0.00064
      %v253 = vadd.f32 %v237, 0.00064
      %v254 = vadd.f32 %v238, 0.00064
      %v255 = vadd.f32 %v239, 0.00064
      %v256 = vadd.f32 %v240, 0.00064
      %v257 = vadd.f32 %v241, 0.00064
      %v258 = vadd.f32 %v242, 0.00064
      %v259 = vrsqrt.pop %v243
      %v260 = vmul.f32 %v259, %v243
      %v261 = vmul.f32 %v260, %v259
      %v262 = vmul.f32 0.5, %v261
      %v263 = vsub.f32 1.5, %v262
      %v264 = vmul.f32 %v259, %v263
      %vm265 = vweird.f32 %v243
      %vm266 = vweird.f32 %v259
      %vm267 = vmor %vm265, %vm266
      %v268 = vsel %vm267, %v259, %v264
      %v269 = vrsqrt.pop %v244
      %v270 = vmul.f32 %v269, %v244
      %v271 = vmul.f32 %v270, %v269
      %v272 = vmul.f32 0.5, %v271
      %v273 = vsub.f32 1.5, %v272
      %v274 = vmul.f32 %v269, %v273
      %vm275 = vweird.f32 %v244
      %vm276 = vweird.f32 %v269
      %vm277 = vmor %vm275, %vm276
      %v278 = vsel %vm277, %v269, %v274
      %v279 = vrsqrt.pop %v245
      %v280 = vmul.f32 %v279, %v245
      %v281 = vmul.f32 %v280, %v279
      %v282 = vmul.f32 0.5, %v281
      %v283 = vsub.f32 1.5, %v282
      %v284 = vmul.f32 %v279, %v283
      %vm285 = vweird.f32 %v245
      %vm286 = vweird.f32 %v279
      %vm287 = vmor %vm285, %vm286
      %v288 = vsel %vm287, %v279, %v284
      %v289 = vrsqrt.pop %v246
      %v290 = vmul.f32 %v289, %v246
      %v291 = vmul.f32 %v290, %v289
      %v292 = vmul.f32 0.5, %v291
      %v293 = vsub.f32 1.5, %v292
      %v294 = vmul.f32 %v289, %v293
      %vm295 = vweird.f32 %v246
      %vm296 = vweird.f32 %v289
      %vm297 = vmor %vm295, %vm296
      %v298 = vsel %vm297, %v289, %v294
      %v299 = vrsqrt.pop %v247
      %v300 = vmul.f32 %v299, %v247
      %v301 = vmul.f32 %v300, %v299
      %v302 = vmul.f32 0.5, %v301
      %v303 = vsub.f32 1.5, %v302
      %v304 = vmul.f32 %v299, %v303
      %vm305 = vweird.f32 %v247
      %vm306 = vweird.f32 %v299
      %vm307 = vmor %vm305, %vm306
      %v308 = vsel %vm307, %v299, %v304
      %v309 = vrsqrt.pop %v248
      %v310 = vmul.f32 %v309, %v248
      %v311 = vmul.f32 %v310, %v309
      %v312 = vmul.f32 0.5, %v311
      %v313 = vsub.f32 1.5, %v312
      %v314 = vmul.f32 %v309, %v313
      %vm315 = vweird.f32 %v248
      %vm316 = vweird.f32 %v309
      %vm317 = vmor %vm315, %vm316
      %v318 = vsel %vm317, %v309, %v314
      %v319 = vrsqrt.pop %v249
      %v320 = vmul.f32 %v319, %v249
      %v321 = vmul.f32 %v320, %v319
      %v322 = vmul.f32 0.5, %v321
      %v323 = vsub.f32 1.5, %v322
      %v324 = vmul.f32 %v319, %v323
      %vm325 = vweird.f32 %v249
      %vm326 = vweird.f32 %v319
      %vm327 = vmor %vm325, %vm326
      %v328 = vsel %vm327, %v319, %v324
      %v329 = vrsqrt.pop %v250
      %v330 = vmul.f32 %v329, %v250
      %v331 = vmul.f32 %v330, %v329
      %v332 = vmul.f32 0.5, %v331
      %v333 = vsub.f32 1.5, %v332
      %v334 = vmul.f32 %v329, %v333
      %vm335 = vweird.f32 %v250
      %vm336 = vweird.f32 %v329
      %vm337 = vmor %vm335, %vm336
      %v338 = vsel %vm337, %v329, %v334
      %v339 = vrsqrt.pop %v251
      %v340 = vmul.f32 %v339, %v251
      %v341 = vmul.f32 %v340, %v339
      %v342 = vmul.f32 0.5, %v341
      %v343 = vsub.f32 1.5, %v342
      %v344 = vmul.f32 %v339, %v343
      %vm345 = vweird.f32 %v251
      %vm346 = vweird.f32 %v339
      %vm347 = vmor %vm345, %vm346
      %v348 = vsel %vm347, %v339, %v344
      %v349 = vrsqrt.pop %v252
      %v350 = vmul.f32 %v349, %v252
      %v351 = vmul.f32 %v350, %v349
      %v352 = vmul.f32 0.5, %v351
      %v353 = vsub.f32 1.5, %v352
      %v354 = vmul.f32 %v349, %v353
      %vm355 = vweird.f32 %v252
      %vm356 = vweird.f32 %v349
      %vm357 = vmor %vm355, %vm356
      %v358 = vsel %vm357, %v349, %v354
      %v359 = vrsqrt.pop %v253
      %v360 = vmul.f32 %v359, %v253
      %v361 = vmul.f32 %v360, %v359
      %v362 = vmul.f32 0.5, %v361
      %v363 = vsub.f32 1.5, %v362
      %v364 = vmul.f32 %v359, %v363
      %vm365 = vweird.f32 %v253
      %vm366 = vweird.f32 %v359
      %vm367 = vmor %vm365, %vm366
      %v368 = vsel %vm367, %v359, %v364
      %v369 = vrsqrt.pop %v254
      %v370 = vmul.f32 %v369, %v254
      %v371 = vmul.f32 %v370, %v369
      %v372 = vmul.f32 0.5, %v371
      %v373 = vsub.f32 1.5, %v372
      %v374 = vmul.f32 %v369, %v373
      %vm375 = vweird.f32 %v254
      %vm376 = vweird.f32 %v369
      %vm377 = vmor %vm375, %vm376
      %v378 = vsel %vm377, %v369, %v374
      %v379 = vrsqrt.pop %v255
      %v380 = vmul.f32 %v379, %v255
      %v381 = vmul.f32 %v380, %v379
      %v382 = vmul.f32 0.5, %v381
      %v383 = vsub.f32 1.5, %v382
      %v384 = vmul.f32 %v379, %v383
      %vm385 = vweird.f32 %v255
      %vm386 = vweird.f32 %v379
      %vm387 = vmor %vm385, %vm386
      %v388 = vsel %vm387, %v379, %v384
      %v389 = vrsqrt.pop %v256
      %v390 = vmul.f32 %v389, %v256
      %v391 = vmul.f32 %v390, %v389
      %v392 = vmul.f32 0.5, %v391
      %v393 = vsub.f32 1.5, %v392
      %v394 = vmul.f32 %v389, %v393
      %vm395 = vweird.f32 %v256
      %vm396 = vweird.f32 %v389
      %vm397 = vmor %vm395, %vm396
      %v398 = vsel %vm397, %v389, %v394
      %v399 = vrsqrt.pop %v257
      %v400 = vmul.f32 %v399, %v257
      %v401 = vmul.f32 %v400, %v399
      %v402 = vmul.f32 0.5, %v401
      %v403 = vsub.f32 1.5, %v402
      %v404 = vmul.f32 %v399, %v403
      %vm405 = vweird.f32 %v257
      %vm406 = vweird.f32 %v399
      %vm407 = vmor %vm405, %vm406
      %v408 = vsel %vm407, %v399, %v404
      %v409 = vrsqrt.pop %v258
      %v410 = vmul.f32 %v409, %v258
      %v411 = vmul.f32 %v410, %v409
      %v412 = vmul.f32 0.5, %v411
      %v413 = vsub.f32 1.5, %v412
      %v414 = vmul.f32 %v409, %v413
      %vm415 = vweird.f32 %v258
      %vm416 = vweird.f32 %v409
      %vm417 = vmor %vm415, %vm416
      %v418 = vsel %vm417, %v409, %v414
      %v419 = vmul.f32 %v147, %v268
      %v420 = vmul.f32 %v148, %v278
      %v421 = vmul.f32 %v149, %v288
      %v422 = vmul.f32 %v150, %v298
      %v423 = vmul.f32 %v151, %v308
      %v424 = vmul.f32 %v152, %v318
      %v425 = vmul.f32 %v153, %v328
      %v426 = vmul.f32 %v154, %v338
      %v427 = vmul.f32 %v155, %v348
      %v428 = vmul.f32 %v156, %v358
      %v429 = vmul.f32 %v157, %v368
      %v430 = vmul.f32 %v158, %v378
      %v431 = vmul.f32 %v159, %v388
      %v432 = vmul.f32 %v160, %v398
      %v433 = vmul.f32 %v161, %v408
      %v434 = vmul.f32 %v162, %v418
      %v435 = vld [vmem:[%s2] sm:$0x1]
      %v437 = vperm.slane %v435, 0
      %v439 = vrot.slane %v437, 1
      %v440 = vrot.slane %v437, 2
      %v441 = vrot.slane %v437, 3
      %v442 = vrot.slane %v437, 4
      %v443 = vrot.slane %v437, 5
      %v444 = vrot.slane %v437, 6
      %v445 = vrot.slane %v437, 7
      %v453 = vmul.f32 %v419, %v437
      %v454 = vmul.f32 %v420, %v439
      %v455 = vmul.f32 %v421, %v440
      %v456 = vmul.f32 %v422, %v441
      %v457 = vmul.f32 %v423, %v442
      %v458 = vmul.f32 %v424, %v443
      %v459 = vmul.f32 %v425, %v444
      %v460 = vmul.f32 %v426, %v445
      %v461 = vmul.f32 %v427, %v437
      %v462 = vmul.f32 %v428, %v439
      %v463 = vmul.f32 %v429, %v440
      %v464 = vmul.f32 %v430, %v441
      %v465 = vmul.f32 %v431, %v442
      %v466 = vmul.f32 %v432, %v443
      %v467 = vmul.f32 %v433, %v444
      %v468 = vmul.f32 %v434, %v445
      %v469 = vld [vmem:[%s3] sm:$0x1]
      %v471 = vperm.slane %v469, 0
      %v473 = vrot.slane %v471, 1
      %v474 = vrot.slane %v471, 2
      %v475 = vrot.slane %v471, 3
      %v476 = vrot.slane %v471, 4
      %v477 = vrot.slane %v471, 5
      %v478 = vrot.slane %v471, 6
      %v479 = vrot.slane %v471, 7
      %v487 = vadd.f32 %v453, %v471
      %v488 = vadd.f32 %v454, %v473
      %v489 = vadd.f32 %v455, %v474
      %v490 = vadd.f32 %v456, %v475
      %v491 = vadd.f32 %v457, %v476
      %v492 = vadd.f32 %v458, %v477
      %v493 = vadd.f32 %v459, %v478
      %v494 = vadd.f32 %v460, %v479
      %v495 = vadd.f32 %v461, %v471
      %v496 = vadd.f32 %v462, %v473
      %v497 = vadd.f32 %v463, %v474
      %v498 = vadd.f32 %v464, %v475
      %v499 = vadd.f32 %v465, %v476
      %v500 = vadd.f32 %v466, %v477
      %v501 = vadd.f32 %v467, %v478
      %v502 = vadd.f32 %v468, %v479
      %v503 = vld [vmem:[%s1] sm:$0xf]
      %v504 = vld [vmem:[%s1 + $0x4] sm:$0xf]
      %v505 = vunpack.c.l.bf16 %v503
      %v506 = vunpack.c.l.bf16 %v504
      %v509 = vrot.slane %v505, 1
      %v510 = vrot.slane %v505, 2
      %v511 = vrot.slane %v505, 3
      %v512 = vrot.slane %v505, 4
      %v513 = vrot.slane %v505, 5
      %v514 = vrot.slane %v505, 6
      %v515 = vrot.slane %v505, 7
      %v516 = vrot.slane %v506, 1
      %v517 = vrot.slane %v506, 2
      %v518 = vrot.slane %v506, 3
      %v519 = vrot.slane %v506, 4
      %v520 = vrot.slane %v506, 5
      %v521 = vrot.slane %v506, 6
      %v522 = vrot.slane %v506, 7
      %v537 = vmul.f32 %v487, %v505
      %v538 = vmul.f32 %v488, %v509
      %v539 = vmul.f32 %v489, %v510
      %v540 = vmul.f32 %v490, %v511
      %v541 = vmul.f32 %v491, %v512
      %v542 = vmul.f32 %v492, %v513
      %v543 = vmul.f32 %v493, %v514
      %v544 = vmul.f32 %v494, %v515
      %v545 = vmul.f32 %v495, %v506
      %v546 = vmul.f32 %v496, %v516
      %v547 = vmul.f32 %v497, %v517
      %v548 = vmul.f32 %v498, %v518
      %v549 = vmul.f32 %v499, %v519
      %v550 = vmul.f32 %v500, %v520
      %v551 = vmul.f32 %v501, %v521
      %v552 = vmul.f32 %v502, %v522
      %v553 = vpack.c.bf16 %v537, %v537
      %v554 = vpack.c.bf16 %v538, %v538
      %v555 = vpack.c.bf16 %v539, %v539
      %v556 = vpack.c.bf16 %v540, %v540
      %v557 = vpack.c.bf16 %v541, %v541
      %v558 = vpack.c.bf16 %v542, %v542
      %v559 = vpack.c.bf16 %v543, %v543
      %v560 = vpack.c.bf16 %v544, %v544
      %v561 = vpack.c.bf16 %v545, %v545
      %v562 = vpack.c.bf16 %v546, %v546
      %v563 = vpack.c.bf16 %v547, %v547
      %v564 = vpack.c.bf16 %v548, %v548
      %v565 = vpack.c.bf16 %v549, %v549
      %v566 = vpack.c.bf16 %v550, %v550
      %v567 = vpack.c.bf16 %v551, %v551
      %v568 = vpack.c.bf16 %v552, %v552
      %v585 = vunpack.c.l.b16 %v553
      %v586 = vunpack.c.l.b16 %v554
      %v587 = vunpack.c.l.b16 %v555
      %v588 = vunpack.c.l.b16 %v556
      %v589 = vunpack.c.l.b16 %v557
      %v590 = vunpack.c.l.b16 %v558
      %v591 = vunpack.c.l.b16 %v559
      %v592 = vunpack.c.l.b16 %v560
      %v593 = vunpack.c.l.b16 %v561
      %v594 = vunpack.c.l.b16 %v562
      %v595 = vunpack.c.l.b16 %v563
      %v596 = vunpack.c.l.b16 %v564
      %v597 = vunpack.c.l.b16 %v565
      %v598 = vunpack.c.l.b16 %v566
      %v599 = vunpack.c.l.b16 %v567
      %v600 = vunpack.c.l.b16 %v568
      %v601 = vrot.slane %v586, 7
      %vm602 = vcmask 1041409
      %v603 = vsel %vm602, %v601, %v585
      %v604 = vrot.slane %v587, 6
      %vm605 = vcmask 1042434
      %v606 = vsel %vm605, %v604, %v603
      %v607 = vrot.slane %v588, 5
      %vm608 = vcmask 1043459
      %v609 = vsel %vm608, %v607, %v606
      %v610 = vrot.slane %v589, 4
      %vm611 = vcmask 1044484
      %v612 = vsel %vm611, %v610, %v609
      %v613 = vrot.slane %v590, 3
      %vm614 = vcmask 1045509
      %v615 = vsel %vm614, %v613, %v612
      %v616 = vrot.slane %v591, 2
      %vm617 = vcmask 1046534
      %v618 = vsel %vm617, %v616, %v615
      %v619 = vrot.slane %v592, 1
      %vm620 = vcmask 1047559
      %v621 = vsel %vm620, %v619, %v618
      %v622 = vrot.slane %v594, 7
      %v623 = vsel %vm602, %v622, %v593
      %v624 = vrot.slane %v595, 6
      %v625 = vsel %vm605, %v624, %v623
      %v626 = vrot.slane %v596, 5
      %v627 = vsel %vm608, %v626, %v625
      %v628 = vrot.slane %v597, 4
      %v629 = vsel %vm611, %v628, %v627
      %v630 = vrot.slane %v598, 3
      %v631 = vsel %vm614, %v630, %v629
      %v632 = vrot.slane %v599, 2
      %v633 = vsel %vm617, %v632, %v631
      %v634 = vrot.slane %v600, 1
      %v635 = vsel %vm620, %v634, %v633
      %v636 = vpack.c.b16 %v621, %v621
      %v637 = vpack.c.b16 %v635, %v635
      %vm640 = vcmask 519168
      %641 = vst.msk [vmem:[#allocation2] sm:$0xf] %vm640, %v636
      %642 = vst.msk [vmem:[#allocation2 + $0x4] sm:$0xf] %vm640, %v637
    $region29: #{_lambda_.23} parent=1 // pred_fallthru
      _
    %v643 = vld [vmem:[#allocation2] sm:$0xf]
    %v644 = vld [vmem:[#allocation2 + $0x4] sm:$0xf]
    %v645 = vld [vmem:[#allocation3] sm:$0xf]
    %v646 = vld [vmem:[#allocation3 + $0x4] sm:$0xf]
    %v647 = vld [vmem:[#allocation3 + $0x8] sm:$0xf]
    %v648 = vld [vmem:[#allocation3 + $0xc] sm:$0xf]
    %v649 = vld [vmem:[#allocation3 + $0x10] sm:$0xf]
    %v650 = vld [vmem:[#allocation3 + $0x14] sm:$0xf]
    %v651 = vld [vmem:[#allocation3 + $0x18] sm:$0xf]
    %v652 = vld [vmem:[#allocation3 + $0x1c] sm:$0xf]
    %v655 = vunpack.c.l.b16 %v643
    %v656 = vunpack.c.l.b16 %v644
    %v657 = vpack.c.b16 %v656, %v655
    %v666 = vunpack.c.l.b16 %v645
    %v667 = vunpack.c.l.b16 %v646
    %v668 = vunpack.c.l.b16 %v647
    %v669 = vunpack.c.l.b16 %v648
    %v670 = vunpack.c.l.b16 %v649
    %v671 = vunpack.c.l.b16 %v650
    %v672 = vunpack.c.l.b16 %v651
    %v673 = vunpack.c.l.b16 %v652
    %v674 = vpack.c.b16 %v667, %v666
    %v675 = vpack.c.b16 %v669, %v668
    %v676 = vpack.c.b16 %v671, %v670
    %v677 = vpack.c.b16 %v673, %v672
    %vm682 = vcmask 523264
    %v684 = vsel %vm682, %v657, 0
    %686 = vmatpush.bf16.msra.mxu0 0
    %687 = vmatpush.bf16.msra.mxu0 0
    %688 = vmatpush.bf16.msra.mxu0 0
    %689 = vmatpush.bf16.msra.mxu0 0
    %690 = vmatpush.bf16.msra.mxu0 %v677
    %691 = vmatpush.bf16.msra.mxu0 %v676
    %692 = vmatpush.bf16.msra.mxu0 %v675
    %693 = vmatpush.bf16.msra.mxu0 %v674
    %694 = vmatmul.bf16.gmra.mxu0 %v684
    %v695 = vpop.f32.mrf.mxu0
    %v696 = vadd.f32 0.0, %v695
    %v697 = vpop.f32.mrf.mxu0
    %v698 = vadd.f32 0.0, %v697
    %699 = vdwg.mxu0
    %700 = vst.msk [vmem:[%s5] sm:$0xff] %vm682, %v696
    %701 = vst.msk [vmem:[%s5 + $0x8] sm:$0xff] %vm682, %v698
    // Predicated region
    $region30: #{_lambda_.23} parent=1 // pred_check
      _
    $region31: #{_lambda_.23} parent=1 // pred_check_branch
      %703 = sbr.rel (0) target = $region33
    $region32: #{_lambda_.23} parent=1 // pred_region
      _
    $region33: #{_lambda_.23} parent=1 // pred_fallthru
      _
    // Predicated region
    $region34: #{_lambda_.23} parent=1 // pred_check
      _
    $region35: #{_lambda_.23} parent=1 // pred_check_branch
      %705 = sbr.rel (0) target = $region37
    $region36: #{_lambda_.23} parent=1 // pred_region
      _
    $region37: #{_lambda_.23} parent=1 // pred_fallthru
      _
    %706 = vsyncpa [#allocation4], 1

// kernel: _lambda_.26
$region0: #{_lambda_.26}
  #allocation0 [shape = 'u32[]', space=smem, size = 0x4, offset = 0x4, fixed_abs, tag = 'smem constant byte address 0x4 - core index']
  #allocation1 [shape = 'u32[72,128]{1,0:T(1,128)}', space=vmem, size = 0x9000, scoped, tag = 'internal scratch']
  #allocation2 [shape = 'f32[16,64]{1,0:T(8,128)}', space=vmem, size = 0x2000, scoped, tag = 'scratch operand']
  %s0 = inlined_call_operand.vmem [shape: bf16[16,64], index: 0, kind: input, shape index: {}]
  %s1 = inlined_call_operand.vmem [shape: bf16[16,64], index: 1, kind: input, shape index: {}]
  %s2 = inlined_call_operand.vmem [shape: f32[1,64], index: 2, kind: input, shape index: {}]
  %s3 = inlined_call_operand.vmem [shape: bf16[64,64], index: 3, kind: input, shape index: {}]
  %s4 = inlined_call_operand.vmem [shape: bf16[16,64], index: 4, kind: output, shape index: {}]
  %s5 = sld [smem:[#allocation0]]
  $region34: #{_lambda_.26} parent=0
    _
  %s7 = ssub.s32 1, %s5
  %s8 = scalar_select 0, %s7, %s5
  // Predicated region
  $region2: #{_lambda_.26} parent=0 // pred_check
    _
  $region3: #{_lambda_.26} parent=0 // pred_check_branch
    %10 = sbr.rel (0) target = $region5
  $region4: #{_lambda_.26} parent=0 // pred_region
    _
  $region5: #{_lambda_.26} parent=0 // pred_fallthru
    _
  // Predicated region
  $region6: #{_lambda_.26} parent=0 // pred_check
    _
  $region7: #{_lambda_.26} parent=0 // pred_check_branch
    %12 = sbr.rel (0) target = $region9
  $region8: #{_lambda_.26} parent=0 // pred_region
    _
  $region9: #{_lambda_.26} parent=0 // pred_fallthru
    _
  // Predicated region
  $region10: #{_lambda_.26} parent=0 // pred_check
    _
  $region11: #{_lambda_.26} parent=0 // pred_check_branch
    %14 = sbr.rel (0) target = $region13
  $region12: #{_lambda_.26} parent=0 // pred_region
    _
  $region13: #{_lambda_.26} parent=0 // pred_fallthru
    _
  // Predicated region
  $region14: #{_lambda_.26} parent=0 // pred_check
    _
  $region15: #{_lambda_.26} parent=0 // pred_check_branch
    %16 = sbr.rel (0) target = $region17
  $region16: #{_lambda_.26} parent=0 // pred_region
    _
  $region17: #{_lambda_.26} parent=0 // pred_fallthru
    _
  %p18 = scmp.eq.s32.totalorder 0, 0
  // Predicated region
  $region18: #{_lambda_.26} parent=0 // pred_check
    %p19 = pneg %p18
  $region19: #{_lambda_.26} parent=0 // pred_check_branch
    %21 = sbr.rel (%p19) target = $region21
  $region20: #{_lambda_.26} parent=0 // pred_region
    %vm22 = vcmask 523264
    %23 = vst.msk [vmem:[#allocation2] sm:$0xff] %vm22, 0.0
    %24 = vst.msk [vmem:[#allocation2 + $0x8] sm:$0xff] %vm22, 0.0
  $region21: #{_lambda_.26} parent=0 // pred_fallthru
    _
  %v25 = vld [vmem:[%s2] sm:$0x1]
  %v26 = vld [vmem:[%s0] sm:$0xf]
  %v27 = vld [vmem:[%s0 + $0x4] sm:$0xf]
  %v28 = vunpack.c.l.bf16 %v26
  %v29 = vunpack.c.l.bf16 %v27
  %v30 = vld [vmem:[%s1] sm:$0xf]
  %v31 = vld [vmem:[%s1 + $0x4] sm:$0xf]
  %v32 = vunpack.c.l.bf16 %v30
  %v33 = vunpack.c.l.bf16 %v31
  %v35 = vperm.slane %v25, 0
  %v37 = vmul.f32 %v32, %v35
  %v38 = vmul.f32 %v33, %v35
  %v39 = vadd.f32 %v28, %v37
  %v40 = vadd.f32 %v29, %v38
  %v41 = vld [vmem:[#allocation2] sm:$0xff]
  %v42 = vld [vmem:[#allocation2 + $0x8] sm:$0xff]
  %v43 = vpack.c.bf16 %v40, %v39
  %v44 = vld [vmem:[%s3] sm:$0xf]
  %v45 = vld [vmem:[%s3 + $0x4] sm:$0xf]
  %v46 = vld [vmem:[%s3 + $0x8] sm:$0xf]
  %v47 = vld [vmem:[%s3 + $0xc] sm:$0xf]
  %v48 = vld [vmem:[%s3 + $0x10] sm:$0xf]
  %v49 = vld [vmem:[%s3 + $0x14] sm:$0xf]
  %v50 = vld [vmem:[%s3 + $0x18] sm:$0xf]
  %v51 = vld [vmem:[%s3 + $0x1c] sm:$0xf]
  %v60 = vunpack.c.l.b16 %v44
  %v61 = vunpack.c.l.b16 %v45
  %v62 = vunpack.c.l.b16 %v46
  %v63 = vunpack.c.l.b16 %v47
  %v64 = vunpack.c.l.b16 %v48
  %v65 = vunpack.c.l.b16 %v49
  %v66 = vunpack.c.l.b16 %v50
  %v67 = vunpack.c.l.b16 %v51
  %v68 = vpack.c.b16 %v61, %v60
  %v69 = vpack.c.b16 %v63, %v62
  %v70 = vpack.c.b16 %v65, %v64
  %v71 = vpack.c.b16 %v67, %v66
  %vm76 = vcmask 523264
  %v78 = vsel %vm76, %v43, 0
  %80 = vmatpush.bf16.msra.mxu0 0
  %81 = vmatpush.bf16.msra.mxu0 0
  %82 = vmatpush.bf16.msra.mxu0 0
  %83 = vmatpush.bf16.msra.mxu0 0
  %84 = vmatpush.bf16.msra.mxu0 %v71
  %85 = vmatpush.bf16.msra.mxu0 %v70
  %86 = vmatpush.bf16.msra.mxu0 %v69
  %87 = vmatpush.bf16.msra.mxu0 %v68
  %88 = vmatmul.bf16.gmra.mxu0 %v78
  %v89 = vpop.f32.mrf.mxu0
  %v90 = vadd.f32 0.0, %v89
  %v91 = vpop.f32.mrf.mxu0
  %v92 = vadd.f32 0.0, %v91
  %93 = vdwg.mxu0
  %v94 = vadd.f32 %v41, %v90
  %v95 = vadd.f32 %v42, %v92
  %96 = vst.msk [vmem:[#allocation2] sm:$0xff] %vm76, %v94
  %97 = vst.msk [vmem:[#allocation2 + $0x8] sm:$0xff] %vm76, %v95
  // Predicated region
  $region22: #{_lambda_.26} parent=0 // pred_check
    %p98 = pneg %p18
  $region23: #{_lambda_.26} parent=0 // pred_check_branch
    %100 = sbr.rel (%p98) target = $region25
  $region24: #{_lambda_.26} parent=0 // pred_region
    %v101 = vld [vmem:[#allocation2] sm:$0xff]
    %v102 = vld [vmem:[#allocation2 + $0x8] sm:$0xff]
    %v103 = vxor.u32 %v101, 2147483648
    %v104 = vxor.u32 %v102, 2147483648
    %v105 = vmul.f32 %v103, 1.442695
    %v106 = vpow.pop %v105
    %v107 = vmul.f32 %v104, 1.442695
    %v108 = vpow.pop %v107
    %v109 = vadd.f32 %v106, 1.0
    %v110 = vadd.f32 %v108, 1.0
    %v111 = vrcp.pop %v109
    %v112 = vmul.f32 %v109, %v111
    %v113 = vsub.f32 1.0, %v112
    %v114 = vmul.f32 %v111, %v113
    %v115 = vadd.f32 %v111, %v114
    %vm116 = vweird.f32 %v109
    %vm117 = vweird.f32 %v111
    %vm118 = vmor %vm116, %vm117
    %v119 = vsel %vm118, %v111, %v115
    %v120 = vand.u32 2147483647, %v109
    %vm121 = vcmp.eq.f32.partialorder %v120, 8.507059e+37
    %v122 = vand.u32 %v109, 2147483648
    %v123 = vor.u32 1.1754944e-38, %v122
    %v124 = vsel %vm121, %v123, %v119
    %v125 = vmul.f32 1.0, %v124
    %v126 = vrcp.pop %v110
    %v127 = vmul.f32 %v110, %v126
    %v128 = vsub.f32 1.0, %v127
    %v129 = vmul.f32 %v126, %v128
    %v130 = vadd.f32 %v126, %v129
    %vm131 = vweird.f32 %v110
    %vm132 = vweird.f32 %v126
    %vm133 = vmor %vm131, %vm132
    %v134 = vsel %vm133, %v126, %v130
    %v135 = vand.u32 2147483647, %v110
    %vm136 = vcmp.eq.f32.partialorder %v135, 8.507059e+37
    %v137 = vand.u32 %v110, 2147483648
    %v138 = vor.u32 1.1754944e-38, %v137
    %v139 = vsel %vm136, %v138, %v134
    %v140 = vmul.f32 1.0, %v139
    %v141 = vpack.c.bf16 %v125, %v125
    %v142 = vpack.c.bf16 %v140, %v140
    %vm143 = vcmask 519168
    %144 = vst.msk [vmem:[%s4] sm:$0xf] %vm143, %v141
    %145 = vst.msk [vmem:[%s4 + $0x4] sm:$0xf] %vm143, %v142
  $region25: #{_lambda_.26} parent=0 // pred_fallthru
    _
  // Predicated region
  $region26: #{_lambda_.26} parent=0 // pred_check
    _
  $region27: #{_lambda_.26} parent=0 // pred_check_branch
    %147 = sbr.rel (0) target = $region29
  $region28: #{_lambda_.26} parent=0 // pred_region
    _
  $region29: #{_lambda_.26} parent=0 // pred_fallthru
    _
  // Predicated region
  $region30: #{_lambda_.26} parent=0 // pred_check
    _
  $region31: #{_lambda_.26} parent=0 // pred_check_branch
    %149 = sbr.rel (0) target = $region33
  $region32: #{_lambda_.26} parent=0 // pred_region
    _
  $region33: #{_lambda_.26} parent=0 // pred_fallthru
    _

// kernel: _lambda_.25
$region0: #{_lambda_.25}
  #allocation0 [shape = 'u32[]', space=smem, size = 0x4, offset = 0x4, fixed_abs, tag = 'smem constant byte address 0x4 - core index']
  #allocation1 [shape = 'u32[72,128]{1,0:T(1,128)}', space=vmem, size = 0x9000, scoped, tag = 'internal scratch']
  #allocation2 [shape = 'f32[16,128]{1,0:T(8,128)}', space=vmem, size = 0x2000, scoped, tag = 'scratch operand']
  %s0 = inlined_call_operand.vmem [shape: bf16[16,64], index: 0, kind: input, shape index: {}]
  %s1 = inlined_call_operand.vmem [shape: bf16[16,64], index: 1, kind: input, shape index: {}]
  %s2 = inlined_call_operand.vmem [shape: f32[1,64], index: 2, kind: input, shape index: {}]
  %s3 = inlined_call_operand.hbm [shape: bf16[64,128], index: 3, kind: input, shape index: {}]
  %s4 = inlined_call_operand.vmem [shape: bf16[16,128], index: 4, kind: output, shape index: {}]
  %s5 = sld [smem:[#allocation0]]
  $region38: #{_lambda_.25} parent=0
    _
  %s7 = ssub.s32 1, %s5
  %s8 = scalar_select 0, %s7, %s5
  $region1: #{_lambda_.25} parent=0
    #allocation3 [shape = 'u8[16384]{0}', space=vmem, size = 0x4000, scoped, tag = 'input window, operand 3, single buffered']
    #allocation4 [shape = 's32[1]{0}', space=sflag, size = 0x4, scoped, tag = 'scoped memory for _lambda_.25']
    %9 = vsyncpa [#allocation4], 0
    // Predicated region
    $region2: #{_lambda_.25} parent=1 // pred_check
      _
    $region3: #{_lambda_.25} parent=1 // pred_check_branch
      %11 = sbr.rel (0) target = $region5
    $region4: #{_lambda_.25} parent=1 // pred_region
      _
    $region5: #{_lambda_.25} parent=1 // pred_fallthru
      _
    // Predicated region
    $region6: #{_lambda_.25} parent=1 // pred_check
      _
    $region7: #{_lambda_.25} parent=1 // pred_check_branch
      %13 = sbr.rel (0) target = $region9
    $region8: #{_lambda_.25} parent=1 // pred_region
      _
    $region9: #{_lambda_.25} parent=1 // pred_fallthru
      _
    // Predicated region
    $region10: #{_lambda_.25} parent=1 // pred_check
      _
    $region11: #{_lambda_.25} parent=1 // pred_check_branch
      %15 = sbr.rel (0) target = $region13
    $region12: #{_lambda_.25} parent=1 // pred_region
      _
    $region13: #{_lambda_.25} parent=1 // pred_fallthru
      _
    // Predicated region
    $region14: #{_lambda_.25} parent=1 // pred_check
      _
    $region15: #{_lambda_.25} parent=1 // pred_check_branch
      %17 = sbr.rel (0) target = $region17
    $region16: #{_lambda_.25} parent=1 // pred_region
      %19 = vsyncadd [#allocation4], 0
      %s20 = sshll.u32 %s3, 4
      %s21 = int_to_ptr.hbm [resolvable:$true] %s20
      %s22 = sshll.u32 [#allocation3], 4
      %s23 = int_to_ptr.vmem [resolvable:$true] %s22
      %28 = dma.hbm_to_vmem [thread:$0]  %s21, 512, %s23, [#allocation4], 64, 64, 4
    $region17: #{_lambda_.25} parent=1 // pred_fallthru
      _
    // Predicated region
    $region18: #{_lambda_.25} parent=1 // pred_check
      _
    $region19: #{_lambda_.25} parent=1 // pred_check_branch
      %30 = sbr.rel (0) target = $region21
    $region20: #{_lambda_.25} parent=1 // pred_region
      %32 = dma.done [#allocation4], 512
    $region21: #{_lambda_.25} parent=1 // pred_fallthru
      _
    %p34 = scmp.eq.s32.totalorder 0, 0
    // Predicated region
    $region22: #{_lambda_.25} parent=1 // pred_check
      %p35 = pneg %p34
    $region23: #{_lambda_.25} parent=1 // pred_check_branch
      %37 = sbr.rel (%p35) target = $region25
    $region24: #{_lambda_.25} parent=1 // pred_region
      %38 = vst [vmem:[#allocation2] sm:$0xff] 0.0
      %39 = vst [vmem:[#allocation2 + $0x8] sm:$0xff] 0.0
    $region25: #{_lambda_.25} parent=1 // pred_fallthru
      _
    %v40 = vld [vmem:[%s2] sm:$0x1]
    %v41 = vld [vmem:[%s0] sm:$0xf]
    %v42 = vld [vmem:[%s0 + $0x4] sm:$0xf]
    %v43 = vunpack.c.l.bf16 %v41
    %v44 = vunpack.c.l.bf16 %v42
    %v45 = vld [vmem:[%s1] sm:$0xf]
    %v46 = vld [vmem:[%s1 + $0x4] sm:$0xf]
    %v47 = vunpack.c.l.bf16 %v45
    %v48 = vunpack.c.l.bf16 %v46
    %v50 = vperm.slane %v40, 0
    %v52 = vmul.f32 %v47, %v50
    %v53 = vmul.f32 %v48, %v50
    %v54 = vadd.f32 %v43, %v52
    %v55 = vadd.f32 %v44, %v53
    %v56 = vld [vmem:[#allocation2] sm:$0xff]
    %v57 = vld [vmem:[#allocation2 + $0x8] sm:$0xff]
    %v58 = vpack.c.bf16 %v55, %v54
    %v59 = vld [vmem:[#allocation3] sm:$0xf]
    %v60 = vld [vmem:[#allocation3 + $0x4] sm:$0xf]
    %v61 = vld [vmem:[#allocation3 + $0x8] sm:$0xf]
    %v62 = vld [vmem:[#allocation3 + $0xc] sm:$0xf]
    %v63 = vld [vmem:[#allocation3 + $0x10] sm:$0xf]
    %v64 = vld [vmem:[#allocation3 + $0x14] sm:$0xf]
    %v65 = vld [vmem:[#allocation3 + $0x18] sm:$0xf]
    %v66 = vld [vmem:[#allocation3 + $0x1c] sm:$0xf]
    %v75 = vunpack.c.l.b16 %v59
    %v76 = vunpack.c.l.b16 %v60
    %v77 = vunpack.c.l.b16 %v61
    %v78 = vunpack.c.l.b16 %v62
    %v79 = vunpack.c.l.b16 %v63
    %v80 = vunpack.c.l.b16 %v64
    %v81 = vunpack.c.l.b16 %v65
    %v82 = vunpack.c.l.b16 %v66
    %v83 = vpack.c.b16 %v76, %v75
    %v84 = vpack.c.b16 %v78, %v77
    %v85 = vpack.c.b16 %v80, %v79
    %v86 = vpack.c.b16 %v82, %v81
    %vm91 = vcmask 523264
    %v93 = vsel %vm91, %v58, 0
    %95 = vmatpush.bf16.msra.mxu0 0
    %96 = vmatpush.bf16.msra.mxu0 0
    %97 = vmatpush.bf16.msra.mxu0 0
    %98 = vmatpush.bf16.msra.mxu0 0
    %99 = vmatpush.bf16.msra.mxu0 %v86
    %100 = vmatpush.bf16.msra.mxu0 %v85
    %101 = vmatpush.bf16.msra.mxu0 %v84
    %102 = vmatpush.bf16.msra.mxu0 %v83
    %103 = vmatmul.bf16.gmra.mxu0 %v93
    %v104 = vpop.f32.mrf.mxu0
    %v105 = vadd.f32 0.0, %v104
    %v106 = vpop.f32.mrf.mxu0
    %v107 = vadd.f32 0.0, %v106
    %108 = vdwg.mxu0
    %v109 = vadd.f32 %v56, %v105
    %v110 = vadd.f32 %v57, %v107
    %111 = vst [vmem:[#allocation2] sm:$0xff] %v109
    %112 = vst [vmem:[#allocation2 + $0x8] sm:$0xff] %v110
    // Predicated region
    $region26: #{_lambda_.25} parent=1 // pred_check
      %p113 = pneg %p34
    $region27: #{_lambda_.25} parent=1 // pred_check_branch
      %115 = sbr.rel (%p113) target = $region29
    $region28: #{_lambda_.25} parent=1 // pred_region
      %v116 = vld [vmem:[#allocation2] sm:$0xff]
      %v117 = vld [vmem:[#allocation2 + $0x8] sm:$0xff]
      %v118 = vmax.f32 %v116, 0.0
      %v119 = vmax.f32 %v117, 0.0
      %v120 = vmul.f32 %v118, %v118
      %v121 = vmul.f32 %v119, %v119
      %v122 = vpack.c.bf16 %v120, %v120
      %v123 = vpack.c.bf16 %v121, %v121
      %124 = vst [vmem:[%s4] sm:$0xf] %v122
      %125 = vst [vmem:[%s4 + $0x4] sm:$0xf] %v123
    $region29: #{_lambda_.25} parent=1 // pred_fallthru
      _
    // Predicated region
    $region30: #{_lambda_.25} parent=1 // pred_check
      _
    $region31: #{_lambda_.25} parent=1 // pred_check_branch
      %127 = sbr.rel (0) target = $region33
    $region32: #{_lambda_.25} parent=1 // pred_region
      _
    $region33: #{_lambda_.25} parent=1 // pred_fallthru
      _
    // Predicated region
    $region34: #{_lambda_.25} parent=1 // pred_check
      _
    $region35: #{_lambda_.25} parent=1 // pred_check_branch
      %129 = sbr.rel (0) target = $region37
    $region36: #{_lambda_.25} parent=1 // pred_region
      _
    $region37: #{_lambda_.25} parent=1 // pred_fallthru
      _
    %130 = vsyncpa [#allocation4], 1

// kernel: _lambda_.27
$region0: #{_lambda_.27}
  #allocation0 [shape = 'u32[]', space=smem, size = 0x4, offset = 0x4, fixed_abs, tag = 'smem constant byte address 0x4 - core index']
  #allocation1 [shape = 'u32[72,128]{1,0:T(1,128)}', space=vmem, size = 0x9000, scoped, tag = 'internal scratch']
  #allocation2 [shape = 'f32[16,64]{1,0:T(8,128)}', space=vmem, size = 0x2000, scoped, tag = 'scratch operand']
  %s0 = inlined_call_operand.vmem [shape: bf16[16,128], index: 0, kind: input, shape index: {}]
  %s1 = inlined_call_operand.vmem [shape: bf16[16,64], index: 1, kind: input, shape index: {}]
  %s2 = inlined_call_operand.vmem [shape: bf16[128,64], index: 2, kind: input, shape index: {}]
  %s3 = inlined_call_operand.vmem [shape: f32[16,64], index: 3, kind: output, shape index: {}]
  %s4 = sld [smem:[#allocation0]]
  $region30: #{_lambda_.27} parent=0
    _
  %s6 = ssub.s32 1, %s4
  %s7 = scalar_select 0, %s6, %s4
  // Predicated region
  $region2: #{_lambda_.27} parent=0 // pred_check
    _
  $region3: #{_lambda_.27} parent=0 // pred_check_branch
    %9 = sbr.rel (0) target = $region5
  $region4: #{_lambda_.27} parent=0 // pred_region
    _
  $region5: #{_lambda_.27} parent=0 // pred_fallthru
    _
  // Predicated region
  $region6: #{_lambda_.27} parent=0 // pred_check
    _
  $region7: #{_lambda_.27} parent=0 // pred_check_branch
    %11 = sbr.rel (0) target = $region9
  $region8: #{_lambda_.27} parent=0 // pred_region
    _
  $region9: #{_lambda_.27} parent=0 // pred_fallthru
    _
  // Predicated region
  $region10: #{_lambda_.27} parent=0 // pred_check
    _
  $region11: #{_lambda_.27} parent=0 // pred_check_branch
    %13 = sbr.rel (0) target = $region13
  $region12: #{_lambda_.27} parent=0 // pred_region
    _
  $region13: #{_lambda_.27} parent=0 // pred_fallthru
    _
  %p14 = scmp.eq.s32.totalorder 0, 0
  // Predicated region
  $region14: #{_lambda_.27} parent=0 // pred_check
    %p15 = pneg %p14
  $region15: #{_lambda_.27} parent=0 // pred_check_branch
    %17 = sbr.rel (%p15) target = $region17
  $region16: #{_lambda_.27} parent=0 // pred_region
    %vm18 = vcmask 523264
    %19 = vst.msk [vmem:[#allocation2] sm:$0xff] %vm18, 0.0
    %20 = vst.msk [vmem:[#allocation2 + $0x8] sm:$0xff] %vm18, 0.0
  $region17: #{_lambda_.27} parent=0 // pred_fallthru
    _
  %v21 = vld [vmem:[#allocation2] sm:$0xff]
  %v22 = vld [vmem:[#allocation2 + $0x8] sm:$0xff]
  %v23 = vld [vmem:[%s0] sm:$0xf]
  %v24 = vld [vmem:[%s0 + $0x4] sm:$0xf]
  %v25 = vld [vmem:[%s2] sm:$0xf]
  %v26 = vld [vmem:[%s2 + $0x4] sm:$0xf]
  %v27 = vld [vmem:[%s2 + $0x8] sm:$0xf]
  %v28 = vld [vmem:[%s2 + $0xc] sm:$0xf]
  %v29 = vld [vmem:[%s2 + $0x10] sm:$0xf]
  %v30 = vld [vmem:[%s2 + $0x14] sm:$0xf]
  %v31 = vld [vmem:[%s2 + $0x18] sm:$0xf]
  %v32 = vld [vmem:[%s2 + $0x1c] sm:$0xf]
  %v33 = vld [vmem:[%s2 + $0x20] sm:$0xf]
  %v34 = vld [vmem:[%s2 + $0x24] sm:$0xf]
  %v35 = vld [vmem:[%s2 + $0x28] sm:$0xf]
  %v36 = vld [vmem:[%s2 + $0x2c] sm:$0xf]
  %v37 = vld [vmem:[%s2 + $0x30] sm:$0xf]
  %v38 = vld [vmem:[%s2 + $0x34] sm:$0xf]
  %v39 = vld [vmem:[%s2 + $0x38] sm:$0xf]
  %v40 = vld [vmem:[%s2 + $0x3c] sm:$0xf]
  %v43 = vunpack.c.l.b16 %v23
  %v44 = vunpack.c.l.b16 %v24
  %v45 = vpack.c.b16 %v44, %v43
  %v63 = vunpack.c.l.b16 %v25
  %v64 = vunpack.c.l.b16 %v26
  %v65 = vunpack.c.l.b16 %v27
  %v66 = vunpack.c.l.b16 %v28
  %v67 = vunpack.c.l.b16 %v29
  %v68 = vunpack.c.l.b16 %v30
  %v69 = vunpack.c.l.b16 %v31
  %v70 = vunpack.c.l.b16 %v32
  %v71 = vunpack.c.l.b16 %v33
  %v72 = vunpack.c.l.b16 %v34
  %v73 = vunpack.c.l.b16 %v35
  %v74 = vunpack.c.l.b16 %v36
  %v75 = vunpack.c.l.b16 %v37
  %v76 = vunpack.c.l.b16 %v38
  %v77 = vunpack.c.l.b16 %v39
  %v78 = vunpack.c.l.b16 %v40
  %v79 = vpack.c.b16 %v64, %v63
  %v80 = vpack.c.b16 %v66, %v65
  %v81 = vpack.c.b16 %v68, %v67
  %v82 = vpack.c.b16 %v70, %v69
  %v83 = vpack.c.b16 %v72, %v71
  %v84 = vpack.c.b16 %v74, %v73
  %v85 = vpack.c.b16 %v76, %v75
  %v86 = vpack.c.b16 %v78, %v77
  %95 = vmatpush.bf16.msra.mxu0 %v86
  %96 = vmatpush.bf16.msra.mxu0 %v85
  %97 = vmatpush.bf16.msra.mxu0 %v84
  %98 = vmatpush.bf16.msra.mxu0 %v83
  %99 = vmatpush.bf16.msra.mxu0 %v82
  %100 = vmatpush.bf16.msra.mxu0 %v81
  %101 = vmatpush.bf16.msra.mxu0 %v80
  %102 = vmatpush.bf16.msra.mxu0 %v79
  %103 = vmatmul.bf16.gmra.mxu0 %v45
  %v104 = vpop.f32.mrf.mxu0
  %v105 = vadd.f32 0.0, %v104
  %v106 = vpop.f32.mrf.mxu0
  %v107 = vadd.f32 0.0, %v106
  %108 = vdwg.mxu0
  %v109 = vadd.f32 %v21, %v105
  %v110 = vadd.f32 %v22, %v107
  %vm111 = vcmask 523264
  %112 = vst.msk [vmem:[#allocation2] sm:$0xff] %vm111, %v109
  %113 = vst.msk [vmem:[#allocation2 + $0x8] sm:$0xff] %vm111, %v110
  // Predicated region
  $region18: #{_lambda_.27} parent=0 // pred_check
    %p114 = pneg %p14
  $region19: #{_lambda_.27} parent=0 // pred_check_branch
    %116 = sbr.rel (%p114) target = $region21
  $region20: #{_lambda_.27} parent=0 // pred_region
    %v117 = vld [vmem:[%s1] sm:$0xf]
    %v118 = vld [vmem:[%s1 + $0x4] sm:$0xf]
    %v119 = vunpack.c.l.bf16 %v117
    %v120 = vunpack.c.l.bf16 %v118
    %v121 = vld [vmem:[#allocation2] sm:$0xff]
    %v122 = vld [vmem:[#allocation2 + $0x8] sm:$0xff]
    %v123 = vmul.f32 %v119, %v121
    %v124 = vmul.f32 %v120, %v122
    %125 = vst.msk [vmem:[%s3] sm:$0xff] %vm111, %v123
    %126 = vst.msk [vmem:[%s3 + $0x8] sm:$0xff] %vm111, %v124
  $region21: #{_lambda_.27} parent=0 // pred_fallthru
    _
  // Predicated region
  $region22: #{_lambda_.27} parent=0 // pred_check
    _
  $region23: #{_lambda_.27} parent=0 // pred_check_branch
    %128 = sbr.rel (0) target = $region25
  $region24: #{_lambda_.27} parent=0 // pred_region
    _
  $region25: #{_lambda_.27} parent=0 // pred_fallthru
    _
  // Predicated region
  $region26: #{_lambda_.27} parent=0 // pred_check
    _
  $region27: #{_lambda_.27} parent=0 // pred_check_branch
    %130 = sbr.rel (0) target = $region29
  $region28: #{_lambda_.27} parent=0 // pred_region
    _
  $region29: #{_lambda_.27} parent=0 // pred_fallthru
    _

</llo_original>
